<compile_context>
chip_gen: v7x
topology: tpu7x:2x2x1
jax: 0.10.0
libtpu: 0.0.40
codegen_flags: <defaults>
</compile_context>

<pallas_src>
import numpy as np
import jax
import jax.numpy as jnp
from jax import lax
from jax.experimental import pallas as pl
from jax.experimental.pallas import tpu as pltpu

NEG_SLOPE = 0.01   # nn.LeakyReLU default
P1_PAD = 88        # 9x9 = 81 stage-1 pooled pixels, padded to a multiple of 8


# ---------------------------------------------------------------------------
# Constant 0/1 gather matrix: stage-2 (conv 3x3 pad 1 + maxpool 2x2) im2col.
#   row = tap*(4*16) + pool_window*16 + pooled_pixel,  col = stage-1 pixel.
#   Rows whose source pixel lies in the conv zero-padding are all-zero.
# ---------------------------------------------------------------------------
def _build_stage2_gather():
    g = np.zeros((576, P1_PAD), np.float32)
    for ky in range(3):
        for kx in range(3):
            t = ky * 3 + kx
            for dy in range(2):
                for dx in range(2):
                    k2 = dy * 2 + dx
                    for oy in range(4):
                        for ox in range(4):
                            q = k2 * 16 + oy * 4 + ox
                            y1 = 2 * oy + dy + ky - 1
                            x1 = 2 * ox + dx + kx - 1
                            if 0 <= y1 < 9 and 0 <= x1 < 9:
                                g[t * 64 + q, y1 * 9 + x1] = 1.0
    return jnp.asarray(g, jnp.bfloat16)


_G_STAGE2 = _build_stage2_gather()


# ---------------------------------------------------------------------------
# Fused Pallas kernel: conv1+pool1 -> conv2+pool2 -> linear, one batch block.
# ---------------------------------------------------------------------------
def fused_cnn_kernel(p1_ref, g_ref, w1_ref, b1_ref, w2_ref, b2_ref,
                     wl_ref, bl_ref, o_ref):
    bblk = p1_ref.shape[0]
    npix = p1_ref.shape[2]                                   # P1_PAD

    # ---- stage 1: conv1 as ONE (bblk*9*npix, 9) @ (9, 128) bf16 matmul ----
    lhs1 = p1_ref[...].reshape(bblk * 9 * npix, 9)
    a1 = jnp.dot(lhs1, w1_ref[...], preferred_element_type=jnp.float32)
    a1 = a1 + b1_ref[...]
    a1 = jnp.where(a1 > 0.0, a1, NEG_SLOPE * a1)             # LeakyReLU (f32)
    a1 = a1.reshape(bblk, 9, npix, 128)
    pooled1 = a1[:, 0]
    for k in range(1, 9):                                    # 3x3 max-pool
        pooled1 = jnp.maximum(pooled1, a1[:, k])             # (bblk, npix, 128)

    # ---- stage 2: in-kernel im2col via 0/1 gather matmul + ONE conv matmul ----
    gb = jnp.broadcast_to(g_ref[...][None], (bblk,) + g_ref.shape)
    patches2 = lax.dot_general(                              # (bblk, 576, 128)
        gb, pooled1.astype(jnp.bfloat16),
        dimension_numbers=(((2,), (1,)), ((0,), (0,))),
        preferred_element_type=jnp.float32)
    # tap-major rows -> put the 9 taps on the lane axis (9*128 = 1152 features)
    p2cat = jnp.concatenate(
        [patches2[:, t * 64:(t + 1) * 64, :] for t in range(9)], axis=-1)
    a2 = jnp.dot(p2cat.reshape(bblk * 64, 9 * 128).astype(jnp.bfloat16),
                 w2_ref[...], preferred_element_type=jnp.float32)
    a2 = a2 + b2_ref[...]
    a2 = jnp.where(a2 > 0.0, a2, NEG_SLOPE * a2)
    a2 = a2.reshape(bblk, 64, 128)                           # rows = window*16+pix
    pooled2 = a2[:, 0:16]
    for k in range(1, 4):                                    # 2x2 max-pool
        pooled2 = jnp.maximum(pooled2, a2[:, k * 16:(k + 1) * 16])  # (bblk,16,128)

    # ---- classifier: PyTorch flatten permutation is folded into wl_ref ----
    flat = jnp.concatenate([pooled2[:, q] for q in range(16)], axis=-1)
    out = jnp.dot(flat.astype(jnp.bfloat16), wl_ref[...],
                  preferred_element_type=jnp.float32) + bl_ref[...]
    o_ref[0] = out                                           # lane-dense (bblk,128)


# ---------------------------------------------------------------------------
# Plain-JAX glue (layout only)
# ---------------------------------------------------------------------------
def _stage1_pool_patches(x_nchw):
    """(B,1,28,28) -> (B, 9 pool-offsets, P1_PAD pooled pixels, 9 taps) bf16."""
    B = x_nchw.shape[0]
    x = x_nchw.reshape(B, 28, 28)
    xp = jnp.pad(x, ((0, 0), (1, 1), (1, 1)))                # (B, 30, 30)
    slabs = [xp[:, ky:ky + 28, kx:kx + 28]
             for ky in range(3) for kx in range(3)]
    pf = jnp.stack(slabs, axis=-1)                           # (B, 28, 28, 9)
    pf = pf[:, :27, :27, :].reshape(B, 9, 3, 9, 3, 9)
    pf = jnp.transpose(pf, (0, 2, 4, 1, 3, 5))               # (B,dy,dx,oy,ox,f)
    pf = pf.reshape(B, 9, 81, 9)
    pf = jnp.pad(pf, ((0, 0), (0, 0), (0, P1_PAD - 81), (0, 0)))
    return pf.astype(jnp.bfloat16)
    # TODO(synk): stage-1 pool-window im2col stays as a cheap XLA layout op;
    # forming it from the raw 30x30 tile in-kernel needs strided slices that
    # are not reliably lowerable today.


def _prep_weights(params, output_shape):
    w1, b1, w2, b2, wl, bl = params
    f32 = jnp.float32
    w1k = jnp.zeros((9, 128), f32).at[:, :10].set(w1.reshape(10, 9).T)
    b1k = jnp.zeros((1, 128), f32).at[0, :10].set(b1)
    w2r = jnp.transpose(w2, (2, 3, 1, 0))                    # (ky,kx,cin,cout)
    w2k = jnp.zeros((3, 3, 128, 128), f32).at[:, :, :10, :10].set(w2r)
    w2k = w2k.reshape(9 * 128, 128)
    b2k = jnp.zeros((1, 128), f32).at[0, :10].set(b2)
    wlr = jnp.transpose(wl.reshape(output_shape, 10, 16), (2, 1, 0))  # (p2,c,o)
    wlk = jnp.zeros((16, 128, 128), f32).at[:, :10, :output_shape].set(wlr)
    wlk = wlk.reshape(16 * 128, 128)
    blk = jnp.zeros((1, 128), f32).at[0, :output_shape].set(bl)
    return (w1k.astype(jnp.bfloat16), b1k, w2k.astype(jnp.bfloat16), b2k,
            wlk.astype(jnp.bfloat16), blk)


def init_params(key, output_shape=10):
    ks = jax.random.split(key, 6)
    w1 = jax.random.normal(ks[0], (10, 1, 3, 3), jnp.float32) * 0.2
    b1 = jax.random.normal(ks[1], (10,), jnp.float32) * 0.05
    w2 = jax.random.normal(ks[2], (10, 10, 3, 3), jnp.float32) * 0.1
    b2 = jax.random.normal(ks[3], (10,), jnp.float32) * 0.05
    wl = jax.random.normal(ks[4], (output_shape, 160), jnp.float32) * 0.05
    bl = jax.random.normal(ks[5], (output_shape,), jnp.float32) * 0.05
    return (w1, b1, w2, b2, wl, bl)


def cnn_forward(x_nchw, params, output_shape=10):
    B = x_nchw.shape[0]
    assert x_nchw.shape[1:] == (1, 28, 28)
    assert output_shape <= 128
    # batch blocking: >=2 grid steps (v7x megacore) at small B, 8 imgs/step beyond
    bblk = 8 if B >= 16 else max(1, (B + 1) // 2)
    steps = -(-B // bblk)
    bpad = steps * bblk

    patches1 = _stage1_pool_patches(x_nchw)
    if bpad != B:
        patches1 = jnp.pad(patches1, ((0, bpad - B), (0, 0), (0, 0), (0, 0)))
    w1k, b1k, w2k, b2k, wlk, blk = _prep_weights(params, output_shape)

    out = pl.pallas_call(
        fused_cnn_kernel,
        out_shape=jax.ShapeDtypeStruct((steps, bblk, 128), jnp.float32),
        grid=(steps,),
        in_specs=[
            pl.BlockSpec((bblk, 9, P1_PAD, 9), lambda i: (i, 0, 0, 0)),  # patches1
            pl.BlockSpec((576, P1_PAD), lambda i: (0, 0)),               # gather G
            pl.BlockSpec((9, 128), lambda i: (0, 0)),                    # w1
            pl.BlockSpec((1, 128), lambda i: (0, 0)),                    # b1
            pl.BlockSpec((9 * 128, 128), lambda i: (0, 0)),              # w2
            pl.BlockSpec((1, 128), lambda i: (0, 0)),                    # b2
            pl.BlockSpec((16 * 128, 128), lambda i: (0, 0)),             # wl
            pl.BlockSpec((1, 128), lambda i: (0, 0)),                    # bl
        ],
        out_specs=pl.BlockSpec((1, bblk, 128), lambda i: (i, 0, 0)),
        compiler_params=pltpu.CompilerParams(
            dimension_semantics=("parallel",)),
    )(patches1, _G_STAGE2, w1k, b1k, w2k, b2k, wlk, blk)

    return out.reshape(bpad, 128)[:B, :output_shape]


def reference_forward(x, params):
    """Pure-JAX f32 reference (lax.conv / reduce_window) for verification."""
    w1, b1, w2, b2, wl, bl = params
    dn = ("NCHW", "OIHW", "NCHW")
    hi = jax.lax.Precision.HIGHEST
    y = jax.lax.conv_general_dilated(x, w1, (1, 1), ((1, 1), (1, 1)),
                                     dimension_numbers=dn, precision=hi)
    y = y + b1[None, :, None, None]
    y = jnp.where(y > 0, y, NEG_SLOPE * y)
    y = jax.lax.reduce_window(y, -jnp.inf, jax.lax.max,
                              (1, 1, 3, 3), (1, 1, 3, 3), "VALID")
    y = jax.lax.conv_general_dilated(y, w2, (1, 1), ((1, 1), (1, 1)),
                                     dimension_numbers=dn, precision=hi)
    y = y + b2[None, :, None, None]
    y = jnp.where(y > 0, y, NEG_SLOPE * y)
    y = jax.lax.reduce_window(y, -jnp.inf, jax.lax.max,
                              (1, 1, 2, 2), (1, 1, 2, 2), "VALID")
    y = y.reshape(y.shape[0], -1)
    return jnp.dot(y, wl.T, precision=hi) + bl


if __name__ == "__main__":
    key = jax.random.PRNGKey(0)
    kx, kp = jax.random.split(key)
    # batch=2; spatial must be 28x28 so the flatten yields 160 features.
    x = jax.random.normal(kx, (2, 1, 28, 28), jnp.float32)
    params = init_params(kp, output_shape=10)

    fwd = jax.jit(cnn_forward)
    out = jax.block_until_ready(fwd(x, params))
    assert out.shape == (2, 10)

    ref = reference_forward(x, params)
    err = float(jnp.max(jnp.abs(out - ref)))
    # bf16 MXU inputs (f32 accumulate/epilogue) -> looser tolerance than pure f32
    assert jnp.allclose(out, ref, atol=5e-2, rtol=5e-2), err

    print("KERNEL_OK")
</pallas_src>

<mosaic_0001>
module attributes {stable_mosaic.version = 11 : i64} {
  func.func @fused_cnn_kernel(%arg0: i32, %arg1: memref<1x9x88x9xbf16, #tpu.memory_space<vmem>>, %arg2: memref<576x88xbf16, #tpu.memory_space<vmem>>, %arg3: memref<9x128xbf16, #tpu.memory_space<vmem>>, %arg4: memref<1x128xf32, #tpu.memory_space<vmem>>, %arg5: memref<1152x128xbf16, #tpu.memory_space<vmem>>, %arg6: memref<1x128xf32, #tpu.memory_space<vmem>>, %arg7: memref<2048x128xbf16, #tpu.memory_space<vmem>>, %arg8: memref<1x128xf32, #tpu.memory_space<vmem>>, %arg9: memref<1x1x128xf32, #tpu.memory_space<vmem>>) attributes {dimension_semantics = [#tpu.dimension_semantics<parallel>], iteration_bounds = array<i64: 2>, scalar_prefetch = 0 : i64, scratch_operands = 0 : i64, tpu.core_type = #tpu.core_type<tc>, window_params = [{transform_indices = @transform_0, window_bounds = array<i64: 1, 9, 88, 9>}, {pipeline_mode = #tpu.pipeline_mode<synchronous>, transform_indices = @transform_1, window_bounds = array<i64: 576, 88>}, {pipeline_mode = #tpu.pipeline_mode<synchronous>, transform_indices = @transform_2, window_bounds = array<i64: 9, 128>}, {pipeline_mode = #tpu.pipeline_mode<synchronous>, transform_indices = @transform_3, window_bounds = array<i64: 1, 128>}, {pipeline_mode = #tpu.pipeline_mode<synchronous>, transform_indices = @transform_4, window_bounds = array<i64: 1152, 128>}, {pipeline_mode = #tpu.pipeline_mode<synchronous>, transform_indices = @transform_5, window_bounds = array<i64: 1, 128>}, {pipeline_mode = #tpu.pipeline_mode<synchronous>, transform_indices = @transform_6, window_bounds = array<i64: 2048, 128>}, {pipeline_mode = #tpu.pipeline_mode<synchronous>, transform_indices = @transform_7, window_bounds = array<i64: 1, 128>}, {transform_indices = @transform_8, window_bounds = array<i64: 1, 1, 128>}]} {
    %c0 = arith.constant 0 : index
    %c0_0 = arith.constant 0 : index
    %c0_1 = arith.constant 0 : index
    %c0_2 = arith.constant 0 : index
    %0 = vector.load %arg1[%c0, %c0_0, %c0_1, %c0_2] : memref<1x9x88x9xbf16, #tpu.memory_space<vmem>>, vector<1x9x88x9xbf16>
    %1 = vector.shape_cast %0 : vector<1x9x88x9xbf16> to vector<792x9xbf16>
    %c0_3 = arith.constant 0 : index
    %c0_4 = arith.constant 0 : index
    %2 = vector.load %arg3[%c0_3, %c0_4] : memref<9x128xbf16, #tpu.memory_space<vmem>>, vector<9x128xbf16>
    %cst = arith.constant dense<0.000000e+00> : vector<792x128xf32>
    %3 = tpu.matmul %1, %2, %cst {dimension_numbers = #tpu.dot_dimension_numbers<[1], [0], [0], [1], [0, 0, 1, 1], [], []>} : vector<792x9xbf16>, vector<9x128xbf16>, vector<792x128xf32> -> vector<792x128xf32>
    %c0_5 = arith.constant 0 : index
    %c0_6 = arith.constant 0 : index
    %4 = vector.load %arg4[%c0_5, %c0_6] : memref<1x128xf32, #tpu.memory_space<vmem>>, vector<1x128xf32>
    %5 = vector.broadcast %4 : vector<1x128xf32> to vector<792x128xf32>
    %6 = arith.addf %3, %5 : vector<792x128xf32>
    %cst_7 = arith.constant 0.000000e+00 : f32
    %7 = vector.broadcast %cst_7 : f32 to vector<792x128xf32>
    %8 = arith.cmpf ogt, %6, %7 : vector<792x128xf32>
    %cst_8 = arith.constant 0.00999999977 : f32
    %9 = vector.broadcast %cst_8 : f32 to vector<792x128xf32>
    %10 = arith.mulf %9, %6 : vector<792x128xf32>
    %11 = arith.select %8, %6, %10 : vector<792x128xi1>, vector<792x128xf32>
    %12 = vector.shape_cast %11 : vector<792x128xf32> to vector<1x9x88x128xf32>
    %13 = vector.extract_strided_slice %12 {offsets = [0, 0, 0, 0], sizes = [1, 1, 88, 128], strides = [1, 1, 1, 1]} : vector<1x9x88x128xf32> to vector<1x1x88x128xf32>
    %14 = vector.shape_cast %13 : vector<1x1x88x128xf32> to vector<1x88x128xf32>
    %15 = vector.extract_strided_slice %12 {offsets = [0, 1, 0, 0], sizes = [1, 1, 88, 128], strides = [1, 1, 1, 1]} : vector<1x9x88x128xf32> to vector<1x1x88x128xf32>
    %16 = vector.shape_cast %15 : vector<1x1x88x128xf32> to vector<1x88x128xf32>
    %17 = arith.maximumf %14, %16 : vector<1x88x128xf32>
    %18 = vector.extract_strided_slice %12 {offsets = [0, 2, 0, 0], sizes = [1, 1, 88, 128], strides = [1, 1, 1, 1]} : vector<1x9x88x128xf32> to vector<1x1x88x128xf32>
    %19 = vector.shape_cast %18 : vector<1x1x88x128xf32> to vector<1x88x128xf32>
    %20 = arith.maximumf %17, %19 : vector<1x88x128xf32>
    %21 = vector.extract_strided_slice %12 {offsets = [0, 3, 0, 0], sizes = [1, 1, 88, 128], strides = [1, 1, 1, 1]} : vector<1x9x88x128xf32> to vector<1x1x88x128xf32>
    %22 = vector.shape_cast %21 : vector<1x1x88x128xf32> to vector<1x88x128xf32>
    %23 = arith.maximumf %20, %22 : vector<1x88x128xf32>
    %24 = vector.extract_strided_slice %12 {offsets = [0, 4, 0, 0], sizes = [1, 1, 88, 128], strides = [1, 1, 1, 1]} : vector<1x9x88x128xf32> to vector<1x1x88x128xf32>
    %25 = vector.shape_cast %24 : vector<1x1x88x128xf32> to vector<1x88x128xf32>
    %26 = arith.maximumf %23, %25 : vector<1x88x128xf32>
    %27 = vector.extract_strided_slice %12 {offsets = [0, 5, 0, 0], sizes = [1, 1, 88, 128], strides = [1, 1, 1, 1]} : vector<1x9x88x128xf32> to vector<1x1x88x128xf32>
    %28 = vector.shape_cast %27 : vector<1x1x88x128xf32> to vector<1x88x128xf32>
    %29 = arith.maximumf %26, %28 : vector<1x88x128xf32>
    %30 = vector.extract_strided_slice %12 {offsets = [0, 6, 0, 0], sizes = [1, 1, 88, 128], strides = [1, 1, 1, 1]} : vector<1x9x88x128xf32> to vector<1x1x88x128xf32>
    %31 = vector.shape_cast %30 : vector<1x1x88x128xf32> to vector<1x88x128xf32>
    %32 = arith.maximumf %29, %31 : vector<1x88x128xf32>
    %33 = vector.extract_strided_slice %12 {offsets = [0, 7, 0, 0], sizes = [1, 1, 88, 128], strides = [1, 1, 1, 1]} : vector<1x9x88x128xf32> to vector<1x1x88x128xf32>
    %34 = vector.shape_cast %33 : vector<1x1x88x128xf32> to vector<1x88x128xf32>
    %35 = arith.maximumf %32, %34 : vector<1x88x128xf32>
    %36 = vector.extract_strided_slice %12 {offsets = [0, 8, 0, 0], sizes = [1, 1, 88, 128], strides = [1, 1, 1, 1]} : vector<1x9x88x128xf32> to vector<1x1x88x128xf32>
    %37 = vector.shape_cast %36 : vector<1x1x88x128xf32> to vector<1x88x128xf32>
    %38 = arith.maximumf %35, %37 : vector<1x88x128xf32>
    %c0_9 = arith.constant 0 : index
    %c0_10 = arith.constant 0 : index
    %39 = vector.load %arg2[%c0_9, %c0_10] : memref<576x88xbf16, #tpu.memory_space<vmem>>, vector<576x88xbf16>
    %40 = vector.shape_cast %39 : vector<576x88xbf16> to vector<1x576x88xbf16>
    %41 = arith.truncf %38 : vector<1x88x128xf32> to vector<1x88x128xbf16>
    %cst_11 = arith.constant dense<0.000000e+00> : vector<1x576x128xf32>
    %42 = tpu.matmul %40, %41, %cst_11 {dimension_numbers = #tpu.dot_dimension_numbers<[2], [1], [1], [2], [0, 0, 0, 1, 1, 2], [0], [0]>} : vector<1x576x88xbf16>, vector<1x88x128xbf16>, vector<1x576x128xf32> -> vector<1x576x128xf32>
    %43 = vector.extract_strided_slice %42 {offsets = [0, 0, 0], sizes = [1, 64, 128], strides = [1, 1, 1]} : vector<1x576x128xf32> to vector<1x64x128xf32>
    %44 = vector.extract_strided_slice %42 {offsets = [0, 64, 0], sizes = [1, 64, 128], strides = [1, 1, 1]} : vector<1x576x128xf32> to vector<1x64x128xf32>
    %45 = vector.extract_strided_slice %42 {offsets = [0, 128, 0], sizes = [1, 64, 128], strides = [1, 1, 1]} : vector<1x576x128xf32> to vector<1x64x128xf32>
    %46 = vector.extract_strided_slice %42 {offsets = [0, 192, 0], sizes = [1, 64, 128], strides = [1, 1, 1]} : vector<1x576x128xf32> to vector<1x64x128xf32>
    %47 = vector.extract_strided_slice %42 {offsets = [0, 256, 0], sizes = [1, 64, 128], strides = [1, 1, 1]} : vector<1x576x128xf32> to vector<1x64x128xf32>
    %48 = vector.extract_strided_slice %42 {offsets = [0, 320, 0], sizes = [1, 64, 128], strides = [1, 1, 1]} : vector<1x576x128xf32> to vector<1x64x128xf32>
    %49 = vector.extract_strided_slice %42 {offsets = [0, 384, 0], sizes = [1, 64, 128], strides = [1, 1, 1]} : vector<1x576x128xf32> to vector<1x64x128xf32>
    %50 = vector.extract_strided_slice %42 {offsets = [0, 448, 0], sizes = [1, 64, 128], strides = [1, 1, 1]} : vector<1x576x128xf32> to vector<1x64x128xf32>
    %51 = vector.extract_strided_slice %42 {offsets = [0, 512, 0], sizes = [1, 64, 128], strides = [1, 1, 1]} : vector<1x576x128xf32> to vector<1x64x128xf32>
    %52 = tpu.concatenate %43, %44, %45, %46, %47, %48, %49, %50, %51 in 2 : vector<1x64x128xf32>, vector<1x64x128xf32>, vector<1x64x128xf32>, vector<1x64x128xf32>, vector<1x64x128xf32>, vector<1x64x128xf32>, vector<1x64x128xf32>, vector<1x64x128xf32>, vector<1x64x128xf32> -> vector<1x64x1152xf32>
    %53 = vector.shape_cast %52 : vector<1x64x1152xf32> to vector<64x1152xf32>
    %54 = arith.truncf %53 : vector<64x1152xf32> to vector<64x1152xbf16>
    %c0_12 = arith.constant 0 : index
    %c0_13 = arith.constant 0 : index
    %55 = vector.load %arg5[%c0_12, %c0_13] : memref<1152x128xbf16, #tpu.memory_space<vmem>>, vector<1152x128xbf16>
    %cst_14 = arith.constant dense<0.000000e+00> : vector<64x128xf32>
    %56 = tpu.matmul %54, %55, %cst_14 {dimension_numbers = #tpu.dot_dimension_numbers<[1], [0], [0], [1], [0, 0, 1, 1], [], []>} : vector<64x1152xbf16>, vector<1152x128xbf16>, vector<64x128xf32> -> vector<64x128xf32>
    %c0_15 = arith.constant 0 : index
    %c0_16 = arith.constant 0 : index
    %57 = vector.load %arg6[%c0_15, %c0_16] : memref<1x128xf32, #tpu.memory_space<vmem>>, vector<1x128xf32>
    %58 = vector.broadcast %57 : vector<1x128xf32> to vector<64x128xf32>
    %59 = arith.addf %56, %58 : vector<64x128xf32>
    %cst_17 = arith.constant 0.000000e+00 : f32
    %60 = vector.broadcast %cst_17 : f32 to vector<64x128xf32>
    %61 = arith.cmpf ogt, %59, %60 : vector<64x128xf32>
    %cst_18 = arith.constant 0.00999999977 : f32
    %62 = vector.broadcast %cst_18 : f32 to vector<64x128xf32>
    %63 = arith.mulf %62, %59 : vector<64x128xf32>
    %64 = arith.select %61, %59, %63 : vector<64x128xi1>, vector<64x128xf32>
    %65 = vector.shape_cast %64 : vector<64x128xf32> to vector<1x64x128xf32>
    %66 = vector.extract_strided_slice %65 {offsets = [0, 0, 0], sizes = [1, 16, 128], strides = [1, 1, 1]} : vector<1x64x128xf32> to vector<1x16x128xf32>
    %67 = vector.extract_strided_slice %65 {offsets = [0, 16, 0], sizes = [1, 16, 128], strides = [1, 1, 1]} : vector<1x64x128xf32> to vector<1x16x128xf32>
    %68 = arith.maximumf %66, %67 : vector<1x16x128xf32>
    %69 = vector.extract_strided_slice %65 {offsets = [0, 32, 0], sizes = [1, 16, 128], strides = [1, 1, 1]} : vector<1x64x128xf32> to vector<1x16x128xf32>
    %70 = arith.maximumf %68, %69 : vector<1x16x128xf32>
    %71 = vector.extract_strided_slice %65 {offsets = [0, 48, 0], sizes = [1, 16, 128], strides = [1, 1, 1]} : vector<1x64x128xf32> to vector<1x16x128xf32>
    %72 = arith.maximumf %70, %71 : vector<1x16x128xf32>
    %73 = vector.extract_strided_slice %72 {offsets = [0, 0, 0], sizes = [1, 1, 128], strides = [1, 1, 1]} : vector<1x16x128xf32> to vector<1x1x128xf32>
    %74 = vector.shape_cast %73 : vector<1x1x128xf32> to vector<1x128xf32>
    %75 = vector.extract_strided_slice %72 {offsets = [0, 1, 0], sizes = [1, 1, 128], strides = [1, 1, 1]} : vector<1x16x128xf32> to vector<1x1x128xf32>
    %76 = vector.shape_cast %75 : vector<1x1x128xf32> to vector<1x128xf32>
    %77 = vector.extract_strided_slice %72 {offsets = [0, 2, 0], sizes = [1, 1, 128], strides = [1, 1, 1]} : vector<1x16x128xf32> to vector<1x1x128xf32>
    %78 = vector.shape_cast %77 : vector<1x1x128xf32> to vector<1x128xf32>
    %79 = vector.extract_strided_slice %72 {offsets = [0, 3, 0], sizes = [1, 1, 128], strides = [1, 1, 1]} : vector<1x16x128xf32> to vector<1x1x128xf32>
    %80 = vector.shape_cast %79 : vector<1x1x128xf32> to vector<1x128xf32>
    %81 = vector.extract_strided_slice %72 {offsets = [0, 4, 0], sizes = [1, 1, 128], strides = [1, 1, 1]} : vector<1x16x128xf32> to vector<1x1x128xf32>
    %82 = vector.shape_cast %81 : vector<1x1x128xf32> to vector<1x128xf32>
    %83 = vector.extract_strided_slice %72 {offsets = [0, 5, 0], sizes = [1, 1, 128], strides = [1, 1, 1]} : vector<1x16x128xf32> to vector<1x1x128xf32>
    %84 = vector.shape_cast %83 : vector<1x1x128xf32> to vector<1x128xf32>
    %85 = vector.extract_strided_slice %72 {offsets = [0, 6, 0], sizes = [1, 1, 128], strides = [1, 1, 1]} : vector<1x16x128xf32> to vector<1x1x128xf32>
    %86 = vector.shape_cast %85 : vector<1x1x128xf32> to vector<1x128xf32>
    %87 = vector.extract_strided_slice %72 {offsets = [0, 7, 0], sizes = [1, 1, 128], strides = [1, 1, 1]} : vector<1x16x128xf32> to vector<1x1x128xf32>
    %88 = vector.shape_cast %87 : vector<1x1x128xf32> to vector<1x128xf32>
    %89 = vector.extract_strided_slice %72 {offsets = [0, 8, 0], sizes = [1, 1, 128], strides = [1, 1, 1]} : vector<1x16x128xf32> to vector<1x1x128xf32>
    %90 = vector.shape_cast %89 : vector<1x1x128xf32> to vector<1x128xf32>
    %91 = vector.extract_strided_slice %72 {offsets = [0, 9, 0], sizes = [1, 1, 128], strides = [1, 1, 1]} : vector<1x16x128xf32> to vector<1x1x128xf32>
    %92 = vector.shape_cast %91 : vector<1x1x128xf32> to vector<1x128xf32>
    %93 = vector.extract_strided_slice %72 {offsets = [0, 10, 0], sizes = [1, 1, 128], strides = [1, 1, 1]} : vector<1x16x128xf32> to vector<1x1x128xf32>
    %94 = vector.shape_cast %93 : vector<1x1x128xf32> to vector<1x128xf32>
    %95 = vector.extract_strided_slice %72 {offsets = [0, 11, 0], sizes = [1, 1, 128], strides = [1, 1, 1]} : vector<1x16x128xf32> to vector<1x1x128xf32>
    %96 = vector.shape_cast %95 : vector<1x1x128xf32> to vector<1x128xf32>
    %97 = vector.extract_strided_slice %72 {offsets = [0, 12, 0], sizes = [1, 1, 128], strides = [1, 1, 1]} : vector<1x16x128xf32> to vector<1x1x128xf32>
    %98 = vector.shape_cast %97 : vector<1x1x128xf32> to vector<1x128xf32>
    %99 = vector.extract_strided_slice %72 {offsets = [0, 13, 0], sizes = [1, 1, 128], strides = [1, 1, 1]} : vector<1x16x128xf32> to vector<1x1x128xf32>
    %100 = vector.shape_cast %99 : vector<1x1x128xf32> to vector<1x128xf32>
    %101 = vector.extract_strided_slice %72 {offsets = [0, 14, 0], sizes = [1, 1, 128], strides = [1, 1, 1]} : vector<1x16x128xf32> to vector<1x1x128xf32>
    %102 = vector.shape_cast %101 : vector<1x1x128xf32> to vector<1x128xf32>
    %103 = vector.extract_strided_slice %72 {offsets = [0, 15, 0], sizes = [1, 1, 128], strides = [1, 1, 1]} : vector<1x16x128xf32> to vector<1x1x128xf32>
    %104 = vector.shape_cast %103 : vector<1x1x128xf32> to vector<1x128xf32>
    %105 = tpu.concatenate %74, %76, %78, %80, %82, %84, %86, %88, %90, %92, %94, %96, %98, %100, %102, %104 in 1 : vector<1x128xf32>, vector<1x128xf32>, vector<1x128xf32>, vector<1x128xf32>, vector<1x128xf32>, vector<1x128xf32>, vector<1x128xf32>, vector<1x128xf32>, vector<1x128xf32>, vector<1x128xf32>, vector<1x128xf32>, vector<1x128xf32>, vector<1x128xf32>, vector<1x128xf32>, vector<1x128xf32>, vector<1x128xf32> -> vector<1x2048xf32>
    %106 = arith.truncf %105 : vector<1x2048xf32> to vector<1x2048xbf16>
    %c0_19 = arith.constant 0 : index
    %c0_20 = arith.constant 0 : index
    %107 = vector.load %arg7[%c0_19, %c0_20] : memref<2048x128xbf16, #tpu.memory_space<vmem>>, vector<2048x128xbf16>
    %cst_21 = arith.constant dense<0.000000e+00> : vector<1x128xf32>
    %108 = tpu.matmul %106, %107, %cst_21 {dimension_numbers = #tpu.dot_dimension_numbers<[1], [0], [0], [1], [0, 0, 1, 1], [], []>} : vector<1x2048xbf16>, vector<2048x128xbf16>, vector<1x128xf32> -> vector<1x128xf32>
    %c0_22 = arith.constant 0 : index
    %c0_23 = arith.constant 0 : index
    %109 = vector.load %arg8[%c0_22, %c0_23] : memref<1x128xf32, #tpu.memory_space<vmem>>, vector<1x128xf32>
    %110 = arith.addf %108, %109 : vector<1x128xf32>
    %c0_24 = arith.constant 0 : index
    %c0_25 = arith.constant 0 : index
    %c0_26 = arith.constant 0 : index
    %111 = vector.load %arg9[%c0_24, %c0_25, %c0_26] : memref<1x1x128xf32, #tpu.memory_space<vmem>>, vector<1x1x128xf32>
    %112 = vector.shape_cast %111 : vector<1x1x128xf32> to vector<1x128xf32>
    %113 = vector.shape_cast %110 : vector<1x128xf32> to vector<1x1x128xf32>
    tpu.vector_store %arg9[%c0_24, %c0_25, %c0_26], %113 {strides = array<i32>} : memref<1x1x128xf32, #tpu.memory_space<vmem>>, vector<1x1x128xf32>,
    return
  }
  func.func @transform_0(%arg0: i32) -> (i32, i32, i32, i32) {
    %c0_i32 = arith.constant 0 : i32
    %c0_i32_0 = arith.constant 0 : i32
    %c0_i32_1 = arith.constant 0 : i32
    %c0_i32_2 = arith.constant 0 : i32
    return %arg0, %c0_i32, %c0_i32_0, %c0_i32_1 : i32, i32, i32, i32
  }
  func.func @transform_1(%arg0: i32) -> (i32, i32) {
    %c0_i32 = arith.constant 0 : i32
    %c0_i32_0 = arith.constant 0 : i32
    %c0_i32_1 = arith.constant 0 : i32
    return %c0_i32, %c0_i32_0 : i32, i32
  }
  func.func @transform_2(%arg0: i32) -> (i32, i32) {
    %c0_i32 = arith.constant 0 : i32
    %c0_i32_0 = arith.constant 0 : i32
    %c0_i32_1 = arith.constant 0 : i32
    return %c0_i32, %c0_i32_0 : i32, i32
  }
  func.func @transform_3(%arg0: i32) -> (i32, i32) {
    %c0_i32 = arith.constant 0 : i32
    %c0_i32_0 = arith.constant 0 : i32
    %c0_i32_1 = arith.constant 0 : i32
    return %c0_i32, %c0_i32_0 : i32, i32
  }
  func.func @transform_4(%arg0: i32) -> (i32, i32) {
    %c0_i32 = arith.constant 0 : i32
    %c0_i32_0 = arith.constant 0 : i32
    %c0_i32_1 = arith.constant 0 : i32
    return %c0_i32, %c0_i32_0 : i32, i32
  }
  func.func @transform_5(%arg0: i32) -> (i32, i32) {
    %c0_i32 = arith.constant 0 : i32
    %c0_i32_0 = arith.constant 0 : i32
    %c0_i32_1 = arith.constant 0 : i32
    return %c0_i32, %c0_i32_0 : i32, i32
  }
  func.func @transform_6(%arg0: i32) -> (i32, i32) {
    %c0_i32 = arith.constant 0 : i32
    %c0_i32_0 = arith.constant 0 : i32
    %c0_i32_1 = arith.constant 0 : i32
    return %c0_i32, %c0_i32_0 : i32, i32
  }
  func.func @transform_7(%arg0: i32) -> (i32, i32) {
    %c0_i32 = arith.constant 0 : i32
    %c0_i32_0 = arith.constant 0 : i32
    %c0_i32_1 = arith.constant 0 : i32
    return %c0_i32, %c0_i32_0 : i32, i32
  }
  func.func @transform_8(%arg0: i32) -> (i32, i32, i32) {
    %c0_i32 = arith.constant 0 : i32
    %c0_i32_0 = arith.constant 0 : i32
    %c0_i32_1 = arith.constant 0 : i32
    return %arg0, %c0_i32, %c0_i32_0 : i32, i32, i32
  }
}

</mosaic_0001>

<llo_original>
// kernel: cnn_forward.1
$region0: #{cnn_forward.1}
  #allocation0 [shape = 'u32[]', space=smem, size = 0x4, offset = 0x4, fixed_abs, tag = 'smem constant byte address 0x4 - core index']
  #allocation1 [shape = 'u32[144,128]{1,0:T(1,128)}', space=vmem, size = 0x12000, scoped, tag = 'internal scratch']
  %s0 = inlined_call_operand.vmem [shape: bf16[2,9,88,9], index: 0, kind: input, shape index: {}]
  %s1 = inlined_call_operand.vmem [shape: bf16[576,88], index: 1, kind: input, shape index: {}]
  %s2 = inlined_call_operand.vmem [shape: bf16[9,128], index: 2, kind: input, shape index: {}]
  %s3 = inlined_call_operand.vmem [shape: f32[1,128], index: 3, kind: input, shape index: {}]
  %s4 = inlined_call_operand.vmem [shape: bf16[1152,128], index: 4, kind: input, shape index: {}]
  %s5 = inlined_call_operand.vmem [shape: f32[1,128], index: 5, kind: input, shape index: {}]
  %s6 = inlined_call_operand.vmem [shape: bf16[2048,128], index: 6, kind: input, shape index: {}]
  %s7 = inlined_call_operand.vmem [shape: f32[1,128], index: 7, kind: input, shape index: {}]
  %s8 = inlined_call_operand.hbm [shape: f32[2,1,128], index: 8, kind: output, shape index: {}]
  %s9 = sld [smem:[#allocation0]]
  $region65: #{cnn_forward.1} parent=0
    _
  %s11 = ssub.s32 1, %s9
  %s12 = scalar_select 0, %s11, %s9
  $region1: #{cnn_forward.1} parent=0
    #allocation2 [shape = 'u8[1024]{0}', space=vmem, size = 0x400, scoped, tag = 'output window, operand 0']
    #allocation3 [shape = 's32[2]{0}', space=sflag, size = 0x8, scoped, tag = 'scoped memory for cnn_forward.1']
    %13 = vsyncpa [#allocation3], 0
    %s14 = scalar_lea.sflag [#allocation3], 1
    %15 = vsyncpa %s14, 0
    loop: start=0, step=1, limit=4
    $region2: #{cnn_forward.1} parent=1 // loop_pre_header
      _
    $region3: #{cnn_forward.1} parent=1 // loop_header
      %s17 = sphi 0, %s21
      %p18 = scmp.ge.s32.totalorder %s17, 4
      %s27 = sphi 0, %s29
      %s30 = sphi 0, %s27
      %s31 = sphi 0, %s30
      %s47 = sphi 0, %s31
      %s51 = sphi 0, %s51
      %s53 = sphi 0, %s51
      %s54 = sphi 0, %s53
      %s68 = sphi 0, %s54
      %s72 = sphi 0, %s72
      %s74 = sphi 0, %s72
      %s75 = sphi 0, %s74
      %s89 = sphi 0, %s75
      %s93 = sphi 0, %s93
      %s95 = sphi 0, %s93
      %s96 = sphi 0, %s95
      %s110 = sphi 0, %s96
      %s114 = sphi 0, %s114
      %s116 = sphi 0, %s114
      %s117 = sphi 0, %s116
      %s131 = sphi 0, %s117
      %s135 = sphi 0, %s135
      %s137 = sphi 0, %s135
      %s138 = sphi 0, %s137
      %s152 = sphi 0, %s138
      %s156 = sphi 0, %s156
      %s158 = sphi 0, %s156
      %s159 = sphi 0, %s158
      %s173 = sphi 0, %s159
      %s177 = sphi 0, %s177
      %s179 = sphi 0, %s177
      %s180 = sphi 0, %s179
      %s194 = sphi 0, %s180
      %s200 = sphi 0, %s202
      %s203 = sphi 0, %s200
      %s204 = sphi 0, %s203
      %s220 = sphi 0, %s204
    $region4: #{cnn_forward.1} parent=1 // loop_header_branch
      %20 = sbr.rel (%p18) target = $region8
    $region5: #{cnn_forward.1} parent=1 // loop_body
      %s22 = ssub.s32 %s17, 1
      %s23 = ssub.s32 %s17, 2
      %s24 = sadd.s32 %s17, 1
      %s25 = ssub.s32 %s17, %s24
      %p26 = scmp.eq.s32.totalorder %s25, 0
      %s28 = sadd.s32 %s27, 1
      %s29 = scalar_select %p26, %s27, %s28
      %p32 = pneg %p26
      %p33 = scmp.eq.s32.totalorder %s17, 1
      %p34 = por %p32, %p33
      %p35 = scmp.ne.s32.totalorder %s27, %s30
      %p36 = scmp.eq.s32.totalorder %s17, 0
      %p37 = por %p35, %p36
      %p38 = scmp.ne.s32.totalorder %s27, %s30
      %p39 = scmp.eq.s32.totalorder %s22, 1
      %p40 = por %p38, %p39
      %p41 = scmp.ne.s32.totalorder %s30, %s31
      %p42 = scmp.eq.s32.totalorder %s22, 0
      %p43 = por %p41, %p42
      %p44 = scmp.ne.s32.totalorder %s30, %s31
      %p45 = scmp.eq.s32.totalorder %s23, 1
      %p46 = por %p44, %p45
      %p48 = scmp.ne.s32.totalorder %s31, %s47
      %p49 = scmp.eq.s32.totalorder %s23, 0
      %p50 = por %p48, %p49
      %s52 = sadd.s32 %s51, 1
      %p55 = scmp.eq.s32.totalorder %s17, 1
      %p56 = scmp.ne.s32.totalorder %s51, %s53
      %p57 = scmp.eq.s32.totalorder %s17, 0
      %p58 = por %p56, %p57
      %p59 = scmp.ne.s32.totalorder %s51, %s53
      %p60 = scmp.eq.s32.totalorder %s22, 1
      %p61 = por %p59, %p60
      %p62 = scmp.ne.s32.totalorder %s53, %s54
      %p63 = scmp.eq.s32.totalorder %s22, 0
      %p64 = por %p62, %p63
      %p65 = scmp.ne.s32.totalorder %s53, %s54
      %p66 = scmp.eq.s32.totalorder %s23, 1
      %p67 = por %p65, %p66
      %p69 = scmp.ne.s32.totalorder %s54, %s68
      %p70 = scmp.eq.s32.totalorder %s23, 0
      %p71 = por %p69, %p70
      %s73 = sadd.s32 %s72, 1
      %p76 = scmp.eq.s32.totalorder %s17, 1
      %p77 = scmp.ne.s32.totalorder %s72, %s74
      %p78 = scmp.eq.s32.totalorder %s17, 0
      %p79 = por %p77, %p78
      %p80 = scmp.ne.s32.totalorder %s72, %s74
      %p81 = scmp.eq.s32.totalorder %s22, 1
      %p82 = por %p80, %p81
      %p83 = scmp.ne.s32.totalorder %s74, %s75
      %p84 = scmp.eq.s32.totalorder %s22, 0
      %p85 = por %p83, %p84
      %p86 = scmp.ne.s32.totalorder %s74, %s75
      %p87 = scmp.eq.s32.totalorder %s23, 1
      %p88 = por %p86, %p87
      %p90 = scmp.ne.s32.totalorder %s75, %s89
      %p91 = scmp.eq.s32.totalorder %s23, 0
      %p92 = por %p90, %p91
      %s94 = sadd.s32 %s93, 1
      %p97 = scmp.eq.s32.totalorder %s17, 1
      %p98 = scmp.ne.s32.totalorder %s93, %s95
      %p99 = scmp.eq.s32.totalorder %s17, 0
      %p100 = por %p98, %p99
      %p101 = scmp.ne.s32.totalorder %s93, %s95
      %p102 = scmp.eq.s32.totalorder %s22, 1
      %p103 = por %p101, %p102
      %p104 = scmp.ne.s32.totalorder %s95, %s96
      %p105 = scmp.eq.s32.totalorder %s22, 0
      %p106 = por %p104, %p105
      %p107 = scmp.ne.s32.totalorder %s95, %s96
      %p108 = scmp.eq.s32.totalorder %s23, 1
      %p109 = por %p107, %p108
      %p111 = scmp.ne.s32.totalorder %s96, %s110
      %p112 = scmp.eq.s32.totalorder %s23, 0
      %p113 = por %p111, %p112
      %s115 = sadd.s32 %s114, 1
      %p118 = scmp.eq.s32.totalorder %s17, 1
      %p119 = scmp.ne.s32.totalorder %s114, %s116
      %p120 = scmp.eq.s32.totalorder %s17, 0
      %p121 = por %p119, %p120
      %p122 = scmp.ne.s32.totalorder %s114, %s116
      %p123 = scmp.eq.s32.totalorder %s22, 1
      %p124 = por %p122, %p123
      %p125 = scmp.ne.s32.totalorder %s116, %s117
      %p126 = scmp.eq.s32.totalorder %s22, 0
      %p127 = por %p125, %p126
      %p128 = scmp.ne.s32.totalorder %s116, %s117
      %p129 = scmp.eq.s32.totalorder %s23, 1
      %p130 = por %p128, %p129
      %p132 = scmp.ne.s32.totalorder %s117, %s131
      %p133 = scmp.eq.s32.totalorder %s23, 0
      %p134 = por %p132, %p133
      %s136 = sadd.s32 %s135, 1
      %p139 = scmp.eq.s32.totalorder %s17, 1
      %p140 = scmp.ne.s32.totalorder %s135, %s137
      %p141 = scmp.eq.s32.totalorder %s17, 0
      %p142 = por %p140, %p141
      %p143 = scmp.ne.s32.totalorder %s135, %s137
      %p144 = scmp.eq.s32.totalorder %s22, 1
      %p145 = por %p143, %p144
      %p146 = scmp.ne.s32.totalorder %s137, %s138
      %p147 = scmp.eq.s32.totalorder %s22, 0
      %p148 = por %p146, %p147
      %p149 = scmp.ne.s32.totalorder %s137, %s138
      %p150 = scmp.eq.s32.totalorder %s23, 1
      %p151 = por %p149, %p150
      %p153 = scmp.ne.s32.totalorder %s138, %s152
      %p154 = scmp.eq.s32.totalorder %s23, 0
      %p155 = por %p153, %p154
      %s157 = sadd.s32 %s156, 1
      %p160 = scmp.eq.s32.totalorder %s17, 1
      %p161 = scmp.ne.s32.totalorder %s156, %s158
      %p162 = scmp.eq.s32.totalorder %s17, 0
      %p163 = por %p161, %p162
      %p164 = scmp.ne.s32.totalorder %s156, %s158
      %p165 = scmp.eq.s32.totalorder %s22, 1
      %p166 = por %p164, %p165
      %p167 = scmp.ne.s32.totalorder %s158, %s159
      %p168 = scmp.eq.s32.totalorder %s22, 0
      %p169 = por %p167, %p168
      %p170 = scmp.ne.s32.totalorder %s158, %s159
      %p171 = scmp.eq.s32.totalorder %s23, 1
      %p172 = por %p170, %p171
      %p174 = scmp.ne.s32.totalorder %s159, %s173
      %p175 = scmp.eq.s32.totalorder %s23, 0
      %p176 = por %p174, %p175
      %s178 = sadd.s32 %s177, 1
      %p181 = scmp.eq.s32.totalorder %s17, 1
      %p182 = scmp.ne.s32.totalorder %s177, %s179
      %p183 = scmp.eq.s32.totalorder %s17, 0
      %p184 = por %p182, %p183
      %p185 = scmp.ne.s32.totalorder %s177, %s179
      %p186 = scmp.eq.s32.totalorder %s22, 1
      %p187 = por %p185, %p186
      %p188 = scmp.ne.s32.totalorder %s179, %s180
      %p189 = scmp.eq.s32.totalorder %s22, 0
      %p190 = por %p188, %p189
      %p191 = scmp.ne.s32.totalorder %s179, %s180
      %p192 = scmp.eq.s32.totalorder %s23, 1
      %p193 = por %p191, %p192
      %p195 = scmp.ne.s32.totalorder %s180, %s194
      %p196 = scmp.eq.s32.totalorder %s23, 0
      %p197 = por %p195, %p196
      %s198 = ssub.s32 %s17, %s24
      %p199 = scmp.eq.s32.totalorder %s198, 0
      %s201 = sadd.s32 %s200, 1
      %s202 = scalar_select %p199, %s200, %s201
      %p205 = pneg %p199
      %p206 = scmp.eq.s32.totalorder %s17, 1
      %p207 = por %p205, %p206
      %p208 = scmp.ne.s32.totalorder %s200, %s203
      %p209 = scmp.eq.s32.totalorder %s17, 0
      %p210 = por %p208, %p209
      %p211 = scmp.ne.s32.totalorder %s200, %s203
      %p212 = scmp.eq.s32.totalorder %s22, 1
      %p213 = por %p211, %p212
      %p214 = scmp.ne.s32.totalorder %s203, %s204
      %p215 = scmp.eq.s32.totalorder %s22, 0
      %p216 = por %p214, %p215
      %p217 = scmp.ne.s32.totalorder %s203, %s204
      %p218 = scmp.eq.s32.totalorder %s23, 1
      %p219 = por %p217, %p218
      %p221 = scmp.ne.s32.totalorder %s204, %s220
      %p222 = scmp.eq.s32.totalorder %s23, 0
      %p223 = por %p221, %p222
      %p224 = scmp.le.s32.totalorder 1, %s17
      %p225 = scmp.lt.s32.totalorder %s17, 3
      %p226 = pnand %p224, %p225
      %p227 = pneg %p226
      // Predicated region
      $region9: #{cnn_forward.1} parent=5 // pred_check
        _
      $region10: #{cnn_forward.1} parent=5 // pred_check_branch
        %229 = sbr.rel (%p226) target = $region12
      $region11: #{cnn_forward.1} parent=5 // pred_region
        %s230 = ssub.s32 %s17, 1
        // Predicated region
        $region13: #{cnn_forward.1} parent=11 // pred_check
          %p231 = pneg %p64
        $region14: #{cnn_forward.1} parent=11 // pred_check_branch
          %233 = sbr.rel (%p231) target = $region16
        $region15: #{cnn_forward.1} parent=11 // pred_region
          _
        $region16: #{cnn_forward.1} parent=11 // pred_fallthru
          _
        // Predicated region
        $region17: #{cnn_forward.1} parent=11 // pred_check
          %p234 = pneg %p85
        $region18: #{cnn_forward.1} parent=11 // pred_check_branch
          %236 = sbr.rel (%p234) target = $region20
        $region19: #{cnn_forward.1} parent=11 // pred_region
          _
        $region20: #{cnn_forward.1} parent=11 // pred_fallthru
          _
        // Predicated region
        $region21: #{cnn_forward.1} parent=11 // pred_check
          %p237 = pneg %p106
        $region22: #{cnn_forward.1} parent=11 // pred_check_branch
          %239 = sbr.rel (%p237) target = $region24
        $region23: #{cnn_forward.1} parent=11 // pred_region
          _
        $region24: #{cnn_forward.1} parent=11 // pred_fallthru
          _
        // Predicated region
        $region25: #{cnn_forward.1} parent=11 // pred_check
          %p240 = pneg %p127
        $region26: #{cnn_forward.1} parent=11 // pred_check_branch
          %242 = sbr.rel (%p240) target = $region28
        $region27: #{cnn_forward.1} parent=11 // pred_region
          _
        $region28: #{cnn_forward.1} parent=11 // pred_fallthru
          _
        // Predicated region
        $region29: #{cnn_forward.1} parent=11 // pred_check
          %p243 = pneg %p148
        $region30: #{cnn_forward.1} parent=11 // pred_check_branch
          %245 = sbr.rel (%p243) target = $region32
        $region31: #{cnn_forward.1} parent=11 // pred_region
          _
        $region32: #{cnn_forward.1} parent=11 // pred_fallthru
          _
        // Predicated region
        $region33: #{cnn_forward.1} parent=11 // pred_check
          %p246 = pneg %p169
        $region34: #{cnn_forward.1} parent=11 // pred_check_branch
          %248 = sbr.rel (%p246) target = $region36
        $region35: #{cnn_forward.1} parent=11 // pred_region
          _
        $region36: #{cnn_forward.1} parent=11 // pred_fallthru
          _
        // Predicated region
        $region37: #{cnn_forward.1} parent=11 // pred_check
          %p249 = pneg %p190
        $region38: #{cnn_forward.1} parent=11 // pred_check_branch
          %251 = sbr.rel (%p249) target = $region40
        $region39: #{cnn_forward.1} parent=11 // pred_region
          _
        $region40: #{cnn_forward.1} parent=11 // pred_fallthru
          _
      $region12: #{cnn_forward.1} parent=5 // pred_fallthru
        _
      %p252 = scmp.lt.s32.totalorder %s17, 2
      // Predicated region
      $region41: #{cnn_forward.1} parent=5 // pred_check
        %p253 = pneg %p252
      $region42: #{cnn_forward.1} parent=5 // pred_check_branch
        %255 = sbr.rel (%p253) target = $region44
      $region43: #{cnn_forward.1} parent=5 // pred_region
        // Predicated region
        $region45: #{cnn_forward.1} parent=43 // pred_check
          %p256 = pneg %p37
        $region46: #{cnn_forward.1} parent=43 // pred_check_branch
          %258 = sbr.rel (%p256) target = $region48
        $region47: #{cnn_forward.1} parent=43 // pred_region
          %p259 = scmp.lt.s32.totalorder %s17, 1
          %s260 = scalar_select %p259, %s17, 1
          %s261 = smul.addr %s260, 99
          %s262 = smul.addr %s261, 4
          %s263 = scalar_lea.vmem %s0, %s262
        $region48: #{cnn_forward.1} parent=43 // pred_fallthru
          _
      $region44: #{cnn_forward.1} parent=5 // pred_fallthru
        _
      %p264 = scmp.le.s32.totalorder 1, %s17
      %p265 = scmp.lt.s32.totalorder %s17, 3
      %p266 = pnand %p264, %p265
      %p267 = pneg %p266
      // Predicated region
      $region49: #{cnn_forward.1} parent=5 // pred_check
        _
      $region50: #{cnn_forward.1} parent=5 // pred_check_branch
        %269 = sbr.rel (%p266) target = $region52
      $region51: #{cnn_forward.1} parent=5 // pred_region
        %s270 = ssub.s32 %s17, 1
        %p271 = scmp.lt.s32.totalorder %s22, 1
        %s272 = scalar_select %p271, %s22, 1
        %s273 = smul.addr %s272, 99
        %s274 = smul.addr %s273, 4
        %s275 = scalar_lea.vmem %s0, %s274
        %p276 = pneg %p43
        %p277 = pneg %p40
        %p278 = pneg %p64
        %p279 = pneg %p61
        %p280 = pneg %p85
        %p281 = pneg %p82
        %p282 = pneg %p106
        %p283 = pneg %p103
        %p284 = pneg %p127
        %p285 = pneg %p124
        %p286 = pneg %p148
        %p287 = pneg %p145
        %p288 = pneg %p169
        %p289 = pneg %p166
        %p290 = pneg %p190
        %p291 = pneg %p187
        %p292 = pneg %p216
        %p293 = pneg %p213
        %s294 = sand.u32 %s203, 1
        %s295 = scalar_lea.sflag [#allocation3], %s294
        %s296 = sand.u32 %s203, 1
        %s297 = scalar_lea.vmem [#allocation2], %s296
        %p298 = scmp.lt.s32.totalorder %s22, 1
        %s299 = scalar_select %p298, %s22, 1
        %s300 = smul.addr %s299, 99
        %s301 = smul.addr %s300, 4
        %s302 = scalar_lea.vmem %s0, %s301
        %v304 = vld [vmem:[%s302] sm:$0xf]
        %v305 = vld [vmem:[%s302 + $0x4] sm:$0xf]
        %v306 = vld [vmem:[%s302 + $0x8] sm:$0xf]
        %v307 = vld [vmem:[%s302 + $0xc] sm:$0xf]
        %v308 = vld [vmem:[%s302 + $0x10] sm:$0xf]
        %v309 = vld [vmem:[%s302 + $0x14] sm:$0xf]
        %v310 = vld [vmem:[%s302 + $0x18] sm:$0xf]
        %v311 = vld [vmem:[%s302 + $0x1c] sm:$0xf]
        %v312 = vld [vmem:[%s302 + $0x20] sm:$0xf]
        %v313 = vld [vmem:[%s302 + $0x24] sm:$0xf]
        %v314 = vld [vmem:[%s302 + $0x28] sm:$0xf]
        %v315 = vld [vmem:[%s302 + $0x2c] sm:$0xf]
        %v316 = vld [vmem:[%s302 + $0x30] sm:$0xf]
        %v317 = vld [vmem:[%s302 + $0x34] sm:$0xf]
        %v318 = vld [vmem:[%s302 + $0x38] sm:$0xf]
        %v319 = vld [vmem:[%s302 + $0x3c] sm:$0xf]
        %v320 = vld [vmem:[%s302 + $0x40] sm:$0xf]
        %v321 = vld [vmem:[%s302 + $0x44] sm:$0xf]
        %v322 = vld [vmem:[%s302 + $0x48] sm:$0xf]
        %v323 = vld [vmem:[%s302 + $0x4c] sm:$0xf]
        %v324 = vld [vmem:[%s302 + $0x50] sm:$0xf]
        %v325 = vld [vmem:[%s302 + $0x54] sm:$0xf]
        %v326 = vld [vmem:[%s302 + $0x58] sm:$0xf]
        %v327 = vld [vmem:[%s302 + $0x5c] sm:$0xf]
        %v328 = vld [vmem:[%s302 + $0x60] sm:$0xf]
        %v329 = vld [vmem:[%s302 + $0x64] sm:$0xf]
        %v330 = vld [vmem:[%s302 + $0x68] sm:$0xf]
        %v331 = vld [vmem:[%s302 + $0x6c] sm:$0xf]
        %v332 = vld [vmem:[%s302 + $0x70] sm:$0xf]
        %v333 = vld [vmem:[%s302 + $0x74] sm:$0xf]
        %v334 = vld [vmem:[%s302 + $0x78] sm:$0xf]
        %v335 = vld [vmem:[%s302 + $0x7c] sm:$0xf]
        %v336 = vld [vmem:[%s302 + $0x80] sm:$0xf]
        %v337 = vld [vmem:[%s302 + $0x84] sm:$0xf]
        %v338 = vld [vmem:[%s302 + $0x88] sm:$0xf]
        %v339 = vld [vmem:[%s302 + $0x8c] sm:$0xf]
        %v340 = vld [vmem:[%s302 + $0x90] sm:$0xf]
        %v341 = vld [vmem:[%s302 + $0x94] sm:$0xf]
        %v342 = vld [vmem:[%s302 + $0x98] sm:$0xf]
        %v343 = vld [vmem:[%s302 + $0x9c] sm:$0xf]
        %v344 = vld [vmem:[%s302 + $0xa0] sm:$0xf]
        %v345 = vld [vmem:[%s302 + $0xa4] sm:$0xf]
        %v346 = vld [vmem:[%s302 + $0xa8] sm:$0xf]
        %v347 = vld [vmem:[%s302 + $0xac] sm:$0xf]
        %v348 = vld [vmem:[%s302 + $0xb0] sm:$0xf]
        %v349 = vld [vmem:[%s302 + $0xb4] sm:$0xf]
        %v350 = vld [vmem:[%s302 + $0xb8] sm:$0xf]
        %v351 = vld [vmem:[%s302 + $0xbc] sm:$0xf]
        %v352 = vld [vmem:[%s302 + $0xc0] sm:$0xf]
        %v353 = vld [vmem:[%s302 + $0xc4] sm:$0xf]
        %v354 = vld [vmem:[%s302 + $0xc8] sm:$0xf]
        %v355 = vld [vmem:[%s302 + $0xcc] sm:$0xf]
        %v356 = vld [vmem:[%s302 + $0xd0] sm:$0xf]
        %v357 = vld [vmem:[%s302 + $0xd4] sm:$0xf]
        %v358 = vld [vmem:[%s302 + $0xd8] sm:$0xf]
        %v359 = vld [vmem:[%s302 + $0xdc] sm:$0xf]
        %v360 = vld [vmem:[%s302 + $0xe0] sm:$0xf]
        %v361 = vld [vmem:[%s302 + $0xe4] sm:$0xf]
        %v362 = vld [vmem:[%s302 + $0xe8] sm:$0xf]
        %v363 = vld [vmem:[%s302 + $0xec] sm:$0xf]
        %v364 = vld [vmem:[%s302 + $0xf0] sm:$0xf]
        %v365 = vld [vmem:[%s302 + $0xf4] sm:$0xf]
        %v366 = vld [vmem:[%s302 + $0xf8] sm:$0xf]
        %v367 = vld [vmem:[%s302 + $0xfc] sm:$0xf]
        %v368 = vld [vmem:[%s302 + $0x100] sm:$0xf]
        %v369 = vld [vmem:[%s302 + $0x104] sm:$0xf]
        %v370 = vld [vmem:[%s302 + $0x108] sm:$0xf]
        %v371 = vld [vmem:[%s302 + $0x10c] sm:$0xf]
        %v372 = vld [vmem:[%s302 + $0x110] sm:$0xf]
        %v373 = vld [vmem:[%s302 + $0x114] sm:$0xf]
        %v374 = vld [vmem:[%s302 + $0x118] sm:$0xf]
        %v375 = vld [vmem:[%s302 + $0x11c] sm:$0xf]
        %v376 = vld [vmem:[%s302 + $0x120] sm:$0xf]
        %v377 = vld [vmem:[%s302 + $0x124] sm:$0xf]
        %v378 = vld [vmem:[%s302 + $0x128] sm:$0xf]
        %v379 = vld [vmem:[%s302 + $0x12c] sm:$0xf]
        %v380 = vld [vmem:[%s302 + $0x130] sm:$0xf]
        %v381 = vld [vmem:[%s302 + $0x134] sm:$0xf]
        %v382 = vld [vmem:[%s302 + $0x138] sm:$0xf]
        %v383 = vld [vmem:[%s302 + $0x13c] sm:$0xf]
        %v384 = vld [vmem:[%s302 + $0x140] sm:$0xf]
        %v385 = vld [vmem:[%s302 + $0x144] sm:$0xf]
        %v386 = vld [vmem:[%s302 + $0x148] sm:$0xf]
        %v387 = vld [vmem:[%s302 + $0x14c] sm:$0xf]
        %v388 = vld [vmem:[%s302 + $0x150] sm:$0xf]
        %v389 = vld [vmem:[%s302 + $0x154] sm:$0xf]
        %v390 = vld [vmem:[%s302 + $0x158] sm:$0xf]
        %v391 = vld [vmem:[%s302 + $0x15c] sm:$0xf]
        %v392 = vld [vmem:[%s302 + $0x160] sm:$0xf]
        %v393 = vld [vmem:[%s302 + $0x164] sm:$0xf]
        %v394 = vld [vmem:[%s302 + $0x168] sm:$0xf]
        %v395 = vld [vmem:[%s302 + $0x16c] sm:$0xf]
        %v396 = vld [vmem:[%s302 + $0x170] sm:$0xf]
        %v397 = vld [vmem:[%s302 + $0x174] sm:$0xf]
        %v398 = vld [vmem:[%s302 + $0x178] sm:$0xf]
        %v399 = vld [vmem:[%s302 + $0x17c] sm:$0xf]
        %v400 = vld [vmem:[%s302 + $0x180] sm:$0xf]
        %v401 = vld [vmem:[%s302 + $0x184] sm:$0xf]
        %v402 = vld [vmem:[%s302 + $0x188] sm:$0xf]
        %v403 = vld [vmem:[%s2] sm:$0xf]
        %v404 = vld [vmem:[%s2 + $0x4] sm:$0x1]
        %v405 = vld [vmem:[%s3] sm:$0x1]
        %v407 = vlaneseq
        %v408 = vshrl.u32 %v407, 7
        %v409 = vsub.s32 0, %v408
        %v410 = vrot.slane %v405, %v409
        %v511 = vunpack.c.l.b16 %v304
        %v512 = vunpack.c.l.b16 %v305
        %v513 = vunpack.c.l.b16 %v306
        %v514 = vunpack.c.l.b16 %v307
        %v515 = vunpack.c.l.b16 %v308
        %v516 = vunpack.c.l.b16 %v309
        %v517 = vunpack.c.l.b16 %v310
        %v518 = vunpack.c.l.b16 %v311
        %v519 = vunpack.c.l.b16 %v312
        %v520 = vunpack.c.l.b16 %v313
        %v521 = vunpack.c.l.b16 %v314
        %v522 = vunpack.c.l.b16 %v315
        %v523 = vunpack.c.l.b16 %v316
        %v524 = vunpack.c.l.b16 %v317
        %v525 = vunpack.c.l.b16 %v318
        %v526 = vunpack.c.l.b16 %v319
        %v527 = vunpack.c.l.b16 %v320
        %v528 = vunpack.c.l.b16 %v321
        %v529 = vunpack.c.l.b16 %v322
        %v530 = vunpack.c.l.b16 %v323
        %v531 = vunpack.c.l.b16 %v324
        %v532 = vunpack.c.l.b16 %v325
        %v533 = vunpack.c.l.b16 %v326
        %v534 = vunpack.c.l.b16 %v327
        %v535 = vunpack.c.l.b16 %v328
        %v536 = vunpack.c.l.b16 %v329
        %v537 = vunpack.c.l.b16 %v330
        %v538 = vunpack.c.l.b16 %v331
        %v539 = vunpack.c.l.b16 %v332
        %v540 = vunpack.c.l.b16 %v333
        %v541 = vunpack.c.l.b16 %v334
        %v542 = vunpack.c.l.b16 %v335
        %v543 = vunpack.c.l.b16 %v336
        %v544 = vunpack.c.l.b16 %v337
        %v545 = vunpack.c.l.b16 %v338
        %v546 = vunpack.c.l.b16 %v339
        %v547 = vunpack.c.l.b16 %v340
        %v548 = vunpack.c.l.b16 %v341
        %v549 = vunpack.c.l.b16 %v342
        %v550 = vunpack.c.l.b16 %v343
        %v551 = vunpack.c.l.b16 %v344
        %v552 = vunpack.c.l.b16 %v345
        %v553 = vunpack.c.l.b16 %v346
        %v554 = vunpack.c.l.b16 %v347
        %v555 = vunpack.c.l.b16 %v348
        %v556 = vunpack.c.l.b16 %v349
        %v557 = vunpack.c.l.b16 %v350
        %v558 = vunpack.c.l.b16 %v351
        %v559 = vunpack.c.l.b16 %v352
        %v560 = vunpack.c.l.b16 %v353
        %v561 = vunpack.c.l.b16 %v354
        %v562 = vunpack.c.l.b16 %v355
        %v563 = vunpack.c.l.b16 %v356
        %v564 = vunpack.c.l.b16 %v357
        %v565 = vunpack.c.l.b16 %v358
        %v566 = vunpack.c.l.b16 %v359
        %v567 = vunpack.c.l.b16 %v360
        %v568 = vunpack.c.l.b16 %v361
        %v569 = vunpack.c.l.b16 %v362
        %v570 = vunpack.c.l.b16 %v363
        %v571 = vunpack.c.l.b16 %v364
        %v572 = vunpack.c.l.b16 %v365
        %v573 = vunpack.c.l.b16 %v366
        %v574 = vunpack.c.l.b16 %v367
        %v575 = vunpack.c.l.b16 %v368
        %v576 = vunpack.c.l.b16 %v369
        %v577 = vunpack.c.l.b16 %v370
        %v578 = vunpack.c.l.b16 %v371
        %v579 = vunpack.c.l.b16 %v372
        %v580 = vunpack.c.l.b16 %v373
        %v581 = vunpack.c.l.b16 %v374
        %v582 = vunpack.c.l.b16 %v375
        %v583 = vunpack.c.l.b16 %v376
        %v584 = vunpack.c.l.b16 %v377
        %v585 = vunpack.c.l.b16 %v378
        %v586 = vunpack.c.l.b16 %v379
        %v587 = vunpack.c.l.b16 %v380
        %v588 = vunpack.c.l.b16 %v381
        %v589 = vunpack.c.l.b16 %v382
        %v590 = vunpack.c.l.b16 %v383
        %v591 = vunpack.c.l.b16 %v384
        %v592 = vunpack.c.l.b16 %v385
        %v593 = vunpack.c.l.b16 %v386
        %v594 = vunpack.c.l.b16 %v387
        %v595 = vunpack.c.l.b16 %v388
        %v596 = vunpack.c.l.b16 %v389
        %v597 = vunpack.c.l.b16 %v390
        %v598 = vunpack.c.l.b16 %v391
        %v599 = vunpack.c.l.b16 %v392
        %v600 = vunpack.c.l.b16 %v393
        %v601 = vunpack.c.l.b16 %v394
        %v602 = vunpack.c.l.b16 %v395
        %v603 = vunpack.c.l.b16 %v396
        %v604 = vunpack.c.l.b16 %v397
        %v605 = vunpack.c.l.b16 %v398
        %v606 = vunpack.c.l.b16 %v399
        %v607 = vunpack.c.l.b16 %v400
        %v608 = vunpack.c.l.b16 %v401
        %v609 = vunpack.c.l.b16 %v402
        %v610 = vpack.c.b16 %v512, %v511
        %v611 = vpack.c.b16 %v514, %v513
        %v612 = vpack.c.b16 %v516, %v515
        %v613 = vpack.c.b16 %v518, %v517
        %v614 = vpack.c.b16 %v520, %v519
        %v615 = vpack.c.b16 %v522, %v521
        %v616 = vpack.c.b16 %v524, %v523
        %v617 = vpack.c.b16 %v526, %v525
        %v618 = vpack.c.b16 %v528, %v527
        %v619 = vpack.c.b16 %v530, %v529
        %v620 = vpack.c.b16 %v532, %v531
        %v621 = vpack.c.b16 %v534, %v533
        %v622 = vpack.c.b16 %v536, %v535
        %v623 = vpack.c.b16 %v538, %v537
        %v624 = vpack.c.b16 %v540, %v539
        %v625 = vpack.c.b16 %v542, %v541
        %v626 = vpack.c.b16 %v544, %v543
        %v627 = vpack.c.b16 %v546, %v545
        %v628 = vpack.c.b16 %v548, %v547
        %v629 = vpack.c.b16 %v550, %v549
        %v630 = vpack.c.b16 %v552, %v551
        %v631 = vpack.c.b16 %v554, %v553
        %v632 = vpack.c.b16 %v556, %v555
        %v633 = vpack.c.b16 %v558, %v557
        %v634 = vpack.c.b16 %v560, %v559
        %v635 = vpack.c.b16 %v562, %v561
        %v636 = vpack.c.b16 %v564, %v563
        %v637 = vpack.c.b16 %v566, %v565
        %v638 = vpack.c.b16 %v568, %v567
        %v639 = vpack.c.b16 %v570, %v569
        %v640 = vpack.c.b16 %v572, %v571
        %v641 = vpack.c.b16 %v574, %v573
        %v642 = vpack.c.b16 %v576, %v575
        %v643 = vpack.c.b16 %v578, %v577
        %v644 = vpack.c.b16 %v580, %v579
        %v645 = vpack.c.b16 %v582, %v581
        %v646 = vpack.c.b16 %v584, %v583
        %v647 = vpack.c.b16 %v586, %v585
        %v648 = vpack.c.b16 %v588, %v587
        %v649 = vpack.c.b16 %v590, %v589
        %v650 = vpack.c.b16 %v592, %v591
        %v651 = vpack.c.b16 %v594, %v593
        %v652 = vpack.c.b16 %v596, %v595
        %v653 = vpack.c.b16 %v598, %v597
        %v654 = vpack.c.b16 %v600, %v599
        %v655 = vpack.c.b16 %v602, %v601
        %v656 = vpack.c.b16 %v604, %v603
        %v657 = vpack.c.b16 %v606, %v605
        %v658 = vpack.c.b16 %v608, %v607
        %v659 = vpack.c.b16 %v609, %v609
        %v662 = vunpack.c.l.b16 %v403
        %v663 = vunpack.c.l.b16 %v404
        %v664 = vpack.c.b16 %v663, %v662
        %vm665 = vcmask 72704
        %v667 = vsel %vm665, %v610, 0
        %v670 = vsel %vm665, %v611, 0
        %v673 = vsel %vm665, %v612, 0
        %v676 = vsel %vm665, %v613, 0
        %v679 = vsel %vm665, %v614, 0
        %v682 = vsel %vm665, %v615, 0
        %v685 = vsel %vm665, %v616, 0
        %v688 = vsel %vm665, %v617, 0
        %v691 = vsel %vm665, %v618, 0
        %v694 = vsel %vm665, %v619, 0
        %v697 = vsel %vm665, %v620, 0
        %v700 = vsel %vm665, %v621, 0
        %v703 = vsel %vm665, %v622, 0
        %v706 = vsel %vm665, %v623, 0
        %v709 = vsel %vm665, %v624, 0
        %v712 = vsel %vm665, %v625, 0
        %v715 = vsel %vm665, %v626, 0
        %v718 = vsel %vm665, %v627, 0
        %v721 = vsel %vm665, %v628, 0
        %v724 = vsel %vm665, %v629, 0
        %v727 = vsel %vm665, %v630, 0
        %v730 = vsel %vm665, %v631, 0
        %v733 = vsel %vm665, %v632, 0
        %v736 = vsel %vm665, %v633, 0
        %v739 = vsel %vm665, %v634, 0
        %v742 = vsel %vm665, %v635, 0
        %v745 = vsel %vm665, %v636, 0
        %v748 = vsel %vm665, %v637, 0
        %v751 = vsel %vm665, %v638, 0
        %v754 = vsel %vm665, %v639, 0
        %v757 = vsel %vm665, %v640, 0
        %v760 = vsel %vm665, %v641, 0
        %v763 = vsel %vm665, %v642, 0
        %v766 = vsel %vm665, %v643, 0
        %v769 = vsel %vm665, %v644, 0
        %v772 = vsel %vm665, %v645, 0
        %v775 = vsel %vm665, %v646, 0
        %v778 = vsel %vm665, %v647, 0
        %v781 = vsel %vm665, %v648, 0
        %v784 = vsel %vm665, %v649, 0
        %v787 = vsel %vm665, %v650, 0
        %v790 = vsel %vm665, %v651, 0
        %v793 = vsel %vm665, %v652, 0
        %v796 = vsel %vm665, %v653, 0
        %v799 = vsel %vm665, %v654, 0
        %v802 = vsel %vm665, %v655, 0
        %v805 = vsel %vm665, %v656, 0
        %v808 = vsel %vm665, %v657, 0
        %v811 = vsel %vm665, %v658, 0
        %v814 = vsel %vm665, %v659, 0
        %vm816 = vcmask 1043456
        %vm817 = vcmask 1044480
        %v818 = vsel %vm816, 4294967295, 65535
        %v819 = vsel %vm817, %v818, 0
        %v821 = vand.u32 %v664, %v819
        %823 = vmatprep.subr.bf16.mxu0 0
        %824 = vmatpush1.bf16.msra.mxu0 %v821
        %825 = vmatprep.subr.bf16.mxu0 0
        %826 = vmatpush1.bf16.msra.mxu0 0
        %827 = vmatprep.subr.bf16.mxu0 0
        %828 = vmatpush1.bf16.msra.mxu0 0
        %829 = vmatprep.subr.bf16.mxu0 0
        %830 = vmatpush1.bf16.msra.mxu0 0
        %831 = vmatprep.subr.bf16.mxu0 0
        %832 = vmatpush1.bf16.msra.mxu0 0
        %833 = vmatprep.subr.bf16.mxu0 0
        %834 = vmatpush1.bf16.msra.mxu0 0
        %835 = vmatprep.subr.bf16.mxu0 0
        %836 = vmatpush1.bf16.msra.mxu0 0
        %837 = vmatprep.subr.bf16.mxu0 0
        %838 = vmatpush1.bf16.msra.mxu0 0
        %839 = vmatprep.subr.bf16.mxu0 0
        %840 = vmatpush1.bf16.msra.mxu0 0
        %841 = vmatprep.subr.bf16.mxu0 0
        %842 = vmatpush1.bf16.msra.mxu0 0
        %843 = vmatprep.subr.bf16.mxu0 0
        %844 = vmatpush1.bf16.msra.mxu0 0
        %845 = vmatprep.subr.bf16.mxu0 0
        %846 = vmatpush1.bf16.msra.mxu0 0
        %847 = vmatprep.subr.bf16.mxu0 0
        %848 = vmatpush1.bf16.msra.mxu0 0
        %849 = vmatprep.subr.bf16.mxu0 0
        %850 = vmatpush1.bf16.msra.mxu0 0
        %851 = vmatprep.subr.bf16.mxu0 0
        %852 = vmatpush1.bf16.msra.mxu0 0
        %853 = vmatprep.subr.bf16.mxu0 0
        %854 = vmatpush1.bf16.msra.mxu0 0
        %855 = vmatprep.mubr.bf16.mxu0 0
        %856 = vmatmul.mubr.bf16.gmra.mrb[0].mxu0 %v667
        %v857 = vpop.f32.mrb[0].mxu0
        %v858 = vadd.f32 %v410, %v857
        %v859 = vpop.f32.mrb[0].mxu0
        %v860 = vpop.f32.mrb[0].mxu0
        %v861 = vadd.f32 %v410, %v860
        %v862 = vpop.f32.mrb[0].mxu0
        %863 = vmatprep.mubr.bf16.mxu0 0
        %864 = vmatmul.mubr.bf16.gmra.mrb[0].mxu0 %v670
        %v865 = vpop.f32.mrb[0].mxu0
        %v866 = vadd.f32 %v410, %v865
        %v867 = vpop.f32.mrb[0].mxu0
        %v868 = vpop.f32.mrb[0].mxu0
        %v869 = vadd.f32 %v410, %v868
        %v870 = vpop.f32.mrb[0].mxu0
        %871 = vmatprep.mubr.bf16.mxu0 0
        %872 = vmatmul.mubr.bf16.gmra.mrb[0].mxu0 %v673
        %v873 = vpop.f32.mrb[0].mxu0
        %v874 = vadd.f32 %v410, %v873
        %v875 = vpop.f32.mrb[0].mxu0
        %v876 = vpop.f32.mrb[0].mxu0
        %v877 = vadd.f32 %v410, %v876
        %v878 = vpop.f32.mrb[0].mxu0
        %879 = vmatprep.mubr.bf16.mxu0 0
        %880 = vmatmul.mubr.bf16.gmra.mrb[0].mxu0 %v676
        %v881 = vpop.f32.mrb[0].mxu0
        %v882 = vadd.f32 %v410, %v881
        %v883 = vpop.f32.mrb[0].mxu0
        %v884 = vpop.f32.mrb[0].mxu0
        %v885 = vadd.f32 %v410, %v884
        %v886 = vpop.f32.mrb[0].mxu0
        %887 = vmatprep.mubr.bf16.mxu0 0
        %888 = vmatmul.mubr.bf16.gmra.mrb[0].mxu0 %v679
        %v889 = vpop.f32.mrb[0].mxu0
        %v890 = vadd.f32 %v410, %v889
        %v891 = vpop.f32.mrb[0].mxu0
        %v892 = vpop.f32.mrb[0].mxu0
        %v893 = vadd.f32 %v410, %v892
        %v894 = vpop.f32.mrb[0].mxu0
        %895 = vmatprep.mubr.bf16.mxu0 0
        %896 = vmatmul.mubr.bf16.gmra.mrb[0].mxu0 %v682
        %v897 = vpop.f32.mrb[0].mxu0
        %v898 = vadd.f32 %v410, %v897
        %v899 = vpop.f32.mrb[0].mxu0
        %v900 = vpop.f32.mrb[0].mxu0
        %v901 = vadd.f32 %v410, %v900
        %v902 = vpop.f32.mrb[0].mxu0
        %903 = vmatprep.mubr.bf16.mxu0 0
        %904 = vmatmul.mubr.bf16.gmra.mrb[0].mxu0 %v685
        %v905 = vpop.f32.mrb[0].mxu0
        %v906 = vadd.f32 %v410, %v905
        %v907 = vpop.f32.mrb[0].mxu0
        %v908 = vpop.f32.mrb[0].mxu0
        %v909 = vadd.f32 %v410, %v908
        %v910 = vpop.f32.mrb[0].mxu0
        %911 = vmatprep.mubr.bf16.mxu0 0
        %912 = vmatmul.mubr.bf16.gmra.mrb[0].mxu0 %v688
        %v913 = vpop.f32.mrb[0].mxu0
        %v914 = vadd.f32 %v410, %v913
        %v915 = vpop.f32.mrb[0].mxu0
        %v916 = vpop.f32.mrb[0].mxu0
        %v917 = vadd.f32 %v410, %v916
        %v918 = vpop.f32.mrb[0].mxu0
        %919 = vmatprep.mubr.bf16.mxu0 0
        %920 = vmatmul.mubr.bf16.gmra.mrb[0].mxu0 %v691
        %v921 = vpop.f32.mrb[0].mxu0
        %v922 = vadd.f32 %v410, %v921
        %v923 = vpop.f32.mrb[0].mxu0
        %v924 = vpop.f32.mrb[0].mxu0
        %v925 = vadd.f32 %v410, %v924
        %v926 = vpop.f32.mrb[0].mxu0
        %927 = vmatprep.mubr.bf16.mxu0 0
        %928 = vmatmul.mubr.bf16.gmra.mrb[0].mxu0 %v694
        %v929 = vpop.f32.mrb[0].mxu0
        %v930 = vadd.f32 %v410, %v929
        %v931 = vpop.f32.mrb[0].mxu0
        %v932 = vpop.f32.mrb[0].mxu0
        %v933 = vadd.f32 %v410, %v932
        %v934 = vpop.f32.mrb[0].mxu0
        %935 = vmatprep.mubr.bf16.mxu0 0
        %936 = vmatmul.mubr.bf16.gmra.mrb[0].mxu0 %v697
        %v937 = vpop.f32.mrb[0].mxu0
        %v938 = vadd.f32 %v410, %v937
        %v939 = vpop.f32.mrb[0].mxu0
        %v940 = vpop.f32.mrb[0].mxu0
        %v941 = vadd.f32 %v410, %v940
        %v942 = vpop.f32.mrb[0].mxu0
        %943 = vmatprep.mubr.bf16.mxu0 0
        %944 = vmatmul.mubr.bf16.gmra.mrb[0].mxu0 %v700
        %v945 = vpop.f32.mrb[0].mxu0
        %v946 = vadd.f32 %v410, %v945
        %v947 = vpop.f32.mrb[0].mxu0
        %v948 = vpop.f32.mrb[0].mxu0
        %v949 = vadd.f32 %v410, %v948
        %v950 = vpop.f32.mrb[0].mxu0
        %951 = vmatprep.mubr.bf16.mxu0 0
        %952 = vmatmul.mubr.bf16.gmra.mrb[0].mxu0 %v703
        %v953 = vpop.f32.mrb[0].mxu0
        %v954 = vadd.f32 %v410, %v953
        %v955 = vpop.f32.mrb[0].mxu0
        %v956 = vpop.f32.mrb[0].mxu0
        %v957 = vadd.f32 %v410, %v956
        %v958 = vpop.f32.mrb[0].mxu0
        %959 = vmatprep.mubr.bf16.mxu0 0
        %960 = vmatmul.mubr.bf16.gmra.mrb[0].mxu0 %v706
        %v961 = vpop.f32.mrb[0].mxu0
        %v962 = vadd.f32 %v410, %v961
        %v963 = vpop.f32.mrb[0].mxu0
        %v964 = vpop.f32.mrb[0].mxu0
        %v965 = vadd.f32 %v410, %v964
        %v966 = vpop.f32.mrb[0].mxu0
        %967 = vmatprep.mubr.bf16.mxu0 0
        %968 = vmatmul.mubr.bf16.gmra.mrb[0].mxu0 %v709
        %v969 = vpop.f32.mrb[0].mxu0
        %v970 = vadd.f32 %v410, %v969
        %v971 = vpop.f32.mrb[0].mxu0
        %v972 = vpop.f32.mrb[0].mxu0
        %v973 = vadd.f32 %v410, %v972
        %v974 = vpop.f32.mrb[0].mxu0
        %975 = vmatprep.mubr.bf16.mxu0 0
        %976 = vmatmul.mubr.bf16.gmra.mrb[0].mxu0 %v712
        %v977 = vpop.f32.mrb[0].mxu0
        %v978 = vadd.f32 %v410, %v977
        %v979 = vpop.f32.mrb[0].mxu0
        %v980 = vpop.f32.mrb[0].mxu0
        %v981 = vadd.f32 %v410, %v980
        %v982 = vpop.f32.mrb[0].mxu0
        %983 = vmatprep.mubr.bf16.mxu0 0
        %984 = vmatmul.mubr.bf16.gmra.mrb[0].mxu0 %v715
        %v985 = vpop.f32.mrb[0].mxu0
        %v986 = vadd.f32 %v410, %v985
        %v987 = vpop.f32.mrb[0].mxu0
        %v988 = vpop.f32.mrb[0].mxu0
        %v989 = vadd.f32 %v410, %v988
        %v990 = vpop.f32.mrb[0].mxu0
        %991 = vmatprep.mubr.bf16.mxu0 0
        %992 = vmatmul.mubr.bf16.gmra.mrb[0].mxu0 %v718
        %v993 = vpop.f32.mrb[0].mxu0
        %v994 = vadd.f32 %v410, %v993
        %v995 = vpop.f32.mrb[0].mxu0
        %v996 = vpop.f32.mrb[0].mxu0
        %v997 = vadd.f32 %v410, %v996
        %v998 = vpop.f32.mrb[0].mxu0
        %999 = vmatprep.mubr.bf16.mxu0 0
        %1000 = vmatmul.mubr.bf16.gmra.mrb[0].mxu0 %v721
        %v1001 = vpop.f32.mrb[0].mxu0
        %v1002 = vadd.f32 %v410, %v1001
        %v1003 = vpop.f32.mrb[0].mxu0
        %v1004 = vpop.f32.mrb[0].mxu0
        %v1005 = vadd.f32 %v410, %v1004
        %v1006 = vpop.f32.mrb[0].mxu0
        %1007 = vmatprep.mubr.bf16.mxu0 0
        %1008 = vmatmul.mubr.bf16.gmra.mrb[0].mxu0 %v724
        %v1009 = vpop.f32.mrb[0].mxu0
        %v1010 = vadd.f32 %v410, %v1009
        %v1011 = vpop.f32.mrb[0].mxu0
        %v1012 = vpop.f32.mrb[0].mxu0
        %v1013 = vadd.f32 %v410, %v1012
        %v1014 = vpop.f32.mrb[0].mxu0
        %1015 = vmatprep.mubr.bf16.mxu0 0
        %1016 = vmatmul.mubr.bf16.gmra.mrb[0].mxu0 %v727
        %v1017 = vpop.f32.mrb[0].mxu0
        %v1018 = vadd.f32 %v410, %v1017
        %v1019 = vpop.f32.mrb[0].mxu0
        %v1020 = vpop.f32.mrb[0].mxu0
        %v1021 = vadd.f32 %v410, %v1020
        %v1022 = vpop.f32.mrb[0].mxu0
        %1023 = vmatprep.mubr.bf16.mxu0 0
        %1024 = vmatmul.mubr.bf16.gmra.mrb[0].mxu0 %v730
        %v1025 = vpop.f32.mrb[0].mxu0
        %v1026 = vadd.f32 %v410, %v1025
        %v1027 = vpop.f32.mrb[0].mxu0
        %v1028 = vpop.f32.mrb[0].mxu0
        %v1029 = vadd.f32 %v410, %v1028
        %v1030 = vpop.f32.mrb[0].mxu0
        %1031 = vmatprep.mubr.bf16.mxu0 0
        %1032 = vmatmul.mubr.bf16.gmra.mrb[0].mxu0 %v733
        %v1033 = vpop.f32.mrb[0].mxu0
        %v1034 = vadd.f32 %v410, %v1033
        %v1035 = vpop.f32.mrb[0].mxu0
        %v1036 = vpop.f32.mrb[0].mxu0
        %v1037 = vadd.f32 %v410, %v1036
        %v1038 = vpop.f32.mrb[0].mxu0
        %1039 = vmatprep.mubr.bf16.mxu0 0
        %1040 = vmatmul.mubr.bf16.gmra.mrb[0].mxu0 %v736
        %v1041 = vpop.f32.mrb[0].mxu0
        %v1042 = vadd.f32 %v410, %v1041
        %v1043 = vpop.f32.mrb[0].mxu0
        %v1044 = vpop.f32.mrb[0].mxu0
        %v1045 = vadd.f32 %v410, %v1044
        %v1046 = vpop.f32.mrb[0].mxu0
        %1047 = vmatprep.mubr.bf16.mxu0 0
        %1048 = vmatmul.mubr.bf16.gmra.mrb[0].mxu0 %v739
        %v1049 = vpop.f32.mrb[0].mxu0
        %v1050 = vadd.f32 %v410, %v1049
        %v1051 = vpop.f32.mrb[0].mxu0
        %v1052 = vpop.f32.mrb[0].mxu0
        %v1053 = vadd.f32 %v410, %v1052
        %v1054 = vpop.f32.mrb[0].mxu0
        %1055 = vmatprep.mubr.bf16.mxu0 0
        %1056 = vmatmul.mubr.bf16.gmra.mrb[0].mxu0 %v742
        %v1057 = vpop.f32.mrb[0].mxu0
        %v1058 = vadd.f32 %v410, %v1057
        %v1059 = vpop.f32.mrb[0].mxu0
        %v1060 = vpop.f32.mrb[0].mxu0
        %v1061 = vadd.f32 %v410, %v1060
        %v1062 = vpop.f32.mrb[0].mxu0
        %1063 = vmatprep.mubr.bf16.mxu0 0
        %1064 = vmatmul.mubr.bf16.gmra.mrb[0].mxu0 %v745
        %v1065 = vpop.f32.mrb[0].mxu0
        %v1066 = vadd.f32 %v410, %v1065
        %v1067 = vpop.f32.mrb[0].mxu0
        %v1068 = vpop.f32.mrb[0].mxu0
        %v1069 = vadd.f32 %v410, %v1068
        %v1070 = vpop.f32.mrb[0].mxu0
        %1071 = vmatprep.mubr.bf16.mxu0 0
        %1072 = vmatmul.mubr.bf16.gmra.mrb[0].mxu0 %v748
        %v1073 = vpop.f32.mrb[0].mxu0
        %v1074 = vadd.f32 %v410, %v1073
        %v1075 = vpop.f32.mrb[0].mxu0
        %v1076 = vpop.f32.mrb[0].mxu0
        %v1077 = vadd.f32 %v410, %v1076
        %v1078 = vpop.f32.mrb[0].mxu0
        %1079 = vmatprep.mubr.bf16.mxu0 0
        %1080 = vmatmul.mubr.bf16.gmra.mrb[0].mxu0 %v751
        %v1081 = vpop.f32.mrb[0].mxu0
        %v1082 = vadd.f32 %v410, %v1081
        %v1083 = vpop.f32.mrb[0].mxu0
        %v1084 = vpop.f32.mrb[0].mxu0
        %v1085 = vadd.f32 %v410, %v1084
        %v1086 = vpop.f32.mrb[0].mxu0
        %1087 = vmatprep.mubr.bf16.mxu0 0
        %1088 = vmatmul.mubr.bf16.gmra.mrb[0].mxu0 %v754
        %v1089 = vpop.f32.mrb[0].mxu0
        %v1090 = vadd.f32 %v410, %v1089
        %v1091 = vpop.f32.mrb[0].mxu0
        %v1092 = vpop.f32.mrb[0].mxu0
        %v1093 = vadd.f32 %v410, %v1092
        %v1094 = vpop.f32.mrb[0].mxu0
        %1095 = vmatprep.mubr.bf16.mxu0 0
        %1096 = vmatmul.mubr.bf16.gmra.mrb[0].mxu0 %v757
        %v1097 = vpop.f32.mrb[0].mxu0
        %v1098 = vadd.f32 %v410, %v1097
        %v1099 = vpop.f32.mrb[0].mxu0
        %v1100 = vpop.f32.mrb[0].mxu0
        %v1101 = vadd.f32 %v410, %v1100
        %v1102 = vpop.f32.mrb[0].mxu0
        %1103 = vmatprep.mubr.bf16.mxu0 0
        %1104 = vmatmul.mubr.bf16.gmra.mrb[0].mxu0 %v760
        %v1105 = vpop.f32.mrb[0].mxu0
        %v1106 = vadd.f32 %v410, %v1105
        %v1107 = vpop.f32.mrb[0].mxu0
        %v1108 = vpop.f32.mrb[0].mxu0
        %v1109 = vadd.f32 %v410, %v1108
        %v1110 = vpop.f32.mrb[0].mxu0
        %1111 = vmatprep.mubr.bf16.mxu0 0
        %1112 = vmatmul.mubr.bf16.gmra.mrb[0].mxu0 %v763
        %v1113 = vpop.f32.mrb[0].mxu0
        %v1114 = vadd.f32 %v410, %v1113
        %v1115 = vpop.f32.mrb[0].mxu0
        %v1116 = vpop.f32.mrb[0].mxu0
        %v1117 = vadd.f32 %v410, %v1116
        %v1118 = vpop.f32.mrb[0].mxu0
        %1119 = vmatprep.mubr.bf16.mxu0 0
        %1120 = vmatmul.mubr.bf16.gmra.mrb[0].mxu0 %v766
        %v1121 = vpop.f32.mrb[0].mxu0
        %v1122 = vadd.f32 %v410, %v1121
        %v1123 = vpop.f32.mrb[0].mxu0
        %v1124 = vpop.f32.mrb[0].mxu0
        %v1125 = vadd.f32 %v410, %v1124
        %v1126 = vpop.f32.mrb[0].mxu0
        %1127 = vmatprep.mubr.bf16.mxu0 0
        %1128 = vmatmul.mubr.bf16.gmra.mrb[0].mxu0 %v769
        %v1129 = vpop.f32.mrb[0].mxu0
        %v1130 = vadd.f32 %v410, %v1129
        %v1131 = vpop.f32.mrb[0].mxu0
        %v1132 = vpop.f32.mrb[0].mxu0
        %v1133 = vadd.f32 %v410, %v1132
        %v1134 = vpop.f32.mrb[0].mxu0
        %1135 = vmatprep.mubr.bf16.mxu0 0
        %1136 = vmatmul.mubr.bf16.gmra.mrb[0].mxu0 %v772
        %v1137 = vpop.f32.mrb[0].mxu0
        %v1138 = vadd.f32 %v410, %v1137
        %v1139 = vpop.f32.mrb[0].mxu0
        %v1140 = vpop.f32.mrb[0].mxu0
        %v1141 = vadd.f32 %v410, %v1140
        %v1142 = vpop.f32.mrb[0].mxu0
        %1143 = vmatprep.mubr.bf16.mxu0 0
        %1144 = vmatmul.mubr.bf16.gmra.mrb[0].mxu0 %v775
        %v1145 = vpop.f32.mrb[0].mxu0
        %v1146 = vadd.f32 %v410, %v1145
        %v1147 = vpop.f32.mrb[0].mxu0
        %v1148 = vpop.f32.mrb[0].mxu0
        %v1149 = vadd.f32 %v410, %v1148
        %v1150 = vpop.f32.mrb[0].mxu0
        %1151 = vmatprep.mubr.bf16.mxu0 0
        %1152 = vmatmul.mubr.bf16.gmra.mrb[0].mxu0 %v778
        %v1153 = vpop.f32.mrb[0].mxu0
        %v1154 = vadd.f32 %v410, %v1153
        %v1155 = vpop.f32.mrb[0].mxu0
        %v1156 = vpop.f32.mrb[0].mxu0
        %v1157 = vadd.f32 %v410, %v1156
        %v1158 = vpop.f32.mrb[0].mxu0
        %1159 = vmatprep.mubr.bf16.mxu0 0
        %1160 = vmatmul.mubr.bf16.gmra.mrb[0].mxu0 %v781
        %v1161 = vpop.f32.mrb[0].mxu0
        %v1162 = vadd.f32 %v410, %v1161
        %v1163 = vpop.f32.mrb[0].mxu0
        %v1164 = vpop.f32.mrb[0].mxu0
        %v1165 = vadd.f32 %v410, %v1164
        %v1166 = vpop.f32.mrb[0].mxu0
        %1167 = vmatprep.mubr.bf16.mxu0 0
        %1168 = vmatmul.mubr.bf16.gmra.mrb[0].mxu0 %v784
        %v1169 = vpop.f32.mrb[0].mxu0
        %v1170 = vadd.f32 %v410, %v1169
        %v1171 = vpop.f32.mrb[0].mxu0
        %v1172 = vpop.f32.mrb[0].mxu0
        %v1173 = vadd.f32 %v410, %v1172
        %v1174 = vpop.f32.mrb[0].mxu0
        %1175 = vmatprep.mubr.bf16.mxu0 0
        %1176 = vmatmul.mubr.bf16.gmra.mrb[0].mxu0 %v787
        %v1177 = vpop.f32.mrb[0].mxu0
        %v1178 = vadd.f32 %v410, %v1177
        %v1179 = vpop.f32.mrb[0].mxu0
        %v1180 = vpop.f32.mrb[0].mxu0
        %v1181 = vadd.f32 %v410, %v1180
        %v1182 = vpop.f32.mrb[0].mxu0
        %1183 = vmatprep.mubr.bf16.mxu0 0
        %1184 = vmatmul.mubr.bf16.gmra.mrb[0].mxu0 %v790
        %v1185 = vpop.f32.mrb[0].mxu0
        %v1186 = vadd.f32 %v410, %v1185
        %v1187 = vpop.f32.mrb[0].mxu0
        %v1188 = vpop.f32.mrb[0].mxu0
        %v1189 = vadd.f32 %v410, %v1188
        %v1190 = vpop.f32.mrb[0].mxu0
        %1191 = vmatprep.mubr.bf16.mxu0 0
        %1192 = vmatmul.mubr.bf16.gmra.mrb[0].mxu0 %v793
        %v1193 = vpop.f32.mrb[0].mxu0
        %v1194 = vadd.f32 %v410, %v1193
        %v1195 = vpop.f32.mrb[0].mxu0
        %v1196 = vpop.f32.mrb[0].mxu0
        %v1197 = vadd.f32 %v410, %v1196
        %v1198 = vpop.f32.mrb[0].mxu0
        %1199 = vmatprep.mubr.bf16.mxu0 0
        %1200 = vmatmul.mubr.bf16.gmra.mrb[0].mxu0 %v796
        %v1201 = vpop.f32.mrb[0].mxu0
        %v1202 = vadd.f32 %v410, %v1201
        %v1203 = vpop.f32.mrb[0].mxu0
        %v1204 = vpop.f32.mrb[0].mxu0
        %v1205 = vadd.f32 %v410, %v1204
        %v1206 = vpop.f32.mrb[0].mxu0
        %1207 = vmatprep.mubr.bf16.mxu0 0
        %1208 = vmatmul.mubr.bf16.gmra.mrb[0].mxu0 %v799
        %v1209 = vpop.f32.mrb[0].mxu0
        %v1210 = vadd.f32 %v410, %v1209
        %v1211 = vpop.f32.mrb[0].mxu0
        %v1212 = vpop.f32.mrb[0].mxu0
        %v1213 = vadd.f32 %v410, %v1212
        %v1214 = vpop.f32.mrb[0].mxu0
        %1215 = vmatprep.mubr.bf16.mxu0 0
        %1216 = vmatmul.mubr.bf16.gmra.mrb[0].mxu0 %v802
        %v1217 = vpop.f32.mrb[0].mxu0
        %v1218 = vadd.f32 %v410, %v1217
        %v1219 = vpop.f32.mrb[0].mxu0
        %v1220 = vpop.f32.mrb[0].mxu0
        %v1221 = vadd.f32 %v410, %v1220
        %v1222 = vpop.f32.mrb[0].mxu0
        %1223 = vmatprep.mubr.bf16.mxu0 0
        %1224 = vmatmul.mubr.bf16.gmra.mrb[0].mxu0 %v805
        %v1225 = vpop.f32.mrb[0].mxu0
        %v1226 = vadd.f32 %v410, %v1225
        %v1227 = vpop.f32.mrb[0].mxu0
        %v1228 = vpop.f32.mrb[0].mxu0
        %v1229 = vadd.f32 %v410, %v1228
        %v1230 = vpop.f32.mrb[0].mxu0
        %1231 = vmatprep.mubr.bf16.mxu0 0
        %1232 = vmatmul.mubr.bf16.gmra.mrb[0].mxu0 %v808
        %v1233 = vpop.f32.mrb[0].mxu0
        %v1234 = vadd.f32 %v410, %v1233
        %v1235 = vpop.f32.mrb[0].mxu0
        %v1236 = vpop.f32.mrb[0].mxu0
        %v1237 = vadd.f32 %v410, %v1236
        %v1238 = vpop.f32.mrb[0].mxu0
        %1239 = vmatprep.mubr.bf16.mxu0 0
        %1240 = vmatmul.mubr.bf16.gmra.mrb[0].mxu0 %v811
        %v1241 = vpop.f32.mrb[0].mxu0
        %v1242 = vadd.f32 %v410, %v1241
        %v1243 = vpop.f32.mrb[0].mxu0
        %v1244 = vpop.f32.mrb[0].mxu0
        %v1245 = vadd.f32 %v410, %v1244
        %v1246 = vpop.f32.mrb[0].mxu0
        %1247 = vmatprep.mubr.bf16.mxu0 0
        %1248 = vmatmul.mubr.bf16.gmra.mrb[0].mxu0 %v814
        %v1249 = vpop.f32.mrb[0].mxu0
        %v1250 = vadd.f32 %v410, %v1249
        %v1251 = vpop.f32.mrb[0].mxu0
        %v1252 = vpop.f32.mrb[0].mxu0
        %v1253 = vpop.f32.mrb[0].mxu0
        %1254 = vdwg.mxu0
        %vm1255 = vcmp.gt.f32.partialorder %v858, 0.0
        %vm1256 = vcmp.gt.f32.partialorder %v861, 0.0
        %vm1257 = vcmp.gt.f32.partialorder %v866, 0.0
        %vm1258 = vcmp.gt.f32.partialorder %v869, 0.0
        %vm1259 = vcmp.gt.f32.partialorder %v874, 0.0
        %vm1260 = vcmp.gt.f32.partialorder %v877, 0.0
        %vm1261 = vcmp.gt.f32.partialorder %v882, 0.0
        %vm1262 = vcmp.gt.f32.partialorder %v885, 0.0
        %vm1263 = vcmp.gt.f32.partialorder %v890, 0.0
        %vm1264 = vcmp.gt.f32.partialorder %v893, 0.0
        %vm1265 = vcmp.gt.f32.partialorder %v898, 0.0
        %vm1266 = vcmp.gt.f32.partialorder %v901, 0.0
        %vm1267 = vcmp.gt.f32.partialorder %v906, 0.0
        %vm1268 = vcmp.gt.f32.partialorder %v909, 0.0
        %vm1269 = vcmp.gt.f32.partialorder %v914, 0.0
        %vm1270 = vcmp.gt.f32.partialorder %v917, 0.0
        %vm1271 = vcmp.gt.f32.partialorder %v922, 0.0
        %vm1272 = vcmp.gt.f32.partialorder %v925, 0.0
        %vm1273 = vcmp.gt.f32.partialorder %v930, 0.0
        %vm1274 = vcmp.gt.f32.partialorder %v933, 0.0
        %vm1275 = vcmp.gt.f32.partialorder %v938, 0.0
        %vm1276 = vcmp.gt.f32.partialorder %v941, 0.0
        %vm1277 = vcmp.gt.f32.partialorder %v946, 0.0
        %vm1278 = vcmp.gt.f32.partialorder %v949, 0.0
        %vm1279 = vcmp.gt.f32.partialorder %v954, 0.0
        %vm1280 = vcmp.gt.f32.partialorder %v957, 0.0
        %vm1281 = vcmp.gt.f32.partialorder %v962, 0.0
        %vm1282 = vcmp.gt.f32.partialorder %v965, 0.0
        %vm1283 = vcmp.gt.f32.partialorder %v970, 0.0
        %vm1284 = vcmp.gt.f32.partialorder %v973, 0.0
        %vm1285 = vcmp.gt.f32.partialorder %v978, 0.0
        %vm1286 = vcmp.gt.f32.partialorder %v981, 0.0
        %vm1287 = vcmp.gt.f32.partialorder %v986, 0.0
        %vm1288 = vcmp.gt.f32.partialorder %v989, 0.0
        %vm1289 = vcmp.gt.f32.partialorder %v994, 0.0
        %vm1290 = vcmp.gt.f32.partialorder %v997, 0.0
        %vm1291 = vcmp.gt.f32.partialorder %v1002, 0.0
        %vm1292 = vcmp.gt.f32.partialorder %v1005, 0.0
        %vm1293 = vcmp.gt.f32.partialorder %v1010, 0.0
        %vm1294 = vcmp.gt.f32.partialorder %v1013, 0.0
        %vm1295 = vcmp.gt.f32.partialorder %v1018, 0.0
        %vm1296 = vcmp.gt.f32.partialorder %v1021, 0.0
        %vm1297 = vcmp.gt.f32.partialorder %v1026, 0.0
        %vm1298 = vcmp.gt.f32.partialorder %v1029, 0.0
        %vm1299 = vcmp.gt.f32.partialorder %v1034, 0.0
        %vm1300 = vcmp.gt.f32.partialorder %v1037, 0.0
        %vm1301 = vcmp.gt.f32.partialorder %v1042, 0.0
        %vm1302 = vcmp.gt.f32.partialorder %v1045, 0.0
        %vm1303 = vcmp.gt.f32.partialorder %v1050, 0.0
        %vm1304 = vcmp.gt.f32.partialorder %v1053, 0.0
        %vm1305 = vcmp.gt.f32.partialorder %v1058, 0.0
        %vm1306 = vcmp.gt.f32.partialorder %v1061, 0.0
        %vm1307 = vcmp.gt.f32.partialorder %v1066, 0.0
        %vm1308 = vcmp.gt.f32.partialorder %v1069, 0.0
        %vm1309 = vcmp.gt.f32.partialorder %v1074, 0.0
        %vm1310 = vcmp.gt.f32.partialorder %v1077, 0.0
        %vm1311 = vcmp.gt.f32.partialorder %v1082, 0.0
        %vm1312 = vcmp.gt.f32.partialorder %v1085, 0.0
        %vm1313 = vcmp.gt.f32.partialorder %v1090, 0.0
        %vm1314 = vcmp.gt.f32.partialorder %v1093, 0.0
        %vm1315 = vcmp.gt.f32.partialorder %v1098, 0.0
        %vm1316 = vcmp.gt.f32.partialorder %v1101, 0.0
        %vm1317 = vcmp.gt.f32.partialorder %v1106, 0.0
        %vm1318 = vcmp.gt.f32.partialorder %v1109, 0.0
        %vm1319 = vcmp.gt.f32.partialorder %v1114, 0.0
        %vm1320 = vcmp.gt.f32.partialorder %v1117, 0.0
        %vm1321 = vcmp.gt.f32.partialorder %v1122, 0.0
        %vm1322 = vcmp.gt.f32.partialorder %v1125, 0.0
        %vm1323 = vcmp.gt.f32.partialorder %v1130, 0.0
        %vm1324 = vcmp.gt.f32.partialorder %v1133, 0.0
        %vm1325 = vcmp.gt.f32.partialorder %v1138, 0.0
        %vm1326 = vcmp.gt.f32.partialorder %v1141, 0.0
        %vm1327 = vcmp.gt.f32.partialorder %v1146, 0.0
        %vm1328 = vcmp.gt.f32.partialorder %v1149, 0.0
        %vm1329 = vcmp.gt.f32.partialorder %v1154, 0.0
        %vm1330 = vcmp.gt.f32.partialorder %v1157, 0.0
        %vm1331 = vcmp.gt.f32.partialorder %v1162, 0.0
        %vm1332 = vcmp.gt.f32.partialorder %v1165, 0.0
        %vm1333 = vcmp.gt.f32.partialorder %v1170, 0.0
        %vm1334 = vcmp.gt.f32.partialorder %v1173, 0.0
        %vm1335 = vcmp.gt.f32.partialorder %v1178, 0.0
        %vm1336 = vcmp.gt.f32.partialorder %v1181, 0.0
        %vm1337 = vcmp.gt.f32.partialorder %v1186, 0.0
        %vm1338 = vcmp.gt.f32.partialorder %v1189, 0.0
        %vm1339 = vcmp.gt.f32.partialorder %v1194, 0.0
        %vm1340 = vcmp.gt.f32.partialorder %v1197, 0.0
        %vm1341 = vcmp.gt.f32.partialorder %v1202, 0.0
        %vm1342 = vcmp.gt.f32.partialorder %v1205, 0.0
        %vm1343 = vcmp.gt.f32.partialorder %v1210, 0.0
        %vm1344 = vcmp.gt.f32.partialorder %v1213, 0.0
        %vm1345 = vcmp.gt.f32.partialorder %v1218, 0.0
        %vm1346 = vcmp.gt.f32.partialorder %v1221, 0.0
        %vm1347 = vcmp.gt.f32.partialorder %v1226, 0.0
        %vm1348 = vcmp.gt.f32.partialorder %v1229, 0.0
        %vm1349 = vcmp.gt.f32.partialorder %v1234, 0.0
        %vm1350 = vcmp.gt.f32.partialorder %v1237, 0.0
        %vm1351 = vcmp.gt.f32.partialorder %v1242, 0.0
        %vm1352 = vcmp.gt.f32.partialorder %v1245, 0.0
        %vm1353 = vcmp.gt.f32.partialorder %v1250, 0.0
        %v1354 = vmul.f32 %v858, 0.01
        %v1355 = vmul.f32 %v861, 0.01
        %v1356 = vmul.f32 %v866, 0.01
        %v1357 = vmul.f32 %v869, 0.01
        %v1358 = vmul.f32 %v874, 0.01
        %v1359 = vmul.f32 %v877, 0.01
        %v1360 = vmul.f32 %v882, 0.01
        %v1361 = vmul.f32 %v885, 0.01
        %v1362 = vmul.f32 %v890, 0.01
        %v1363 = vmul.f32 %v893, 0.01
        %v1364 = vmul.f32 %v898, 0.01
        %v1365 = vmul.f32 %v901, 0.01
        %v1366 = vmul.f32 %v906, 0.01
        %v1367 = vmul.f32 %v909, 0.01
        %v1368 = vmul.f32 %v914, 0.01
        %v1369 = vmul.f32 %v917, 0.01
        %v1370 = vmul.f32 %v922, 0.01
        %v1371 = vmul.f32 %v925, 0.01
        %v1372 = vmul.f32 %v930, 0.01
        %v1373 = vmul.f32 %v933, 0.01
        %v1374 = vmul.f32 %v938, 0.01
        %v1375 = vmul.f32 %v941, 0.01
        %v1376 = vmul.f32 %v946, 0.01
        %v1377 = vmul.f32 %v949, 0.01
        %v1378 = vmul.f32 %v954, 0.01
        %v1379 = vmul.f32 %v957, 0.01
        %v1380 = vmul.f32 %v962, 0.01
        %v1381 = vmul.f32 %v965, 0.01
        %v1382 = vmul.f32 %v970, 0.01
        %v1383 = vmul.f32 %v973, 0.01
        %v1384 = vmul.f32 %v978, 0.01
        %v1385 = vmul.f32 %v981, 0.01
        %v1386 = vmul.f32 %v986, 0.01
        %v1387 = vmul.f32 %v989, 0.01
        %v1388 = vmul.f32 %v994, 0.01
        %v1389 = vmul.f32 %v997, 0.01
        %v1390 = vmul.f32 %v1002, 0.01
        %v1391 = vmul.f32 %v1005, 0.01
        %v1392 = vmul.f32 %v1010, 0.01
        %v1393 = vmul.f32 %v1013, 0.01
        %v1394 = vmul.f32 %v1018, 0.01
        %v1395 = vmul.f32 %v1021, 0.01
        %v1396 = vmul.f32 %v1026, 0.01
        %v1397 = vmul.f32 %v1029, 0.01
        %v1398 = vmul.f32 %v1034, 0.01
        %v1399 = vmul.f32 %v1037, 0.01
        %v1400 = vmul.f32 %v1042, 0.01
        %v1401 = vmul.f32 %v1045, 0.01
        %v1402 = vmul.f32 %v1050, 0.01
        %v1403 = vmul.f32 %v1053, 0.01
        %v1404 = vmul.f32 %v1058, 0.01
        %v1405 = vmul.f32 %v1061, 0.01
        %v1406 = vmul.f32 %v1066, 0.01
        %v1407 = vmul.f32 %v1069, 0.01
        %v1408 = vmul.f32 %v1074, 0.01
        %v1409 = vmul.f32 %v1077, 0.01
        %v1410 = vmul.f32 %v1082, 0.01
        %v1411 = vmul.f32 %v1085, 0.01
        %v1412 = vmul.f32 %v1090, 0.01
        %v1413 = vmul.f32 %v1093, 0.01
        %v1414 = vmul.f32 %v1098, 0.01
        %v1415 = vmul.f32 %v1101, 0.01
        %v1416 = vmul.f32 %v1106, 0.01
        %v1417 = vmul.f32 %v1109, 0.01
        %v1418 = vmul.f32 %v1114, 0.01
        %v1419 = vmul.f32 %v1117, 0.01
        %v1420 = vmul.f32 %v1122, 0.01
        %v1421 = vmul.f32 %v1125, 0.01
        %v1422 = vmul.f32 %v1130, 0.01
        %v1423 = vmul.f32 %v1133, 0.01
        %v1424 = vmul.f32 %v1138, 0.01
        %v1425 = vmul.f32 %v1141, 0.01
        %v1426 = vmul.f32 %v1146, 0.01
        %v1427 = vmul.f32 %v1149, 0.01
        %v1428 = vmul.f32 %v1154, 0.01
        %v1429 = vmul.f32 %v1157, 0.01
        %v1430 = vmul.f32 %v1162, 0.01
        %v1431 = vmul.f32 %v1165, 0.01
        %v1432 = vmul.f32 %v1170, 0.01
        %v1433 = vmul.f32 %v1173, 0.01
        %v1434 = vmul.f32 %v1178, 0.01
        %v1435 = vmul.f32 %v1181, 0.01
        %v1436 = vmul.f32 %v1186, 0.01
        %v1437 = vmul.f32 %v1189, 0.01
        %v1438 = vmul.f32 %v1194, 0.01
        %v1439 = vmul.f32 %v1197, 0.01
        %v1440 = vmul.f32 %v1202, 0.01
        %v1441 = vmul.f32 %v1205, 0.01
        %v1442 = vmul.f32 %v1210, 0.01
        %v1443 = vmul.f32 %v1213, 0.01
        %v1444 = vmul.f32 %v1218, 0.01
        %v1445 = vmul.f32 %v1221, 0.01
        %v1446 = vmul.f32 %v1226, 0.01
        %v1447 = vmul.f32 %v1229, 0.01
        %v1448 = vmul.f32 %v1234, 0.01
        %v1449 = vmul.f32 %v1237, 0.01
        %v1450 = vmul.f32 %v1242, 0.01
        %v1451 = vmul.f32 %v1245, 0.01
        %v1452 = vmul.f32 %v1250, 0.01
        %v1453 = vsel %vm1255, %v858, %v1354
        %v1454 = vsel %vm1256, %v861, %v1355
        %v1455 = vsel %vm1257, %v866, %v1356
        %v1456 = vsel %vm1258, %v869, %v1357
        %v1457 = vsel %vm1259, %v874, %v1358
        %v1458 = vsel %vm1260, %v877, %v1359
        %v1459 = vsel %vm1261, %v882, %v1360
        %v1460 = vsel %vm1262, %v885, %v1361
        %v1461 = vsel %vm1263, %v890, %v1362
        %v1462 = vsel %vm1264, %v893, %v1363
        %v1463 = vsel %vm1265, %v898, %v1364
        %v1464 = vsel %vm1266, %v901, %v1365
        %v1465 = vsel %vm1267, %v906, %v1366
        %v1466 = vsel %vm1268, %v909, %v1367
        %v1467 = vsel %vm1269, %v914, %v1368
        %v1468 = vsel %vm1270, %v917, %v1369
        %v1469 = vsel %vm1271, %v922, %v1370
        %v1470 = vsel %vm1272, %v925, %v1371
        %v1471 = vsel %vm1273, %v930, %v1372
        %v1472 = vsel %vm1274, %v933, %v1373
        %v1473 = vsel %vm1275, %v938, %v1374
        %v1474 = vsel %vm1276, %v941, %v1375
        %v1475 = vsel %vm1277, %v946, %v1376
        %v1476 = vsel %vm1278, %v949, %v1377
        %v1477 = vsel %vm1279, %v954, %v1378
        %v1478 = vsel %vm1280, %v957, %v1379
        %v1479 = vsel %vm1281, %v962, %v1380
        %v1480 = vsel %vm1282, %v965, %v1381
        %v1481 = vsel %vm1283, %v970, %v1382
        %v1482 = vsel %vm1284, %v973, %v1383
        %v1483 = vsel %vm1285, %v978, %v1384
        %v1484 = vsel %vm1286, %v981, %v1385
        %v1485 = vsel %vm1287, %v986, %v1386
        %v1486 = vsel %vm1288, %v989, %v1387
        %v1487 = vsel %vm1289, %v994, %v1388
        %v1488 = vsel %vm1290, %v997, %v1389
        %v1489 = vsel %vm1291, %v1002, %v1390
        %v1490 = vsel %vm1292, %v1005, %v1391
        %v1491 = vsel %vm1293, %v1010, %v1392
        %v1492 = vsel %vm1294, %v1013, %v1393
        %v1493 = vsel %vm1295, %v1018, %v1394
        %v1494 = vsel %vm1296, %v1021, %v1395
        %v1495 = vsel %vm1297, %v1026, %v1396
        %v1496 = vsel %vm1298, %v1029, %v1397
        %v1497 = vsel %vm1299, %v1034, %v1398
        %v1498 = vsel %vm1300, %v1037, %v1399
        %v1499 = vsel %vm1301, %v1042, %v1400
        %v1500 = vsel %vm1302, %v1045, %v1401
        %v1501 = vsel %vm1303, %v1050, %v1402
        %v1502 = vsel %vm1304, %v1053, %v1403
        %v1503 = vsel %vm1305, %v1058, %v1404
        %v1504 = vsel %vm1306, %v1061, %v1405
        %v1505 = vsel %vm1307, %v1066, %v1406
        %v1506 = vsel %vm1308, %v1069, %v1407
        %v1507 = vsel %vm1309, %v1074, %v1408
        %v1508 = vsel %vm1310, %v1077, %v1409
        %v1509 = vsel %vm1311, %v1082, %v1410
        %v1510 = vsel %vm1312, %v1085, %v1411
        %v1511 = vsel %vm1313, %v1090, %v1412
        %v1512 = vsel %vm1314, %v1093, %v1413
        %v1513 = vsel %vm1315, %v1098, %v1414
        %v1514 = vsel %vm1316, %v1101, %v1415
        %v1515 = vsel %vm1317, %v1106, %v1416
        %v1516 = vsel %vm1318, %v1109, %v1417
        %v1517 = vsel %vm1319, %v1114, %v1418
        %v1518 = vsel %vm1320, %v1117, %v1419
        %v1519 = vsel %vm1321, %v1122, %v1420
        %v1520 = vsel %vm1322, %v1125, %v1421
        %v1521 = vsel %vm1323, %v1130, %v1422
        %v1522 = vsel %vm1324, %v1133, %v1423
        %v1523 = vsel %vm1325, %v1138, %v1424
        %v1524 = vsel %vm1326, %v1141, %v1425
        %v1525 = vsel %vm1327, %v1146, %v1426
        %v1526 = vsel %vm1328, %v1149, %v1427
        %v1527 = vsel %vm1329, %v1154, %v1428
        %v1528 = vsel %vm1330, %v1157, %v1429
        %v1529 = vsel %vm1331, %v1162, %v1430
        %v1530 = vsel %vm1332, %v1165, %v1431
        %v1531 = vsel %vm1333, %v1170, %v1432
        %v1532 = vsel %vm1334, %v1173, %v1433
        %v1533 = vsel %vm1335, %v1178, %v1434
        %v1534 = vsel %vm1336, %v1181, %v1435
        %v1535 = vsel %vm1337, %v1186, %v1436
        %v1536 = vsel %vm1338, %v1189, %v1437
        %v1537 = vsel %vm1339, %v1194, %v1438
        %v1538 = vsel %vm1340, %v1197, %v1439
        %v1539 = vsel %vm1341, %v1202, %v1440
        %v1540 = vsel %vm1342, %v1205, %v1441
        %v1541 = vsel %vm1343, %v1210, %v1442
        %v1542 = vsel %vm1344, %v1213, %v1443
        %v1543 = vsel %vm1345, %v1218, %v1444
        %v1544 = vsel %vm1346, %v1221, %v1445
        %v1545 = vsel %vm1347, %v1226, %v1446
        %v1546 = vsel %vm1348, %v1229, %v1447
        %v1547 = vsel %vm1349, %v1234, %v1448
        %v1548 = vsel %vm1350, %v1237, %v1449
        %v1549 = vsel %vm1351, %v1242, %v1450
        %v1550 = vsel %vm1352, %v1245, %v1451
        %v1551 = vsel %vm1353, %v1250, %v1452
        %v1552 = vmax.f32 %v1453, %v1464
        %v1553 = vmax.f32 %v1454, %v1465
        %v1554 = vmax.f32 %v1455, %v1466
        %v1555 = vmax.f32 %v1456, %v1467
        %v1556 = vmax.f32 %v1457, %v1468
        %v1557 = vmax.f32 %v1458, %v1469
        %v1558 = vmax.f32 %v1459, %v1470
        %v1559 = vmax.f32 %v1460, %v1471
        %v1560 = vmax.f32 %v1461, %v1472
        %v1561 = vmax.f32 %v1462, %v1473
        %v1562 = vmax.f32 %v1463, %v1474
        %v1563 = vmax.f32 %v1552, %v1475
        %v1564 = vmax.f32 %v1553, %v1476
        %v1565 = vmax.f32 %v1554, %v1477
        %v1566 = vmax.f32 %v1555, %v1478
        %v1567 = vmax.f32 %v1556, %v1479
        %v1568 = vmax.f32 %v1557, %v1480
        %v1569 = vmax.f32 %v1558, %v1481
        %v1570 = vmax.f32 %v1559, %v1482
        %v1571 = vmax.f32 %v1560, %v1483
        %v1572 = vmax.f32 %v1561, %v1484
        %v1573 = vmax.f32 %v1562, %v1485
        %v1574 = vmax.f32 %v1563, %v1486
        %v1575 = vmax.f32 %v1564, %v1487
        %v1576 = vmax.f32 %v1565, %v1488
        %v1577 = vmax.f32 %v1566, %v1489
        %v1578 = vmax.f32 %v1567, %v1490
        %v1579 = vmax.f32 %v1568, %v1491
        %v1580 = vmax.f32 %v1569, %v1492
        %v1581 = vmax.f32 %v1570, %v1493
        %v1582 = vmax.f32 %v1571, %v1494
        %v1583 = vmax.f32 %v1572, %v1495
        %v1584 = vmax.f32 %v1573, %v1496
        %v1585 = vmax.f32 %v1574, %v1497
        %v1586 = vmax.f32 %v1575, %v1498
        %v1587 = vmax.f32 %v1576, %v1499
        %v1588 = vmax.f32 %v1577, %v1500
        %v1589 = vmax.f32 %v1578, %v1501
        %v1590 = vmax.f32 %v1579, %v1502
        %v1591 = vmax.f32 %v1580, %v1503
        %v1592 = vmax.f32 %v1581, %v1504
        %v1593 = vmax.f32 %v1582, %v1505
        %v1594 = vmax.f32 %v1583, %v1506
        %v1595 = vmax.f32 %v1584, %v1507
        %v1596 = vmax.f32 %v1585, %v1508
        %v1597 = vmax.f32 %v1586, %v1509
        %v1598 = vmax.f32 %v1587, %v1510
        %v1599 = vmax.f32 %v1588, %v1511
        %v1600 = vmax.f32 %v1589, %v1512
        %v1601 = vmax.f32 %v1590, %v1513
        %v1602 = vmax.f32 %v1591, %v1514
        %v1603 = vmax.f32 %v1592, %v1515
        %v1604 = vmax.f32 %v1593, %v1516
        %v1605 = vmax.f32 %v1594, %v1517
        %v1606 = vmax.f32 %v1595, %v1518
        %v1607 = vmax.f32 %v1596, %v1519
        %v1608 = vmax.f32 %v1597, %v1520
        %v1609 = vmax.f32 %v1598, %v1521
        %v1610 = vmax.f32 %v1599, %v1522
        %v1611 = vmax.f32 %v1600, %v1523
        %v1612 = vmax.f32 %v1601, %v1524
        %v1613 = vmax.f32 %v1602, %v1525
        %v1614 = vmax.f32 %v1603, %v1526
        %v1615 = vmax.f32 %v1604, %v1527
        %v1616 = vmax.f32 %v1605, %v1528
        %v1617 = vmax.f32 %v1606, %v1529
        %v1618 = vmax.f32 %v1607, %v1530
        %v1619 = vmax.f32 %v1608, %v1531
        %v1620 = vmax.f32 %v1609, %v1532
        %v1621 = vmax.f32 %v1610, %v1533
        %v1622 = vmax.f32 %v1611, %v1534
        %v1623 = vmax.f32 %v1612, %v1535
        %v1624 = vmax.f32 %v1613, %v1536
        %v1625 = vmax.f32 %v1614, %v1537
        %v1626 = vmax.f32 %v1615, %v1538
        %v1627 = vmax.f32 %v1616, %v1539
        %v1628 = vmax.f32 %v1617, %v1540
        %v1629 = vmax.f32 %v1618, %v1541
        %v1630 = vmax.f32 %v1619, %v1542
        %v1631 = vmax.f32 %v1620, %v1543
        %v1632 = vmax.f32 %v1621, %v1544
        %v1633 = vmax.f32 %v1622, %v1545
        %v1634 = vmax.f32 %v1623, %v1546
        %v1635 = vmax.f32 %v1624, %v1547
        %v1636 = vmax.f32 %v1625, %v1548
        %v1637 = vmax.f32 %v1626, %v1549
        %v1638 = vmax.f32 %v1627, %v1550
        %v1639 = vmax.f32 %v1628, %v1551
        %v1640 = vld [vmem:[%s1] sm:$0xf]
        %v1641 = vld [vmem:[%s1 + $0x4] sm:$0xf]
        %v1642 = vld [vmem:[%s1 + $0x8] sm:$0xf]
        %v1643 = vld [vmem:[%s1 + $0xc] sm:$0xf]
        %v1644 = vld [vmem:[%s1 + $0x10] sm:$0xf]
        %v1645 = vld [vmem:[%s1 + $0x14] sm:$0xf]
        %v1646 = vld [vmem:[%s1 + $0x18] sm:$0xf]
        %v1647 = vld [vmem:[%s1 + $0x1c] sm:$0xf]
        %v1648 = vld [vmem:[%s1 + $0x20] sm:$0xf]
        %v1649 = vld [vmem:[%s1 + $0x24] sm:$0xf]
        %v1650 = vld [vmem:[%s1 + $0x28] sm:$0xf]
        %v1651 = vld [vmem:[%s1 + $0x2c] sm:$0xf]
        %v1652 = vld [vmem:[%s1 + $0x30] sm:$0xf]
        %v1653 = vld [vmem:[%s1 + $0x34] sm:$0xf]
        %v1654 = vld [vmem:[%s1 + $0x38] sm:$0xf]
        %v1655 = vld [vmem:[%s1 + $0x3c] sm:$0xf]
        %v1656 = vld [vmem:[%s1 + $0x40] sm:$0xf]
        %v1657 = vld [vmem:[%s1 + $0x44] sm:$0xf]
        %v1658 = vld [vmem:[%s1 + $0x48] sm:$0xf]
        %v1659 = vld [vmem:[%s1 + $0x4c] sm:$0xf]
        %v1660 = vld [vmem:[%s1 + $0x50] sm:$0xf]
        %v1661 = vld [vmem:[%s1 + $0x54] sm:$0xf]
        %v1662 = vld [vmem:[%s1 + $0x58] sm:$0xf]
        %v1663 = vld [vmem:[%s1 + $0x5c] sm:$0xf]
        %v1664 = vld [vmem:[%s1 + $0x60] sm:$0xf]
        %v1665 = vld [vmem:[%s1 + $0x64] sm:$0xf]
        %v1666 = vld [vmem:[%s1 + $0x68] sm:$0xf]
        %v1667 = vld [vmem:[%s1 + $0x6c] sm:$0xf]
        %v1668 = vld [vmem:[%s1 + $0x70] sm:$0xf]
        %v1669 = vld [vmem:[%s1 + $0x74] sm:$0xf]
        %v1670 = vld [vmem:[%s1 + $0x78] sm:$0xf]
        %v1671 = vld [vmem:[%s1 + $0x7c] sm:$0xf]
        %v1672 = vld [vmem:[%s1 + $0x80] sm:$0xf]
        %v1673 = vld [vmem:[%s1 + $0x84] sm:$0xf]
        %v1674 = vld [vmem:[%s1 + $0x88] sm:$0xf]
        %v1675 = vld [vmem:[%s1 + $0x8c] sm:$0xf]
        %v1676 = vld [vmem:[%s1 + $0x90] sm:$0xf]
        %v1677 = vld [vmem:[%s1 + $0x94] sm:$0xf]
        %v1678 = vld [vmem:[%s1 + $0x98] sm:$0xf]
        %v1679 = vld [vmem:[%s1 + $0x9c] sm:$0xf]
        %v1680 = vld [vmem:[%s1 + $0xa0] sm:$0xf]
        %v1681 = vld [vmem:[%s1 + $0xa4] sm:$0xf]
        %v1682 = vld [vmem:[%s1 + $0xa8] sm:$0xf]
        %v1683 = vld [vmem:[%s1 + $0xac] sm:$0xf]
        %v1684 = vld [vmem:[%s1 + $0xb0] sm:$0xf]
        %v1685 = vld [vmem:[%s1 + $0xb4] sm:$0xf]
        %v1686 = vld [vmem:[%s1 + $0xb8] sm:$0xf]
        %v1687 = vld [vmem:[%s1 + $0xbc] sm:$0xf]
        %v1688 = vld [vmem:[%s1 + $0xc0] sm:$0xf]
        %v1689 = vld [vmem:[%s1 + $0xc4] sm:$0xf]
        %v1690 = vld [vmem:[%s1 + $0xc8] sm:$0xf]
        %v1691 = vld [vmem:[%s1 + $0xcc] sm:$0xf]
        %v1692 = vld [vmem:[%s1 + $0xd0] sm:$0xf]
        %v1693 = vld [vmem:[%s1 + $0xd4] sm:$0xf]
        %v1694 = vld [vmem:[%s1 + $0xd8] sm:$0xf]
        %v1695 = vld [vmem:[%s1 + $0xdc] sm:$0xf]
        %v1696 = vld [vmem:[%s1 + $0xe0] sm:$0xf]
        %v1697 = vld [vmem:[%s1 + $0xe4] sm:$0xf]
        %v1698 = vld [vmem:[%s1 + $0xe8] sm:$0xf]
        %v1699 = vld [vmem:[%s1 + $0xec] sm:$0xf]
        %v1700 = vld [vmem:[%s1 + $0xf0] sm:$0xf]
        %v1701 = vld [vmem:[%s1 + $0xf4] sm:$0xf]
        %v1702 = vld [vmem:[%s1 + $0xf8] sm:$0xf]
        %v1703 = vld [vmem:[%s1 + $0xfc] sm:$0xf]
        %v1704 = vld [vmem:[%s1 + $0x100] sm:$0xf]
        %v1705 = vld [vmem:[%s1 + $0x104] sm:$0xf]
        %v1706 = vld [vmem:[%s1 + $0x108] sm:$0xf]
        %v1707 = vld [vmem:[%s1 + $0x10c] sm:$0xf]
        %v1708 = vld [vmem:[%s1 + $0x110] sm:$0xf]
        %v1709 = vld [vmem:[%s1 + $0x114] sm:$0xf]
        %v1710 = vld [vmem:[%s1 + $0x118] sm:$0xf]
        %v1711 = vld [vmem:[%s1 + $0x11c] sm:$0xf]
        %v1712 = vpack.c.bf16 %v1630, %v1629
        %v1713 = vpack.c.bf16 %v1632, %v1631
        %v1714 = vpack.c.bf16 %v1634, %v1633
        %v1715 = vpack.c.bf16 %v1636, %v1635
        %v1716 = vpack.c.bf16 %v1638, %v1637
        %v1717 = vpack.c.bf16 %v1639, %v1639
        %v1790 = vunpack.c.l.b16 %v1640
        %v1791 = vunpack.c.l.b16 %v1641
        %v1792 = vunpack.c.l.b16 %v1642
        %v1793 = vunpack.c.l.b16 %v1643
        %v1794 = vunpack.c.l.b16 %v1644
        %v1795 = vunpack.c.l.b16 %v1645
        %v1796 = vunpack.c.l.b16 %v1646
        %v1797 = vunpack.c.l.b16 %v1647
        %v1798 = vunpack.c.l.b16 %v1648
        %v1799 = vunpack.c.l.b16 %v1649
        %v1800 = vunpack.c.l.b16 %v1650
        %v1801 = vunpack.c.l.b16 %v1651
        %v1802 = vunpack.c.l.b16 %v1652
        %v1803 = vunpack.c.l.b16 %v1653
        %v1804 = vunpack.c.l.b16 %v1654
        %v1805 = vunpack.c.l.b16 %v1655
        %v1806 = vunpack.c.l.b16 %v1656
        %v1807 = vunpack.c.l.b16 %v1657
        %v1808 = vunpack.c.l.b16 %v1658
        %v1809 = vunpack.c.l.b16 %v1659
        %v1810 = vunpack.c.l.b16 %v1660
        %v1811 = vunpack.c.l.b16 %v1661
        %v1812 = vunpack.c.l.b16 %v1662
        %v1813 = vunpack.c.l.b16 %v1663
        %v1814 = vunpack.c.l.b16 %v1664
        %v1815 = vunpack.c.l.b16 %v1665
        %v1816 = vunpack.c.l.b16 %v1666
        %v1817 = vunpack.c.l.b16 %v1667
        %v1818 = vunpack.c.l.b16 %v1668
        %v1819 = vunpack.c.l.b16 %v1669
        %v1820 = vunpack.c.l.b16 %v1670
        %v1821 = vunpack.c.l.b16 %v1671
        %v1822 = vunpack.c.l.b16 %v1672
        %v1823 = vunpack.c.l.b16 %v1673
        %v1824 = vunpack.c.l.b16 %v1674
        %v1825 = vunpack.c.l.b16 %v1675
        %v1826 = vunpack.c.l.b16 %v1676
        %v1827 = vunpack.c.l.b16 %v1677
        %v1828 = vunpack.c.l.b16 %v1678
        %v1829 = vunpack.c.l.b16 %v1679
        %v1830 = vunpack.c.l.b16 %v1680
        %v1831 = vunpack.c.l.b16 %v1681
        %v1832 = vunpack.c.l.b16 %v1682
        %v1833 = vunpack.c.l.b16 %v1683
        %v1834 = vunpack.c.l.b16 %v1684
        %v1835 = vunpack.c.l.b16 %v1685
        %v1836 = vunpack.c.l.b16 %v1686
        %v1837 = vunpack.c.l.b16 %v1687
        %v1838 = vunpack.c.l.b16 %v1688
        %v1839 = vunpack.c.l.b16 %v1689
        %v1840 = vunpack.c.l.b16 %v1690
        %v1841 = vunpack.c.l.b16 %v1691
        %v1842 = vunpack.c.l.b16 %v1692
        %v1843 = vunpack.c.l.b16 %v1693
        %v1844 = vunpack.c.l.b16 %v1694
        %v1845 = vunpack.c.l.b16 %v1695
        %v1846 = vunpack.c.l.b16 %v1696
        %v1847 = vunpack.c.l.b16 %v1697
        %v1848 = vunpack.c.l.b16 %v1698
        %v1849 = vunpack.c.l.b16 %v1699
        %v1850 = vunpack.c.l.b16 %v1700
        %v1851 = vunpack.c.l.b16 %v1701
        %v1852 = vunpack.c.l.b16 %v1702
        %v1853 = vunpack.c.l.b16 %v1703
        %v1854 = vunpack.c.l.b16 %v1704
        %v1855 = vunpack.c.l.b16 %v1705
        %v1856 = vunpack.c.l.b16 %v1706
        %v1857 = vunpack.c.l.b16 %v1707
        %v1858 = vunpack.c.l.b16 %v1708
        %v1859 = vunpack.c.l.b16 %v1709
        %v1860 = vunpack.c.l.b16 %v1710
        %v1861 = vunpack.c.l.b16 %v1711
        %v1862 = vpack.c.b16 %v1791, %v1790
        %v1863 = vpack.c.b16 %v1793, %v1792
        %v1864 = vpack.c.b16 %v1795, %v1794
        %v1865 = vpack.c.b16 %v1797, %v1796
        %v1866 = vpack.c.b16 %v1799, %v1798
        %v1867 = vpack.c.b16 %v1801, %v1800
        %v1868 = vpack.c.b16 %v1803, %v1802
        %v1869 = vpack.c.b16 %v1805, %v1804
        %v1870 = vpack.c.b16 %v1807, %v1806
        %v1871 = vpack.c.b16 %v1809, %v1808
        %v1872 = vpack.c.b16 %v1811, %v1810
        %v1873 = vpack.c.b16 %v1813, %v1812
        %v1874 = vpack.c.b16 %v1815, %v1814
        %v1875 = vpack.c.b16 %v1817, %v1816
        %v1876 = vpack.c.b16 %v1819, %v1818
        %v1877 = vpack.c.b16 %v1821, %v1820
        %v1878 = vpack.c.b16 %v1823, %v1822
        %v1879 = vpack.c.b16 %v1825, %v1824
        %v1880 = vpack.c.b16 %v1827, %v1826
        %v1881 = vpack.c.b16 %v1829, %v1828
        %v1882 = vpack.c.b16 %v1831, %v1830
        %v1883 = vpack.c.b16 %v1833, %v1832
        %v1884 = vpack.c.b16 %v1835, %v1834
        %v1885 = vpack.c.b16 %v1837, %v1836
        %v1886 = vpack.c.b16 %v1839, %v1838
        %v1887 = vpack.c.b16 %v1841, %v1840
        %v1888 = vpack.c.b16 %v1843, %v1842
        %v1889 = vpack.c.b16 %v1845, %v1844
        %v1890 = vpack.c.b16 %v1847, %v1846
        %v1891 = vpack.c.b16 %v1849, %v1848
        %v1892 = vpack.c.b16 %v1851, %v1850
        %v1893 = vpack.c.b16 %v1853, %v1852
        %v1894 = vpack.c.b16 %v1855, %v1854
        %v1895 = vpack.c.b16 %v1857, %v1856
        %v1896 = vpack.c.b16 %v1859, %v1858
        %v1897 = vpack.c.b16 %v1861, %v1860
        %vm1898 = vcmask 719872
        %v1900 = vsel %vm1898, %v1862, 0
        %v1903 = vsel %vm1898, %v1863, 0
        %v1906 = vsel %vm1898, %v1864, 0
        %v1909 = vsel %vm1898, %v1865, 0
        %v1912 = vsel %vm1898, %v1866, 0
        %v1915 = vsel %vm1898, %v1867, 0
        %v1918 = vsel %vm1898, %v1868, 0
        %v1921 = vsel %vm1898, %v1869, 0
        %v1924 = vsel %vm1898, %v1870, 0
        %v1927 = vsel %vm1898, %v1871, 0
        %v1930 = vsel %vm1898, %v1872, 0
        %v1933 = vsel %vm1898, %v1873, 0
        %v1936 = vsel %vm1898, %v1874, 0
        %v1939 = vsel %vm1898, %v1875, 0
        %v1942 = vsel %vm1898, %v1876, 0
        %v1945 = vsel %vm1898, %v1877, 0
        %v1948 = vsel %vm1898, %v1878, 0
        %v1951 = vsel %vm1898, %v1879, 0
        %v1954 = vsel %vm1898, %v1880, 0
        %v1957 = vsel %vm1898, %v1881, 0
        %v1960 = vsel %vm1898, %v1882, 0
        %v1963 = vsel %vm1898, %v1883, 0
        %v1966 = vsel %vm1898, %v1884, 0
        %v1969 = vsel %vm1898, %v1885, 0
        %v1972 = vsel %vm1898, %v1886, 0
        %v1975 = vsel %vm1898, %v1887, 0
        %v1978 = vsel %vm1898, %v1888, 0
        %v1981 = vsel %vm1898, %v1889, 0
        %v1984 = vsel %vm1898, %v1890, 0
        %v1987 = vsel %vm1898, %v1891, 0
        %v1990 = vsel %vm1898, %v1892, 0
        %v1993 = vsel %vm1898, %v1893, 0
        %v1996 = vsel %vm1898, %v1894, 0
        %v1999 = vsel %vm1898, %v1895, 0
        %v2002 = vsel %vm1898, %v1896, 0
        %v2005 = vsel %vm1898, %v1897, 0
        %v2008 = vsel %vm816, %v1717, 0
        %2010 = vmatprep.subr.bf16.mxu0 0
        %2011 = vmatpush1.bf16.msra.mxu0 %v1712
        %2012 = vmatprep.subr.bf16.mxu0 0
        %2013 = vmatpush1.bf16.msra.mxu0 %v1713
        %2014 = vmatprep.subr.bf16.mxu0 0
        %2015 = vmatpush1.bf16.msra.mxu0 %v1714
        %2016 = vmatprep.subr.bf16.mxu0 0
        %2017 = vmatpush1.bf16.msra.mxu0 %v1715
        %2018 = vmatprep.subr.bf16.mxu0 0
        %2019 = vmatpush1.bf16.msra.mxu0 %v1716
        %2020 = vmatprep.subr.bf16.mxu0 0
        %2021 = vmatpush1.bf16.msra.mxu0 %v2008
        %2022 = vmatprep.subr.bf16.mxu0 0
        %2023 = vmatpush1.bf16.msra.mxu0 0
        %2024 = vmatprep.subr.bf16.mxu0 0
        %2025 = vmatpush1.bf16.msra.mxu0 0
        %2026 = vmatprep.subr.bf16.mxu0 0
        %2027 = vmatpush1.bf16.msra.mxu0 0
        %2028 = vmatprep.subr.bf16.mxu0 0
        %2029 = vmatpush1.bf16.msra.mxu0 0
        %2030 = vmatprep.subr.bf16.mxu0 0
        %2031 = vmatpush1.bf16.msra.mxu0 0
        %2032 = vmatprep.subr.bf16.mxu0 0
        %2033 = vmatpush1.bf16.msra.mxu0 0
        %2034 = vmatprep.subr.bf16.mxu0 0
        %2035 = vmatpush1.bf16.msra.mxu0 0
        %2036 = vmatprep.subr.bf16.mxu0 0
        %2037 = vmatpush1.bf16.msra.mxu0 0
        %2038 = vmatprep.subr.bf16.mxu0 0
        %2039 = vmatpush1.bf16.msra.mxu0 0
        %2040 = vmatprep.subr.bf16.mxu0 0
        %2041 = vmatpush1.bf16.msra.mxu0 0
        %2042 = vmatprep.mubr.bf16.mxu0 0
        %2043 = vmatmul.mubr.bf16.gmra.mrb[0].mxu0 %v1900
        %v2044 = vpop.f32.mrb[0].mxu0
        %v2045 = vadd.f32 0.0, %v2044
        %v2046 = vpop.f32.mrb[0].mxu0
        %v2047 = vpop.f32.mrb[0].mxu0
        %v2048 = vadd.f32 0.0, %v2047
        %v2049 = vpop.f32.mrb[0].mxu0
        %2050 = vmatprep.mubr.bf16.mxu0 0
        %2051 = vmatmul.mubr.bf16.gmra.mrb[0].mxu0 %v1903
        %v2052 = vpop.f32.mrb[0].mxu0
        %v2053 = vadd.f32 0.0, %v2052
        %v2054 = vpop.f32.mrb[0].mxu0
        %v2055 = vpop.f32.mrb[0].mxu0
        %v2056 = vadd.f32 0.0, %v2055
        %v2057 = vpop.f32.mrb[0].mxu0
        %2058 = vmatprep.mubr.bf16.mxu0 0
        %2059 = vmatmul.mubr.bf16.gmra.mrb[0].mxu0 %v1906
        %v2060 = vpop.f32.mrb[0].mxu0
        %v2061 = vadd.f32 0.0, %v2060
        %v2062 = vpop.f32.mrb[0].mxu0
        %v2063 = vpop.f32.mrb[0].mxu0
        %v2064 = vadd.f32 0.0, %v2063
        %v2065 = vpop.f32.mrb[0].mxu0
        %2066 = vmatprep.mubr.bf16.mxu0 0
        %2067 = vmatmul.mubr.bf16.gmra.mrb[0].mxu0 %v1909
        %v2068 = vpop.f32.mrb[0].mxu0
        %v2069 = vadd.f32 0.0, %v2068
        %v2070 = vpop.f32.mrb[0].mxu0
        %v2071 = vpop.f32.mrb[0].mxu0
        %v2072 = vadd.f32 0.0, %v2071
        %v2073 = vpop.f32.mrb[0].mxu0
        %2074 = vmatprep.mubr.bf16.mxu0 0
        %2075 = vmatmul.mubr.bf16.gmra.mrb[0].mxu0 %v1912
        %v2076 = vpop.f32.mrb[0].mxu0
        %v2077 = vadd.f32 0.0, %v2076
        %v2078 = vpop.f32.mrb[0].mxu0
        %v2079 = vpop.f32.mrb[0].mxu0
        %v2080 = vadd.f32 0.0, %v2079
        %v2081 = vpop.f32.mrb[0].mxu0
        %2082 = vmatprep.mubr.bf16.mxu0 0
        %2083 = vmatmul.mubr.bf16.gmra.mrb[0].mxu0 %v1915
        %v2084 = vpop.f32.mrb[0].mxu0
        %v2085 = vadd.f32 0.0, %v2084
        %v2086 = vpop.f32.mrb[0].mxu0
        %v2087 = vpop.f32.mrb[0].mxu0
        %v2088 = vadd.f32 0.0, %v2087
        %v2089 = vpop.f32.mrb[0].mxu0
        %2090 = vmatprep.mubr.bf16.mxu0 0
        %2091 = vmatmul.mubr.bf16.gmra.mrb[0].mxu0 %v1918
        %v2092 = vpop.f32.mrb[0].mxu0
        %v2093 = vadd.f32 0.0, %v2092
        %v2094 = vpop.f32.mrb[0].mxu0
        %v2095 = vpop.f32.mrb[0].mxu0
        %v2096 = vadd.f32 0.0, %v2095
        %v2097 = vpop.f32.mrb[0].mxu0
        %2098 = vmatprep.mubr.bf16.mxu0 0
        %2099 = vmatmul.mubr.bf16.gmra.mrb[0].mxu0 %v1921
        %v2100 = vpop.f32.mrb[0].mxu0
        %v2101 = vadd.f32 0.0, %v2100
        %v2102 = vpop.f32.mrb[0].mxu0
        %v2103 = vpop.f32.mrb[0].mxu0
        %v2104 = vadd.f32 0.0, %v2103
        %v2105 = vpop.f32.mrb[0].mxu0
        %2106 = vmatprep.mubr.bf16.mxu0 0
        %2107 = vmatmul.mubr.bf16.gmra.mrb[0].mxu0 %v1924
        %v2108 = vpop.f32.mrb[0].mxu0
        %v2109 = vadd.f32 0.0, %v2108
        %v2110 = vpop.f32.mrb[0].mxu0
        %v2111 = vpop.f32.mrb[0].mxu0
        %v2112 = vadd.f32 0.0, %v2111
        %v2113 = vpop.f32.mrb[0].mxu0
        %2114 = vmatprep.mubr.bf16.mxu0 0
        %2115 = vmatmul.mubr.bf16.gmra.mrb[0].mxu0 %v1927
        %v2116 = vpop.f32.mrb[0].mxu0
        %v2117 = vadd.f32 0.0, %v2116
        %v2118 = vpop.f32.mrb[0].mxu0
        %v2119 = vpop.f32.mrb[0].mxu0
        %v2120 = vadd.f32 0.0, %v2119
        %v2121 = vpop.f32.mrb[0].mxu0
        %2122 = vmatprep.mubr.bf16.mxu0 0
        %2123 = vmatmul.mubr.bf16.gmra.mrb[0].mxu0 %v1930
        %v2124 = vpop.f32.mrb[0].mxu0
        %v2125 = vadd.f32 0.0, %v2124
        %v2126 = vpop.f32.mrb[0].mxu0
        %v2127 = vpop.f32.mrb[0].mxu0
        %v2128 = vadd.f32 0.0, %v2127
        %v2129 = vpop.f32.mrb[0].mxu0
        %2130 = vmatprep.mubr.bf16.mxu0 0
        %2131 = vmatmul.mubr.bf16.gmra.mrb[0].mxu0 %v1933
        %v2132 = vpop.f32.mrb[0].mxu0
        %v2133 = vadd.f32 0.0, %v2132
        %v2134 = vpop.f32.mrb[0].mxu0
        %v2135 = vpop.f32.mrb[0].mxu0
        %v2136 = vadd.f32 0.0, %v2135
        %v2137 = vpop.f32.mrb[0].mxu0
        %2138 = vmatprep.mubr.bf16.mxu0 0
        %2139 = vmatmul.mubr.bf16.gmra.mrb[0].mxu0 %v1936
        %v2140 = vpop.f32.mrb[0].mxu0
        %v2141 = vadd.f32 0.0, %v2140
        %v2142 = vpop.f32.mrb[0].mxu0
        %v2143 = vpop.f32.mrb[0].mxu0
        %v2144 = vadd.f32 0.0, %v2143
        %v2145 = vpop.f32.mrb[0].mxu0
        %2146 = vmatprep.mubr.bf16.mxu0 0
        %2147 = vmatmul.mubr.bf16.gmra.mrb[0].mxu0 %v1939
        %v2148 = vpop.f32.mrb[0].mxu0
        %v2149 = vadd.f32 0.0, %v2148
        %v2150 = vpop.f32.mrb[0].mxu0
        %v2151 = vpop.f32.mrb[0].mxu0
        %v2152 = vadd.f32 0.0, %v2151
        %v2153 = vpop.f32.mrb[0].mxu0
        %2154 = vmatprep.mubr.bf16.mxu0 0
        %2155 = vmatmul.mubr.bf16.gmra.mrb[0].mxu0 %v1942
        %v2156 = vpop.f32.mrb[0].mxu0
        %v2157 = vadd.f32 0.0, %v2156
        %v2158 = vpop.f32.mrb[0].mxu0
        %v2159 = vpop.f32.mrb[0].mxu0
        %v2160 = vadd.f32 0.0, %v2159
        %v2161 = vpop.f32.mrb[0].mxu0
        %2162 = vmatprep.mubr.bf16.mxu0 0
        %2163 = vmatmul.mubr.bf16.gmra.mrb[0].mxu0 %v1945
        %v2164 = vpop.f32.mrb[0].mxu0
        %v2165 = vadd.f32 0.0, %v2164
        %v2166 = vpop.f32.mrb[0].mxu0
        %v2167 = vpop.f32.mrb[0].mxu0
        %v2168 = vadd.f32 0.0, %v2167
        %v2169 = vpop.f32.mrb[0].mxu0
        %2170 = vmatprep.mubr.bf16.mxu0 0
        %2171 = vmatmul.mubr.bf16.gmra.mrb[0].mxu0 %v1948
        %v2172 = vpop.f32.mrb[0].mxu0
        %v2173 = vadd.f32 0.0, %v2172
        %v2174 = vpop.f32.mrb[0].mxu0
        %v2175 = vpop.f32.mrb[0].mxu0
        %v2176 = vadd.f32 0.0, %v2175
        %v2177 = vpop.f32.mrb[0].mxu0
        %2178 = vmatprep.mubr.bf16.mxu0 0
        %2179 = vmatmul.mubr.bf16.gmra.mrb[0].mxu0 %v1951
        %v2180 = vpop.f32.mrb[0].mxu0
        %v2181 = vadd.f32 0.0, %v2180
        %v2182 = vpop.f32.mrb[0].mxu0
        %v2183 = vpop.f32.mrb[0].mxu0
        %v2184 = vadd.f32 0.0, %v2183
        %v2185 = vpop.f32.mrb[0].mxu0
        %2186 = vmatprep.mubr.bf16.mxu0 0
        %2187 = vmatmul.mubr.bf16.gmra.mrb[0].mxu0 %v1954
        %v2188 = vpop.f32.mrb[0].mxu0
        %v2189 = vadd.f32 0.0, %v2188
        %v2190 = vpop.f32.mrb[0].mxu0
        %v2191 = vpop.f32.mrb[0].mxu0
        %v2192 = vadd.f32 0.0, %v2191
        %v2193 = vpop.f32.mrb[0].mxu0
        %2194 = vmatprep.mubr.bf16.mxu0 0
        %2195 = vmatmul.mubr.bf16.gmra.mrb[0].mxu0 %v1957
        %v2196 = vpop.f32.mrb[0].mxu0
        %v2197 = vadd.f32 0.0, %v2196
        %v2198 = vpop.f32.mrb[0].mxu0
        %v2199 = vpop.f32.mrb[0].mxu0
        %v2200 = vadd.f32 0.0, %v2199
        %v2201 = vpop.f32.mrb[0].mxu0
        %2202 = vmatprep.mubr.bf16.mxu0 0
        %2203 = vmatmul.mubr.bf16.gmra.mrb[0].mxu0 %v1960
        %v2204 = vpop.f32.mrb[0].mxu0
        %v2205 = vadd.f32 0.0, %v2204
        %v2206 = vpop.f32.mrb[0].mxu0
        %v2207 = vpop.f32.mrb[0].mxu0
        %v2208 = vadd.f32 0.0, %v2207
        %v2209 = vpop.f32.mrb[0].mxu0
        %2210 = vmatprep.mubr.bf16.mxu0 0
        %2211 = vmatmul.mubr.bf16.gmra.mrb[0].mxu0 %v1963
        %v2212 = vpop.f32.mrb[0].mxu0
        %v2213 = vadd.f32 0.0, %v2212
        %v2214 = vpop.f32.mrb[0].mxu0
        %v2215 = vpop.f32.mrb[0].mxu0
        %v2216 = vadd.f32 0.0, %v2215
        %v2217 = vpop.f32.mrb[0].mxu0
        %2218 = vmatprep.mubr.bf16.mxu0 0
        %2219 = vmatmul.mubr.bf16.gmra.mrb[0].mxu0 %v1966
        %v2220 = vpop.f32.mrb[0].mxu0
        %v2221 = vadd.f32 0.0, %v2220
        %v2222 = vpop.f32.mrb[0].mxu0
        %v2223 = vpop.f32.mrb[0].mxu0
        %v2224 = vadd.f32 0.0, %v2223
        %v2225 = vpop.f32.mrb[0].mxu0
        %2226 = vmatprep.mubr.bf16.mxu0 0
        %2227 = vmatmul.mubr.bf16.gmra.mrb[0].mxu0 %v1969
        %v2228 = vpop.f32.mrb[0].mxu0
        %v2229 = vadd.f32 0.0, %v2228
        %v2230 = vpop.f32.mrb[0].mxu0
        %v2231 = vpop.f32.mrb[0].mxu0
        %v2232 = vadd.f32 0.0, %v2231
        %v2233 = vpop.f32.mrb[0].mxu0
        %2234 = vmatprep.mubr.bf16.mxu0 0
        %2235 = vmatmul.mubr.bf16.gmra.mrb[0].mxu0 %v1972
        %v2236 = vpop.f32.mrb[0].mxu0
        %v2237 = vadd.f32 0.0, %v2236
        %v2238 = vpop.f32.mrb[0].mxu0
        %v2239 = vpop.f32.mrb[0].mxu0
        %v2240 = vadd.f32 0.0, %v2239
        %v2241 = vpop.f32.mrb[0].mxu0
        %2242 = vmatprep.mubr.bf16.mxu0 0
        %2243 = vmatmul.mubr.bf16.gmra.mrb[0].mxu0 %v1975
        %v2244 = vpop.f32.mrb[0].mxu0
        %v2245 = vadd.f32 0.0, %v2244
        %v2246 = vpop.f32.mrb[0].mxu0
        %v2247 = vpop.f32.mrb[0].mxu0
        %v2248 = vadd.f32 0.0, %v2247
        %v2249 = vpop.f32.mrb[0].mxu0
        %2250 = vmatprep.mubr.bf16.mxu0 0
        %2251 = vmatmul.mubr.bf16.gmra.mrb[0].mxu0 %v1978
        %v2252 = vpop.f32.mrb[0].mxu0
        %v2253 = vadd.f32 0.0, %v2252
        %v2254 = vpop.f32.mrb[0].mxu0
        %v2255 = vpop.f32.mrb[0].mxu0
        %v2256 = vadd.f32 0.0, %v2255
        %v2257 = vpop.f32.mrb[0].mxu0
        %2258 = vmatprep.mubr.bf16.mxu0 0
        %2259 = vmatmul.mubr.bf16.gmra.mrb[0].mxu0 %v1981
        %v2260 = vpop.f32.mrb[0].mxu0
        %v2261 = vadd.f32 0.0, %v2260
        %v2262 = vpop.f32.mrb[0].mxu0
        %v2263 = vpop.f32.mrb[0].mxu0
        %v2264 = vadd.f32 0.0, %v2263
        %v2265 = vpop.f32.mrb[0].mxu0
        %2266 = vmatprep.mubr.bf16.mxu0 0
        %2267 = vmatmul.mubr.bf16.gmra.mrb[0].mxu0 %v1984
        %v2268 = vpop.f32.mrb[0].mxu0
        %v2269 = vadd.f32 0.0, %v2268
        %v2270 = vpop.f32.mrb[0].mxu0
        %v2271 = vpop.f32.mrb[0].mxu0
        %v2272 = vadd.f32 0.0, %v2271
        %v2273 = vpop.f32.mrb[0].mxu0
        %2274 = vmatprep.mubr.bf16.mxu0 0
        %2275 = vmatmul.mubr.bf16.gmra.mrb[0].mxu0 %v1987
        %v2276 = vpop.f32.mrb[0].mxu0
        %v2277 = vadd.f32 0.0, %v2276
        %v2278 = vpop.f32.mrb[0].mxu0
        %v2279 = vpop.f32.mrb[0].mxu0
        %v2280 = vadd.f32 0.0, %v2279
        %v2281 = vpop.f32.mrb[0].mxu0
        %2282 = vmatprep.mubr.bf16.mxu0 0
        %2283 = vmatmul.mubr.bf16.gmra.mrb[0].mxu0 %v1990
        %v2284 = vpop.f32.mrb[0].mxu0
        %v2285 = vadd.f32 0.0, %v2284
        %v2286 = vpop.f32.mrb[0].mxu0
        %v2287 = vpop.f32.mrb[0].mxu0
        %v2288 = vadd.f32 0.0, %v2287
        %v2289 = vpop.f32.mrb[0].mxu0
        %2290 = vmatprep.mubr.bf16.mxu0 0
        %2291 = vmatmul.mubr.bf16.gmra.mrb[0].mxu0 %v1993
        %v2292 = vpop.f32.mrb[0].mxu0
        %v2293 = vadd.f32 0.0, %v2292
        %v2294 = vpop.f32.mrb[0].mxu0
        %v2295 = vpop.f32.mrb[0].mxu0
        %v2296 = vadd.f32 0.0, %v2295
        %v2297 = vpop.f32.mrb[0].mxu0
        %2298 = vmatprep.mubr.bf16.mxu0 0
        %2299 = vmatmul.mubr.bf16.gmra.mrb[0].mxu0 %v1996
        %v2300 = vpop.f32.mrb[0].mxu0
        %v2301 = vadd.f32 0.0, %v2300
        %v2302 = vpop.f32.mrb[0].mxu0
        %v2303 = vpop.f32.mrb[0].mxu0
        %v2304 = vadd.f32 0.0, %v2303
        %v2305 = vpop.f32.mrb[0].mxu0
        %2306 = vmatprep.mubr.bf16.mxu0 0
        %2307 = vmatmul.mubr.bf16.gmra.mrb[0].mxu0 %v1999
        %v2308 = vpop.f32.mrb[0].mxu0
        %v2309 = vadd.f32 0.0, %v2308
        %v2310 = vpop.f32.mrb[0].mxu0
        %v2311 = vpop.f32.mrb[0].mxu0
        %v2312 = vadd.f32 0.0, %v2311
        %v2313 = vpop.f32.mrb[0].mxu0
        %2314 = vmatprep.mubr.bf16.mxu0 0
        %2315 = vmatmul.mubr.bf16.gmra.mrb[0].mxu0 %v2002
        %v2316 = vpop.f32.mrb[0].mxu0
        %v2317 = vadd.f32 0.0, %v2316
        %v2318 = vpop.f32.mrb[0].mxu0
        %v2319 = vpop.f32.mrb[0].mxu0
        %v2320 = vadd.f32 0.0, %v2319
        %v2321 = vpop.f32.mrb[0].mxu0
        %2322 = vmatprep.mubr.bf16.mxu0 0
        %2323 = vmatmul.mubr.bf16.gmra.mrb[0].mxu0 %v2005
        %v2324 = vpop.f32.mrb[0].mxu0
        %v2325 = vadd.f32 0.0, %v2324
        %v2326 = vpop.f32.mrb[0].mxu0
        %v2327 = vpop.f32.mrb[0].mxu0
        %v2328 = vadd.f32 0.0, %v2327
        %v2329 = vpop.f32.mrb[0].mxu0
        %2330 = vdwg.mxu0
        %v2331 = vpack.c.bf16 %v2048, %v2045
        %v2332 = vpack.c.bf16 %v2080, %v2077
        %v2333 = vpack.c.bf16 %v2112, %v2109
        %v2334 = vpack.c.bf16 %v2144, %v2141
        %v2335 = vpack.c.bf16 %v2176, %v2173
        %v2336 = vpack.c.bf16 %v2208, %v2205
        %v2337 = vpack.c.bf16 %v2240, %v2237
        %v2338 = vpack.c.bf16 %v2272, %v2269
        %v2339 = vpack.c.bf16 %v2304, %v2301
        %v2340 = vpack.c.bf16 %v2056, %v2053
        %v2341 = vpack.c.bf16 %v2088, %v2085
        %v2342 = vpack.c.bf16 %v2120, %v2117
        %v2343 = vpack.c.bf16 %v2152, %v2149
        %v2344 = vpack.c.bf16 %v2184, %v2181
        %v2345 = vpack.c.bf16 %v2216, %v2213
        %v2346 = vpack.c.bf16 %v2248, %v2245
        %v2347 = vpack.c.bf16 %v2280, %v2277
        %v2348 = vpack.c.bf16 %v2312, %v2309
        %v2349 = vpack.c.bf16 %v2064, %v2061
        %v2350 = vpack.c.bf16 %v2096, %v2093
        %v2351 = vpack.c.bf16 %v2128, %v2125
        %v2352 = vpack.c.bf16 %v2160, %v2157
        %v2353 = vpack.c.bf16 %v2192, %v2189
        %v2354 = vpack.c.bf16 %v2224, %v2221
        %v2355 = vpack.c.bf16 %v2256, %v2253
        %v2356 = vpack.c.bf16 %v2288, %v2285
        %v2357 = vpack.c.bf16 %v2320, %v2317
        %v2358 = vpack.c.bf16 %v2072, %v2069
        %v2359 = vpack.c.bf16 %v2104, %v2101
        %v2360 = vpack.c.bf16 %v2136, %v2133
        %v2361 = vpack.c.bf16 %v2168, %v2165
        %v2362 = vpack.c.bf16 %v2200, %v2197
        %v2363 = vpack.c.bf16 %v2232, %v2229
        %v2364 = vpack.c.bf16 %v2264, %v2261
        %v2365 = vpack.c.bf16 %v2296, %v2293
        %v2366 = vpack.c.bf16 %v2328, %v2325
        %v2367 = vld [vmem:[%s4] sm:$0xf]
        %v2368 = vld [vmem:[%s4 + $0x4] sm:$0xf]
        %v2369 = vld [vmem:[%s4 + $0x8] sm:$0xf]
        %v2370 = vld [vmem:[%s4 + $0xc] sm:$0xf]
        %v2371 = vld [vmem:[%s4 + $0x10] sm:$0xf]
        %v2372 = vld [vmem:[%s4 + $0x14] sm:$0xf]
        %v2373 = vld [vmem:[%s4 + $0x18] sm:$0xf]
        %v2374 = vld [vmem:[%s4 + $0x1c] sm:$0xf]
        %v2375 = vld [vmem:[%s4 + $0x20] sm:$0xf]
        %v2376 = vld [vmem:[%s4 + $0x24] sm:$0xf]
        %v2377 = vld [vmem:[%s4 + $0x28] sm:$0xf]
        %v2378 = vld [vmem:[%s4 + $0x2c] sm:$0xf]
        %v2379 = vld [vmem:[%s4 + $0x30] sm:$0xf]
        %v2380 = vld [vmem:[%s4 + $0x34] sm:$0xf]
        %v2381 = vld [vmem:[%s4 + $0x38] sm:$0xf]
        %v2382 = vld [vmem:[%s4 + $0x3c] sm:$0xf]
        %v2383 = vld [vmem:[%s4 + $0x40] sm:$0xf]
        %v2384 = vld [vmem:[%s4 + $0x44] sm:$0xf]
        %v2385 = vld [vmem:[%s4 + $0x48] sm:$0xf]
        %v2386 = vld [vmem:[%s4 + $0x4c] sm:$0xf]
        %v2387 = vld [vmem:[%s4 + $0x50] sm:$0xf]
        %v2388 = vld [vmem:[%s4 + $0x54] sm:$0xf]
        %v2389 = vld [vmem:[%s4 + $0x58] sm:$0xf]
        %v2390 = vld [vmem:[%s4 + $0x5c] sm:$0xf]
        %v2391 = vld [vmem:[%s4 + $0x60] sm:$0xf]
        %v2392 = vld [vmem:[%s4 + $0x64] sm:$0xf]
        %v2393 = vld [vmem:[%s4 + $0x68] sm:$0xf]
        %v2394 = vld [vmem:[%s4 + $0x6c] sm:$0xf]
        %v2395 = vld [vmem:[%s4 + $0x70] sm:$0xf]
        %v2396 = vld [vmem:[%s4 + $0x74] sm:$0xf]
        %v2397 = vld [vmem:[%s4 + $0x78] sm:$0xf]
        %v2398 = vld [vmem:[%s4 + $0x7c] sm:$0xf]
        %v2399 = vld [vmem:[%s4 + $0x80] sm:$0xf]
        %v2400 = vld [vmem:[%s4 + $0x84] sm:$0xf]
        %v2401 = vld [vmem:[%s4 + $0x88] sm:$0xf]
        %v2402 = vld [vmem:[%s4 + $0x8c] sm:$0xf]
        %v2403 = vld [vmem:[%s4 + $0x90] sm:$0xf]
        %v2404 = vld [vmem:[%s4 + $0x94] sm:$0xf]
        %v2405 = vld [vmem:[%s4 + $0x98] sm:$0xf]
        %v2406 = vld [vmem:[%s4 + $0x9c] sm:$0xf]
        %v2407 = vld [vmem:[%s4 + $0xa0] sm:$0xf]
        %v2408 = vld [vmem:[%s4 + $0xa4] sm:$0xf]
        %v2409 = vld [vmem:[%s4 + $0xa8] sm:$0xf]
        %v2410 = vld [vmem:[%s4 + $0xac] sm:$0xf]
        %v2411 = vld [vmem:[%s4 + $0xb0] sm:$0xf]
        %v2412 = vld [vmem:[%s4 + $0xb4] sm:$0xf]
        %v2413 = vld [vmem:[%s4 + $0xb8] sm:$0xf]
        %v2414 = vld [vmem:[%s4 + $0xbc] sm:$0xf]
        %v2415 = vld [vmem:[%s4 + $0xc0] sm:$0xf]
        %v2416 = vld [vmem:[%s4 + $0xc4] sm:$0xf]
        %v2417 = vld [vmem:[%s4 + $0xc8] sm:$0xf]
        %v2418 = vld [vmem:[%s4 + $0xcc] sm:$0xf]
        %v2419 = vld [vmem:[%s4 + $0xd0] sm:$0xf]
        %v2420 = vld [vmem:[%s4 + $0xd4] sm:$0xf]
        %v2421 = vld [vmem:[%s4 + $0xd8] sm:$0xf]
        %v2422 = vld [vmem:[%s4 + $0xdc] sm:$0xf]
        %v2423 = vld [vmem:[%s4 + $0xe0] sm:$0xf]
        %v2424 = vld [vmem:[%s4 + $0xe4] sm:$0xf]
        %v2425 = vld [vmem:[%s4 + $0xe8] sm:$0xf]
        %v2426 = vld [vmem:[%s4 + $0xec] sm:$0xf]
        %v2427 = vld [vmem:[%s4 + $0xf0] sm:$0xf]
        %v2428 = vld [vmem:[%s4 + $0xf4] sm:$0xf]
        %v2429 = vld [vmem:[%s4 + $0xf8] sm:$0xf]
        %v2430 = vld [vmem:[%s4 + $0xfc] sm:$0xf]
        %v2431 = vld [vmem:[%s4 + $0x100] sm:$0xf]
        %v2432 = vld [vmem:[%s4 + $0x104] sm:$0xf]
        %v2433 = vld [vmem:[%s4 + $0x108] sm:$0xf]
        %v2434 = vld [vmem:[%s4 + $0x10c] sm:$0xf]
        %v2435 = vld [vmem:[%s4 + $0x110] sm:$0xf]
        %v2436 = vld [vmem:[%s4 + $0x114] sm:$0xf]
        %v2437 = vld [vmem:[%s4 + $0x118] sm:$0xf]
        %v2438 = vld [vmem:[%s4 + $0x11c] sm:$0xf]
        %v2439 = vld [vmem:[%s4 + $0x120] sm:$0xf]
        %v2440 = vld [vmem:[%s4 + $0x124] sm:$0xf]
        %v2441 = vld [vmem:[%s4 + $0x128] sm:$0xf]
        %v2442 = vld [vmem:[%s4 + $0x12c] sm:$0xf]
        %v2443 = vld [vmem:[%s4 + $0x130] sm:$0xf]
        %v2444 = vld [vmem:[%s4 + $0x134] sm:$0xf]
        %v2445 = vld [vmem:[%s4 + $0x138] sm:$0xf]
        %v2446 = vld [vmem:[%s4 + $0x13c] sm:$0xf]
        %v2447 = vld [vmem:[%s4 + $0x140] sm:$0xf]
        %v2448 = vld [vmem:[%s4 + $0x144] sm:$0xf]
        %v2449 = vld [vmem:[%s4 + $0x148] sm:$0xf]
        %v2450 = vld [vmem:[%s4 + $0x14c] sm:$0xf]
        %v2451 = vld [vmem:[%s4 + $0x150] sm:$0xf]
        %v2452 = vld [vmem:[%s4 + $0x154] sm:$0xf]
        %v2453 = vld [vmem:[%s4 + $0x158] sm:$0xf]
        %v2454 = vld [vmem:[%s4 + $0x15c] sm:$0xf]
        %v2455 = vld [vmem:[%s4 + $0x160] sm:$0xf]
        %v2456 = vld [vmem:[%s4 + $0x164] sm:$0xf]
        %v2457 = vld [vmem:[%s4 + $0x168] sm:$0xf]
        %v2458 = vld [vmem:[%s4 + $0x16c] sm:$0xf]
        %v2459 = vld [vmem:[%s4 + $0x170] sm:$0xf]
        %v2460 = vld [vmem:[%s4 + $0x174] sm:$0xf]
        %v2461 = vld [vmem:[%s4 + $0x178] sm:$0xf]
        %v2462 = vld [vmem:[%s4 + $0x17c] sm:$0xf]
        %v2463 = vld [vmem:[%s4 + $0x180] sm:$0xf]
        %v2464 = vld [vmem:[%s4 + $0x184] sm:$0xf]
        %v2465 = vld [vmem:[%s4 + $0x188] sm:$0xf]
        %v2466 = vld [vmem:[%s4 + $0x18c] sm:$0xf]
        %v2467 = vld [vmem:[%s4 + $0x190] sm:$0xf]
        %v2468 = vld [vmem:[%s4 + $0x194] sm:$0xf]
        %v2469 = vld [vmem:[%s4 + $0x198] sm:$0xf]
        %v2470 = vld [vmem:[%s4 + $0x19c] sm:$0xf]
        %v2471 = vld [vmem:[%s4 + $0x1a0] sm:$0xf]
        %v2472 = vld [vmem:[%s4 + $0x1a4] sm:$0xf]
        %v2473 = vld [vmem:[%s4 + $0x1a8] sm:$0xf]
        %v2474 = vld [vmem:[%s4 + $0x1ac] sm:$0xf]
        %v2475 = vld [vmem:[%s4 + $0x1b0] sm:$0xf]
        %v2476 = vld [vmem:[%s4 + $0x1b4] sm:$0xf]
        %v2477 = vld [vmem:[%s4 + $0x1b8] sm:$0xf]
        %v2478 = vld [vmem:[%s4 + $0x1bc] sm:$0xf]
        %v2479 = vld [vmem:[%s4 + $0x1c0] sm:$0xf]
        %v2480 = vld [vmem:[%s4 + $0x1c4] sm:$0xf]
        %v2481 = vld [vmem:[%s4 + $0x1c8] sm:$0xf]
        %v2482 = vld [vmem:[%s4 + $0x1cc] sm:$0xf]
        %v2483 = vld [vmem:[%s4 + $0x1d0] sm:$0xf]
        %v2484 = vld [vmem:[%s4 + $0x1d4] sm:$0xf]
        %v2485 = vld [vmem:[%s4 + $0x1d8] sm:$0xf]
        %v2486 = vld [vmem:[%s4 + $0x1dc] sm:$0xf]
        %v2487 = vld [vmem:[%s4 + $0x1e0] sm:$0xf]
        %v2488 = vld [vmem:[%s4 + $0x1e4] sm:$0xf]
        %v2489 = vld [vmem:[%s4 + $0x1e8] sm:$0xf]
        %v2490 = vld [vmem:[%s4 + $0x1ec] sm:$0xf]
        %v2491 = vld [vmem:[%s4 + $0x1f0] sm:$0xf]
        %v2492 = vld [vmem:[%s4 + $0x1f4] sm:$0xf]
        %v2493 = vld [vmem:[%s4 + $0x1f8] sm:$0xf]
        %v2494 = vld [vmem:[%s4 + $0x1fc] sm:$0xf]
        %v2495 = vld [vmem:[%s4 + $0x200] sm:$0xf]
        %v2496 = vld [vmem:[%s4 + $0x204] sm:$0xf]
        %v2497 = vld [vmem:[%s4 + $0x208] sm:$0xf]
        %v2498 = vld [vmem:[%s4 + $0x20c] sm:$0xf]
        %v2499 = vld [vmem:[%s4 + $0x210] sm:$0xf]
        %v2500 = vld [vmem:[%s4 + $0x214] sm:$0xf]
        %v2501 = vld [vmem:[%s4 + $0x218] sm:$0xf]
        %v2502 = vld [vmem:[%s4 + $0x21c] sm:$0xf]
        %v2503 = vld [vmem:[%s4 + $0x220] sm:$0xf]
        %v2504 = vld [vmem:[%s4 + $0x224] sm:$0xf]
        %v2505 = vld [vmem:[%s4 + $0x228] sm:$0xf]
        %v2506 = vld [vmem:[%s4 + $0x22c] sm:$0xf]
        %v2507 = vld [vmem:[%s4 + $0x230] sm:$0xf]
        %v2508 = vld [vmem:[%s4 + $0x234] sm:$0xf]
        %v2509 = vld [vmem:[%s4 + $0x238] sm:$0xf]
        %v2510 = vld [vmem:[%s4 + $0x23c] sm:$0xf]
        %v2511 = vld [vmem:[%s5] sm:$0x1]
        %v2513 = vlaneseq
        %v2514 = vshrl.u32 %v2513, 7
        %v2515 = vsub.s32 0, %v2514
        %v2516 = vrot.slane %v2511, %v2515
        %v2662 = vunpack.c.l.b16 %v2367
        %v2663 = vunpack.c.l.b16 %v2368
        %v2664 = vunpack.c.l.b16 %v2369
        %v2665 = vunpack.c.l.b16 %v2370
        %v2666 = vunpack.c.l.b16 %v2371
        %v2667 = vunpack.c.l.b16 %v2372
        %v2668 = vunpack.c.l.b16 %v2373
        %v2669 = vunpack.c.l.b16 %v2374
        %v2670 = vunpack.c.l.b16 %v2375
        %v2671 = vunpack.c.l.b16 %v2376
        %v2672 = vunpack.c.l.b16 %v2377
        %v2673 = vunpack.c.l.b16 %v2378
        %v2674 = vunpack.c.l.b16 %v2379
        %v2675 = vunpack.c.l.b16 %v2380
        %v2676 = vunpack.c.l.b16 %v2381
        %v2677 = vunpack.c.l.b16 %v2382
        %v2678 = vunpack.c.l.b16 %v2383
        %v2679 = vunpack.c.l.b16 %v2384
        %v2680 = vunpack.c.l.b16 %v2385
        %v2681 = vunpack.c.l.b16 %v2386
        %v2682 = vunpack.c.l.b16 %v2387
        %v2683 = vunpack.c.l.b16 %v2388
        %v2684 = vunpack.c.l.b16 %v2389
        %v2685 = vunpack.c.l.b16 %v2390
        %v2686 = vunpack.c.l.b16 %v2391
        %v2687 = vunpack.c.l.b16 %v2392
        %v2688 = vunpack.c.l.b16 %v2393
        %v2689 = vunpack.c.l.b16 %v2394
        %v2690 = vunpack.c.l.b16 %v2395
        %v2691 = vunpack.c.l.b16 %v2396
        %v2692 = vunpack.c.l.b16 %v2397
        %v2693 = vunpack.c.l.b16 %v2398
        %v2694 = vunpack.c.l.b16 %v2399
        %v2695 = vunpack.c.l.b16 %v2400
        %v2696 = vunpack.c.l.b16 %v2401
        %v2697 = vunpack.c.l.b16 %v2402
        %v2698 = vunpack.c.l.b16 %v2403
        %v2699 = vunpack.c.l.b16 %v2404
        %v2700 = vunpack.c.l.b16 %v2405
        %v2701 = vunpack.c.l.b16 %v2406
        %v2702 = vunpack.c.l.b16 %v2407
        %v2703 = vunpack.c.l.b16 %v2408
        %v2704 = vunpack.c.l.b16 %v2409
        %v2705 = vunpack.c.l.b16 %v2410
        %v2706 = vunpack.c.l.b16 %v2411
        %v2707 = vunpack.c.l.b16 %v2412
        %v2708 = vunpack.c.l.b16 %v2413
        %v2709 = vunpack.c.l.b16 %v2414
        %v2710 = vunpack.c.l.b16 %v2415
        %v2711 = vunpack.c.l.b16 %v2416
        %v2712 = vunpack.c.l.b16 %v2417
        %v2713 = vunpack.c.l.b16 %v2418
        %v2714 = vunpack.c.l.b16 %v2419
        %v2715 = vunpack.c.l.b16 %v2420
        %v2716 = vunpack.c.l.b16 %v2421
        %v2717 = vunpack.c.l.b16 %v2422
        %v2718 = vunpack.c.l.b16 %v2423
        %v2719 = vunpack.c.l.b16 %v2424
        %v2720 = vunpack.c.l.b16 %v2425
        %v2721 = vunpack.c.l.b16 %v2426
        %v2722 = vunpack.c.l.b16 %v2427
        %v2723 = vunpack.c.l.b16 %v2428
        %v2724 = vunpack.c.l.b16 %v2429
        %v2725 = vunpack.c.l.b16 %v2430
        %v2726 = vunpack.c.l.b16 %v2431
        %v2727 = vunpack.c.l.b16 %v2432
        %v2728 = vunpack.c.l.b16 %v2433
        %v2729 = vunpack.c.l.b16 %v2434
        %v2730 = vunpack.c.l.b16 %v2435
        %v2731 = vunpack.c.l.b16 %v2436
        %v2732 = vunpack.c.l.b16 %v2437
        %v2733 = vunpack.c.l.b16 %v2438
        %v2734 = vunpack.c.l.b16 %v2439
        %v2735 = vunpack.c.l.b16 %v2440
        %v2736 = vunpack.c.l.b16 %v2441
        %v2737 = vunpack.c.l.b16 %v2442
        %v2738 = vunpack.c.l.b16 %v2443
        %v2739 = vunpack.c.l.b16 %v2444
        %v2740 = vunpack.c.l.b16 %v2445
        %v2741 = vunpack.c.l.b16 %v2446
        %v2742 = vunpack.c.l.b16 %v2447
        %v2743 = vunpack.c.l.b16 %v2448
        %v2744 = vunpack.c.l.b16 %v2449
        %v2745 = vunpack.c.l.b16 %v2450
        %v2746 = vunpack.c.l.b16 %v2451
        %v2747 = vunpack.c.l.b16 %v2452
        %v2748 = vunpack.c.l.b16 %v2453
        %v2749 = vunpack.c.l.b16 %v2454
        %v2750 = vunpack.c.l.b16 %v2455
        %v2751 = vunpack.c.l.b16 %v2456
        %v2752 = vunpack.c.l.b16 %v2457
        %v2753 = vunpack.c.l.b16 %v2458
        %v2754 = vunpack.c.l.b16 %v2459
        %v2755 = vunpack.c.l.b16 %v2460
        %v2756 = vunpack.c.l.b16 %v2461
        %v2757 = vunpack.c.l.b16 %v2462
        %v2758 = vunpack.c.l.b16 %v2463
        %v2759 = vunpack.c.l.b16 %v2464
        %v2760 = vunpack.c.l.b16 %v2465
        %v2761 = vunpack.c.l.b16 %v2466
        %v2762 = vunpack.c.l.b16 %v2467
        %v2763 = vunpack.c.l.b16 %v2468
        %v2764 = vunpack.c.l.b16 %v2469
        %v2765 = vunpack.c.l.b16 %v2470
        %v2766 = vunpack.c.l.b16 %v2471
        %v2767 = vunpack.c.l.b16 %v2472
        %v2768 = vunpack.c.l.b16 %v2473
        %v2769 = vunpack.c.l.b16 %v2474
        %v2770 = vunpack.c.l.b16 %v2475
        %v2771 = vunpack.c.l.b16 %v2476
        %v2772 = vunpack.c.l.b16 %v2477
        %v2773 = vunpack.c.l.b16 %v2478
        %v2774 = vunpack.c.l.b16 %v2479
        %v2775 = vunpack.c.l.b16 %v2480
        %v2776 = vunpack.c.l.b16 %v2481
        %v2777 = vunpack.c.l.b16 %v2482
        %v2778 = vunpack.c.l.b16 %v2483
        %v2779 = vunpack.c.l.b16 %v2484
        %v2780 = vunpack.c.l.b16 %v2485
        %v2781 = vunpack.c.l.b16 %v2486
        %v2782 = vunpack.c.l.b16 %v2487
        %v2783 = vunpack.c.l.b16 %v2488
        %v2784 = vunpack.c.l.b16 %v2489
        %v2785 = vunpack.c.l.b16 %v2490
        %v2786 = vunpack.c.l.b16 %v2491
        %v2787 = vunpack.c.l.b16 %v2492
        %v2788 = vunpack.c.l.b16 %v2493
        %v2789 = vunpack.c.l.b16 %v2494
        %v2790 = vunpack.c.l.b16 %v2495
        %v2791 = vunpack.c.l.b16 %v2496
        %v2792 = vunpack.c.l.b16 %v2497
        %v2793 = vunpack.c.l.b16 %v2498
        %v2794 = vunpack.c.l.b16 %v2499
        %v2795 = vunpack.c.l.b16 %v2500
        %v2796 = vunpack.c.l.b16 %v2501
        %v2797 = vunpack.c.l.b16 %v2502
        %v2798 = vunpack.c.l.b16 %v2503
        %v2799 = vunpack.c.l.b16 %v2504
        %v2800 = vunpack.c.l.b16 %v2505
        %v2801 = vunpack.c.l.b16 %v2506
        %v2802 = vunpack.c.l.b16 %v2507
        %v2803 = vunpack.c.l.b16 %v2508
        %v2804 = vunpack.c.l.b16 %v2509
        %v2805 = vunpack.c.l.b16 %v2510
        %v2806 = vpack.c.b16 %v2663, %v2662
        %v2807 = vpack.c.b16 %v2665, %v2664
        %v2808 = vpack.c.b16 %v2667, %v2666
        %v2809 = vpack.c.b16 %v2669, %v2668
        %v2810 = vpack.c.b16 %v2671, %v2670
        %v2811 = vpack.c.b16 %v2673, %v2672
        %v2812 = vpack.c.b16 %v2675, %v2674
        %v2813 = vpack.c.b16 %v2677, %v2676
        %v2814 = vpack.c.b16 %v2679, %v2678
        %v2815 = vpack.c.b16 %v2681, %v2680
        %v2816 = vpack.c.b16 %v2683, %v2682
        %v2817 = vpack.c.b16 %v2685, %v2684
        %v2818 = vpack.c.b16 %v2687, %v2686
        %v2819 = vpack.c.b16 %v2689, %v2688
        %v2820 = vpack.c.b16 %v2691, %v2690
        %v2821 = vpack.c.b16 %v2693, %v2692
        %v2822 = vpack.c.b16 %v2695, %v2694
        %v2823 = vpack.c.b16 %v2697, %v2696
        %v2824 = vpack.c.b16 %v2699, %v2698
        %v2825 = vpack.c.b16 %v2701, %v2700
        %v2826 = vpack.c.b16 %v2703, %v2702
        %v2827 = vpack.c.b16 %v2705, %v2704
        %v2828 = vpack.c.b16 %v2707, %v2706
        %v2829 = vpack.c.b16 %v2709, %v2708
        %v2830 = vpack.c.b16 %v2711, %v2710
        %v2831 = vpack.c.b16 %v2713, %v2712
        %v2832 = vpack.c.b16 %v2715, %v2714
        %v2833 = vpack.c.b16 %v2717, %v2716
        %v2834 = vpack.c.b16 %v2719, %v2718
        %v2835 = vpack.c.b16 %v2721, %v2720
        %v2836 = vpack.c.b16 %v2723, %v2722
        %v2837 = vpack.c.b16 %v2725, %v2724
        %v2838 = vpack.c.b16 %v2727, %v2726
        %v2839 = vpack.c.b16 %v2729, %v2728
        %v2840 = vpack.c.b16 %v2731, %v2730
        %v2841 = vpack.c.b16 %v2733, %v2732
        %v2842 = vpack.c.b16 %v2735, %v2734
        %v2843 = vpack.c.b16 %v2737, %v2736
        %v2844 = vpack.c.b16 %v2739, %v2738
        %v2845 = vpack.c.b16 %v2741, %v2740
        %v2846 = vpack.c.b16 %v2743, %v2742
        %v2847 = vpack.c.b16 %v2745, %v2744
        %v2848 = vpack.c.b16 %v2747, %v2746
        %v2849 = vpack.c.b16 %v2749, %v2748
        %v2850 = vpack.c.b16 %v2751, %v2750
        %v2851 = vpack.c.b16 %v2753, %v2752
        %v2852 = vpack.c.b16 %v2755, %v2754
        %v2853 = vpack.c.b16 %v2757, %v2756
        %v2854 = vpack.c.b16 %v2759, %v2758
        %v2855 = vpack.c.b16 %v2761, %v2760
        %v2856 = vpack.c.b16 %v2763, %v2762
        %v2857 = vpack.c.b16 %v2765, %v2764
        %v2858 = vpack.c.b16 %v2767, %v2766
        %v2859 = vpack.c.b16 %v2769, %v2768
        %v2860 = vpack.c.b16 %v2771, %v2770
        %v2861 = vpack.c.b16 %v2773, %v2772
        %v2862 = vpack.c.b16 %v2775, %v2774
        %v2863 = vpack.c.b16 %v2777, %v2776
        %v2864 = vpack.c.b16 %v2779, %v2778
        %v2865 = vpack.c.b16 %v2781, %v2780
        %v2866 = vpack.c.b16 %v2783, %v2782
        %v2867 = vpack.c.b16 %v2785, %v2784
        %v2868 = vpack.c.b16 %v2787, %v2786
        %v2869 = vpack.c.b16 %v2789, %v2788
        %v2870 = vpack.c.b16 %v2791, %v2790
        %v2871 = vpack.c.b16 %v2793, %v2792
        %v2872 = vpack.c.b16 %v2795, %v2794
        %v2873 = vpack.c.b16 %v2797, %v2796
        %v2874 = vpack.c.b16 %v2799, %v2798
        %v2875 = vpack.c.b16 %v2801, %v2800
        %v2876 = vpack.c.b16 %v2803, %v2802
        %v2877 = vpack.c.b16 %v2805, %v2804
        %2950 = vmatprep.subr.bf16.mxu0 0
        %2951 = vmatpush1.bf16.msra.mxu0 %v2806
        %2952 = vmatprep.subr.bf16.mxu0 0
        %2953 = vmatpush1.bf16.msra.mxu0 %v2807
        %2954 = vmatprep.subr.bf16.mxu0 0
        %2955 = vmatpush1.bf16.msra.mxu0 %v2808
        %2956 = vmatprep.subr.bf16.mxu0 0
        %2957 = vmatpush1.bf16.msra.mxu0 %v2809
        %2958 = vmatprep.subr.bf16.mxu0 0
        %2959 = vmatpush1.bf16.msra.mxu0 %v2810
        %2960 = vmatprep.subr.bf16.mxu0 0
        %2961 = vmatpush1.bf16.msra.mxu0 %v2811
        %2962 = vmatprep.subr.bf16.mxu0 0
        %2963 = vmatpush1.bf16.msra.mxu0 %v2812
        %2964 = vmatprep.subr.bf16.mxu0 0
        %2965 = vmatpush1.bf16.msra.mxu0 %v2813
        %2966 = vmatprep.subr.bf16.mxu0 0
        %2967 = vmatpush1.bf16.msra.mxu0 %v2814
        %2968 = vmatprep.subr.bf16.mxu0 0
        %2969 = vmatpush1.bf16.msra.mxu0 %v2815
        %2970 = vmatprep.subr.bf16.mxu0 0
        %2971 = vmatpush1.bf16.msra.mxu0 %v2816
        %2972 = vmatprep.subr.bf16.mxu0 0
        %2973 = vmatpush1.bf16.msra.mxu0 %v2817
        %2974 = vmatprep.subr.bf16.mxu0 0
        %2975 = vmatpush1.bf16.msra.mxu0 %v2818
        %2976 = vmatprep.subr.bf16.mxu0 0
        %2977 = vmatpush1.bf16.msra.mxu0 %v2819
        %2978 = vmatprep.subr.bf16.mxu0 0
        %2979 = vmatpush1.bf16.msra.mxu0 %v2820
        %2980 = vmatprep.subr.bf16.mxu0 0
        %2981 = vmatpush1.bf16.msra.mxu0 %v2821
        %2982 = vmatprep.mubr.bf16.mxu0 %v2332
        %2983 = vmatmul.mubr.bf16.gmra.mrb[0].mxu0 %v2331
        %v2984 = vpop.f32.mrb[0].mxu0
        %v2985 = vadd.f32 %v2516, %v2984
        %v2986 = vpop.f32.mrb[0].mxu0
        %v2987 = vpop.f32.mrb[0].mxu0
        %v2988 = vadd.f32 %v2516, %v2987
        %v2989 = vpop.f32.mrb[0].mxu0
        %2990 = vmatprep.mubr.bf16.mxu0 %v2341
        %2991 = vmatmul.mubr.bf16.gmra.mrb[0].mxu0 %v2340
        %v2992 = vpop.f32.mrb[0].mxu0
        %v2993 = vadd.f32 %v2516, %v2992
        %v2994 = vpop.f32.mrb[0].mxu0
        %v2995 = vpop.f32.mrb[0].mxu0
        %v2996 = vadd.f32 %v2516, %v2995
        %v2997 = vpop.f32.mrb[0].mxu0
        %2998 = vmatprep.mubr.bf16.mxu0 %v2350
        %2999 = vmatmul.mubr.bf16.gmra.mrb[0].mxu0 %v2349
        %v3000 = vpop.f32.mrb[0].mxu0
        %v3001 = vadd.f32 %v2516, %v3000
        %v3002 = vpop.f32.mrb[0].mxu0
        %v3003 = vpop.f32.mrb[0].mxu0
        %v3004 = vadd.f32 %v2516, %v3003
        %v3005 = vpop.f32.mrb[0].mxu0
        %3006 = vmatprep.mubr.bf16.mxu0 %v2359
        %3007 = vmatmul.mubr.bf16.gmra.mrb[0].mxu0 %v2358
        %v3008 = vpop.f32.mrb[0].mxu0
        %v3009 = vadd.f32 %v2516, %v3008
        %v3010 = vpop.f32.mrb[0].mxu0
        %v3011 = vpop.f32.mrb[0].mxu0
        %v3012 = vadd.f32 %v2516, %v3011
        %v3013 = vpop.f32.mrb[0].mxu0
        %3014 = vdwg.mxu0
        %3015 = vmatprep.subr.bf16.mxu0 0
        %3016 = vmatpush1.bf16.msra.mxu0 %v2822
        %3017 = vmatprep.subr.bf16.mxu0 0
        %3018 = vmatpush1.bf16.msra.mxu0 %v2823
        %3019 = vmatprep.subr.bf16.mxu0 0
        %3020 = vmatpush1.bf16.msra.mxu0 %v2824
        %3021 = vmatprep.subr.bf16.mxu0 0
        %3022 = vmatpush1.bf16.msra.mxu0 %v2825
        %3023 = vmatprep.subr.bf16.mxu0 0
        %3024 = vmatpush1.bf16.msra.mxu0 %v2826
        %3025 = vmatprep.subr.bf16.mxu0 0
        %3026 = vmatpush1.bf16.msra.mxu0 %v2827
        %3027 = vmatprep.subr.bf16.mxu0 0
        %3028 = vmatpush1.bf16.msra.mxu0 %v2828
        %3029 = vmatprep.subr.bf16.mxu0 0
        %3030 = vmatpush1.bf16.msra.mxu0 %v2829
        %3031 = vmatprep.subr.bf16.mxu0 0
        %3032 = vmatpush1.bf16.msra.mxu0 %v2830
        %3033 = vmatprep.subr.bf16.mxu0 0
        %3034 = vmatpush1.bf16.msra.mxu0 %v2831
        %3035 = vmatprep.subr.bf16.mxu0 0
        %3036 = vmatpush1.bf16.msra.mxu0 %v2832
        %3037 = vmatprep.subr.bf16.mxu0 0
        %3038 = vmatpush1.bf16.msra.mxu0 %v2833
        %3039 = vmatprep.subr.bf16.mxu0 0
        %3040 = vmatpush1.bf16.msra.mxu0 %v2834
        %3041 = vmatprep.subr.bf16.mxu0 0
        %3042 = vmatpush1.bf16.msra.mxu0 %v2835
        %3043 = vmatprep.subr.bf16.mxu0 0
        %3044 = vmatpush1.bf16.msra.mxu0 %v2836
        %3045 = vmatprep.subr.bf16.mxu0 0
        %3046 = vmatpush1.bf16.msra.mxu0 %v2837
        %3047 = vmatprep.mubr.bf16.mxu0 %v2334
        %3048 = vmatmul.mubr.bf16.gmra.mrb[0].mxu0 %v2333
        %v3049 = vpop.f32.mrb[0].mxu0
        %v3050 = vadd.f32 %v2985, %v3049
        %v3051 = vpop.f32.mrb[0].mxu0
        %v3052 = vpop.f32.mrb[0].mxu0
        %v3053 = vadd.f32 %v2988, %v3052
        %v3054 = vpop.f32.mrb[0].mxu0
        %3055 = vmatprep.mubr.bf16.mxu0 %v2343
        %3056 = vmatmul.mubr.bf16.gmra.mrb[0].mxu0 %v2342
        %v3057 = vpop.f32.mrb[0].mxu0
        %v3058 = vadd.f32 %v2993, %v3057
        %v3059 = vpop.f32.mrb[0].mxu0
        %v3060 = vpop.f32.mrb[0].mxu0
        %v3061 = vadd.f32 %v2996, %v3060
        %v3062 = vpop.f32.mrb[0].mxu0
        %3063 = vmatprep.mubr.bf16.mxu0 %v2352
        %3064 = vmatmul.mubr.bf16.gmra.mrb[0].mxu0 %v2351
        %v3065 = vpop.f32.mrb[0].mxu0
        %v3066 = vadd.f32 %v3001, %v3065
        %v3067 = vpop.f32.mrb[0].mxu0
        %v3068 = vpop.f32.mrb[0].mxu0
        %v3069 = vadd.f32 %v3004, %v3068
        %v3070 = vpop.f32.mrb[0].mxu0
        %3071 = vmatprep.mubr.bf16.mxu0 %v2361
        %3072 = vmatmul.mubr.bf16.gmra.mrb[0].mxu0 %v2360
        %v3073 = vpop.f32.mrb[0].mxu0
        %v3074 = vadd.f32 %v3009, %v3073
        %v3075 = vpop.f32.mrb[0].mxu0
        %v3076 = vpop.f32.mrb[0].mxu0
        %v3077 = vadd.f32 %v3012, %v3076
        %v3078 = vpop.f32.mrb[0].mxu0
        %3079 = vdwg.mxu0
        %3080 = vmatprep.subr.bf16.mxu0 0
        %3081 = vmatpush1.bf16.msra.mxu0 %v2838
        %3082 = vmatprep.subr.bf16.mxu0 0
        %3083 = vmatpush1.bf16.msra.mxu0 %v2839
        %3084 = vmatprep.subr.bf16.mxu0 0
        %3085 = vmatpush1.bf16.msra.mxu0 %v2840
        %3086 = vmatprep.subr.bf16.mxu0 0
        %3087 = vmatpush1.bf16.msra.mxu0 %v2841
        %3088 = vmatprep.subr.bf16.mxu0 0
        %3089 = vmatpush1.bf16.msra.mxu0 %v2842
        %3090 = vmatprep.subr.bf16.mxu0 0
        %3091 = vmatpush1.bf16.msra.mxu0 %v2843
        %3092 = vmatprep.subr.bf16.mxu0 0
        %3093 = vmatpush1.bf16.msra.mxu0 %v2844
        %3094 = vmatprep.subr.bf16.mxu0 0
        %3095 = vmatpush1.bf16.msra.mxu0 %v2845
        %3096 = vmatprep.subr.bf16.mxu0 0
        %3097 = vmatpush1.bf16.msra.mxu0 %v2846
        %3098 = vmatprep.subr.bf16.mxu0 0
        %3099 = vmatpush1.bf16.msra.mxu0 %v2847
        %3100 = vmatprep.subr.bf16.mxu0 0
        %3101 = vmatpush1.bf16.msra.mxu0 %v2848
        %3102 = vmatprep.subr.bf16.mxu0 0
        %3103 = vmatpush1.bf16.msra.mxu0 %v2849
        %3104 = vmatprep.subr.bf16.mxu0 0
        %3105 = vmatpush1.bf16.msra.mxu0 %v2850
        %3106 = vmatprep.subr.bf16.mxu0 0
        %3107 = vmatpush1.bf16.msra.mxu0 %v2851
        %3108 = vmatprep.subr.bf16.mxu0 0
        %3109 = vmatpush1.bf16.msra.mxu0 %v2852
        %3110 = vmatprep.subr.bf16.mxu0 0
        %3111 = vmatpush1.bf16.msra.mxu0 %v2853
        %3112 = vmatprep.mubr.bf16.mxu0 %v2336
        %3113 = vmatmul.mubr.bf16.gmra.mrb[0].mxu0 %v2335
        %v3114 = vpop.f32.mrb[0].mxu0
        %v3115 = vadd.f32 %v3050, %v3114
        %v3116 = vpop.f32.mrb[0].mxu0
        %v3117 = vpop.f32.mrb[0].mxu0
        %v3118 = vadd.f32 %v3053, %v3117
        %v3119 = vpop.f32.mrb[0].mxu0
        %3120 = vmatprep.mubr.bf16.mxu0 %v2345
        %3121 = vmatmul.mubr.bf16.gmra.mrb[0].mxu0 %v2344
        %v3122 = vpop.f32.mrb[0].mxu0
        %v3123 = vadd.f32 %v3058, %v3122
        %v3124 = vpop.f32.mrb[0].mxu0
        %v3125 = vpop.f32.mrb[0].mxu0
        %v3126 = vadd.f32 %v3061, %v3125
        %v3127 = vpop.f32.mrb[0].mxu0
        %3128 = vmatprep.mubr.bf16.mxu0 %v2354
        %3129 = vmatmul.mubr.bf16.gmra.mrb[0].mxu0 %v2353
        %v3130 = vpop.f32.mrb[0].mxu0
        %v3131 = vadd.f32 %v3066, %v3130
        %v3132 = vpop.f32.mrb[0].mxu0
        %v3133 = vpop.f32.mrb[0].mxu0
        %v3134 = vadd.f32 %v3069, %v3133
        %v3135 = vpop.f32.mrb[0].mxu0
        %3136 = vmatprep.mubr.bf16.mxu0 %v2363
        %3137 = vmatmul.mubr.bf16.gmra.mrb[0].mxu0 %v2362
        %v3138 = vpop.f32.mrb[0].mxu0
        %v3139 = vadd.f32 %v3074, %v3138
        %v3140 = vpop.f32.mrb[0].mxu0
        %v3141 = vpop.f32.mrb[0].mxu0
        %v3142 = vadd.f32 %v3077, %v3141
        %v3143 = vpop.f32.mrb[0].mxu0
        %3144 = vdwg.mxu0
        %3145 = vmatprep.subr.bf16.mxu0 0
        %3146 = vmatpush1.bf16.msra.mxu0 %v2854
        %3147 = vmatprep.subr.bf16.mxu0 0
        %3148 = vmatpush1.bf16.msra.mxu0 %v2855
        %3149 = vmatprep.subr.bf16.mxu0 0
        %3150 = vmatpush1.bf16.msra.mxu0 %v2856
        %3151 = vmatprep.subr.bf16.mxu0 0
        %3152 = vmatpush1.bf16.msra.mxu0 %v2857
        %3153 = vmatprep.subr.bf16.mxu0 0
        %3154 = vmatpush1.bf16.msra.mxu0 %v2858
        %3155 = vmatprep.subr.bf16.mxu0 0
        %3156 = vmatpush1.bf16.msra.mxu0 %v2859
        %3157 = vmatprep.subr.bf16.mxu0 0
        %3158 = vmatpush1.bf16.msra.mxu0 %v2860
        %3159 = vmatprep.subr.bf16.mxu0 0
        %3160 = vmatpush1.bf16.msra.mxu0 %v2861
        %3161 = vmatprep.subr.bf16.mxu0 0
        %3162 = vmatpush1.bf16.msra.mxu0 %v2862
        %3163 = vmatprep.subr.bf16.mxu0 0
        %3164 = vmatpush1.bf16.msra.mxu0 %v2863
        %3165 = vmatprep.subr.bf16.mxu0 0
        %3166 = vmatpush1.bf16.msra.mxu0 %v2864
        %3167 = vmatprep.subr.bf16.mxu0 0
        %3168 = vmatpush1.bf16.msra.mxu0 %v2865
        %3169 = vmatprep.subr.bf16.mxu0 0
        %3170 = vmatpush1.bf16.msra.mxu0 %v2866
        %3171 = vmatprep.subr.bf16.mxu0 0
        %3172 = vmatpush1.bf16.msra.mxu0 %v2867
        %3173 = vmatprep.subr.bf16.mxu0 0
        %3174 = vmatpush1.bf16.msra.mxu0 %v2868
        %3175 = vmatprep.subr.bf16.mxu0 0
        %3176 = vmatpush1.bf16.msra.mxu0 %v2869
        %3177 = vmatprep.mubr.bf16.mxu0 %v2338
        %3178 = vmatmul.mubr.bf16.gmra.mrb[0].mxu0 %v2337
        %v3179 = vpop.f32.mrb[0].mxu0
        %v3180 = vadd.f32 %v3115, %v3179
        %v3181 = vpop.f32.mrb[0].mxu0
        %v3182 = vpop.f32.mrb[0].mxu0
        %v3183 = vadd.f32 %v3118, %v3182
        %v3184 = vpop.f32.mrb[0].mxu0
        %3185 = vmatprep.mubr.bf16.mxu0 %v2347
        %3186 = vmatmul.mubr.bf16.gmra.mrb[0].mxu0 %v2346
        %v3187 = vpop.f32.mrb[0].mxu0
        %v3188 = vadd.f32 %v3123, %v3187
        %v3189 = vpop.f32.mrb[0].mxu0
        %v3190 = vpop.f32.mrb[0].mxu0
        %v3191 = vadd.f32 %v3126, %v3190
        %v3192 = vpop.f32.mrb[0].mxu0
        %3193 = vmatprep.mubr.bf16.mxu0 %v2356
        %3194 = vmatmul.mubr.bf16.gmra.mrb[0].mxu0 %v2355
        %v3195 = vpop.f32.mrb[0].mxu0
        %v3196 = vadd.f32 %v3131, %v3195
        %v3197 = vpop.f32.mrb[0].mxu0
        %v3198 = vpop.f32.mrb[0].mxu0
        %v3199 = vadd.f32 %v3134, %v3198
        %v3200 = vpop.f32.mrb[0].mxu0
        %3201 = vmatprep.mubr.bf16.mxu0 %v2365
        %3202 = vmatmul.mubr.bf16.gmra.mrb[0].mxu0 %v2364
        %v3203 = vpop.f32.mrb[0].mxu0
        %v3204 = vadd.f32 %v3139, %v3203
        %v3205 = vpop.f32.mrb[0].mxu0
        %v3206 = vpop.f32.mrb[0].mxu0
        %v3207 = vadd.f32 %v3142, %v3206
        %v3208 = vpop.f32.mrb[0].mxu0
        %3209 = vdwg.mxu0
        %3210 = vmatprep.subr.bf16.mxu0 0
        %3211 = vmatpush1.bf16.msra.mxu0 %v2870
        %3212 = vmatprep.subr.bf16.mxu0 0
        %3213 = vmatpush1.bf16.msra.mxu0 %v2871
        %3214 = vmatprep.subr.bf16.mxu0 0
        %3215 = vmatpush1.bf16.msra.mxu0 %v2872
        %3216 = vmatprep.subr.bf16.mxu0 0
        %3217 = vmatpush1.bf16.msra.mxu0 %v2873
        %3218 = vmatprep.subr.bf16.mxu0 0
        %3219 = vmatpush1.bf16.msra.mxu0 %v2874
        %3220 = vmatprep.subr.bf16.mxu0 0
        %3221 = vmatpush1.bf16.msra.mxu0 %v2875
        %3222 = vmatprep.subr.bf16.mxu0 0
        %3223 = vmatpush1.bf16.msra.mxu0 %v2876
        %3224 = vmatprep.subr.bf16.mxu0 0
        %3225 = vmatpush1.bf16.msra.mxu0 %v2877
        %3226 = vmatprep.subr.bf16.mxu0 0
        %3227 = vmatpush1.bf16.msra.mxu0 0
        %3228 = vmatprep.subr.bf16.mxu0 0
        %3229 = vmatpush1.bf16.msra.mxu0 0
        %3230 = vmatprep.subr.bf16.mxu0 0
        %3231 = vmatpush1.bf16.msra.mxu0 0
        %3232 = vmatprep.subr.bf16.mxu0 0
        %3233 = vmatpush1.bf16.msra.mxu0 0
        %3234 = vmatprep.subr.bf16.mxu0 0
        %3235 = vmatpush1.bf16.msra.mxu0 0
        %3236 = vmatprep.subr.bf16.mxu0 0
        %3237 = vmatpush1.bf16.msra.mxu0 0
        %3238 = vmatprep.subr.bf16.mxu0 0
        %3239 = vmatpush1.bf16.msra.mxu0 0
        %3240 = vmatprep.subr.bf16.mxu0 0
        %3241 = vmatpush1.bf16.msra.mxu0 0
        %3242 = vmatprep.mubr.bf16.mxu0 0
        %3243 = vmatmul.mubr.bf16.gmra.mrb[0].mxu0 %v2339
        %v3244 = vpop.f32.mrb[0].mxu0
        %v3245 = vadd.f32 %v3180, %v3244
        %v3246 = vpop.f32.mrb[0].mxu0
        %v3247 = vpop.f32.mrb[0].mxu0
        %v3248 = vadd.f32 %v3183, %v3247
        %v3249 = vpop.f32.mrb[0].mxu0
        %3250 = vmatprep.mubr.bf16.mxu0 0
        %3251 = vmatmul.mubr.bf16.gmra.mrb[0].mxu0 %v2348
        %v3252 = vpop.f32.mrb[0].mxu0
        %v3253 = vadd.f32 %v3188, %v3252
        %v3254 = vpop.f32.mrb[0].mxu0
        %v3255 = vpop.f32.mrb[0].mxu0
        %v3256 = vadd.f32 %v3191, %v3255
        %v3257 = vpop.f32.mrb[0].mxu0
        %3258 = vmatprep.mubr.bf16.mxu0 0
        %3259 = vmatmul.mubr.bf16.gmra.mrb[0].mxu0 %v2357
        %v3260 = vpop.f32.mrb[0].mxu0
        %v3261 = vadd.f32 %v3196, %v3260
        %v3262 = vpop.f32.mrb[0].mxu0
        %v3263 = vpop.f32.mrb[0].mxu0
        %v3264 = vadd.f32 %v3199, %v3263
        %v3265 = vpop.f32.mrb[0].mxu0
        %3266 = vmatprep.mubr.bf16.mxu0 0
        %3267 = vmatmul.mubr.bf16.gmra.mrb[0].mxu0 %v2366
        %v3268 = vpop.f32.mrb[0].mxu0
        %v3269 = vadd.f32 %v3204, %v3268
        %v3270 = vpop.f32.mrb[0].mxu0
        %v3271 = vpop.f32.mrb[0].mxu0
        %v3272 = vadd.f32 %v3207, %v3271
        %v3273 = vpop.f32.mrb[0].mxu0
        %3274 = vdwg.mxu0
        %vm3275 = vcmp.gt.f32.partialorder %v3245, 0.0
        %vm3276 = vcmp.gt.f32.partialorder %v3248, 0.0
        %vm3277 = vcmp.gt.f32.partialorder %v3253, 0.0
        %vm3278 = vcmp.gt.f32.partialorder %v3256, 0.0
        %vm3279 = vcmp.gt.f32.partialorder %v3261, 0.0
        %vm3280 = vcmp.gt.f32.partialorder %v3264, 0.0
        %vm3281 = vcmp.gt.f32.partialorder %v3269, 0.0
        %vm3282 = vcmp.gt.f32.partialorder %v3272, 0.0
        %v3283 = vmul.f32 %v3245, 0.01
        %v3284 = vmul.f32 %v3248, 0.01
        %v3285 = vmul.f32 %v3253, 0.01
        %v3286 = vmul.f32 %v3256, 0.01
        %v3287 = vmul.f32 %v3261, 0.01
        %v3288 = vmul.f32 %v3264, 0.01
        %v3289 = vmul.f32 %v3269, 0.01
        %v3290 = vmul.f32 %v3272, 0.01
        %v3291 = vsel %vm3275, %v3245, %v3283
        %v3292 = vsel %vm3276, %v3248, %v3284
        %v3293 = vsel %vm3277, %v3253, %v3285
        %v3294 = vsel %vm3278, %v3256, %v3286
        %v3295 = vsel %vm3279, %v3261, %v3287
        %v3296 = vsel %vm3280, %v3264, %v3288
        %v3297 = vsel %vm3281, %v3269, %v3289
        %v3298 = vsel %vm3282, %v3272, %v3290
        %v3299 = vmax.f32 %v3291, %v3293
        %v3300 = vmax.f32 %v3292, %v3294
        %v3301 = vmax.f32 %v3299, %v3295
        %v3302 = vmax.f32 %v3300, %v3296
        %v3303 = vmax.f32 %v3301, %v3297
        %v3304 = vmax.f32 %v3302, %v3298
        %v3306 = vrot.slane %v3303, 1
        %v3308 = vrot.slane %v3303, 2
        %v3310 = vrot.slane %v3303, 3
        %v3312 = vrot.slane %v3303, 4
        %v3314 = vrot.slane %v3303, 5
        %v3316 = vrot.slane %v3303, 6
        %v3318 = vrot.slane %v3303, 7
        %v3321 = vrot.slane %v3304, 1
        %v3323 = vrot.slane %v3304, 2
        %v3325 = vrot.slane %v3304, 3
        %v3327 = vrot.slane %v3304, 4
        %v3329 = vrot.slane %v3304, 5
        %v3331 = vrot.slane %v3304, 6
        %v3333 = vrot.slane %v3304, 7
        %v3335 = vpack.c.bf16 %v3303, %v3303
        %v3336 = vpack.c.bf16 %v3306, %v3306
        %v3337 = vpack.c.bf16 %v3308, %v3308
        %v3338 = vpack.c.bf16 %v3310, %v3310
        %v3339 = vpack.c.bf16 %v3312, %v3312
        %v3340 = vpack.c.bf16 %v3314, %v3314
        %v3341 = vpack.c.bf16 %v3316, %v3316
        %v3342 = vpack.c.bf16 %v3318, %v3318
        %v3343 = vpack.c.bf16 %v3304, %v3304
        %v3344 = vpack.c.bf16 %v3321, %v3321
        %v3345 = vpack.c.bf16 %v3323, %v3323
        %v3346 = vpack.c.bf16 %v3325, %v3325
        %v3347 = vpack.c.bf16 %v3327, %v3327
        %v3348 = vpack.c.bf16 %v3329, %v3329
        %v3349 = vpack.c.bf16 %v3331, %v3331
        %v3350 = vpack.c.bf16 %v3333, %v3333
        %v3351 = vld [vmem:[%s6] sm:$0xf]
        %v3352 = vld [vmem:[%s6 + $0x4] sm:$0xf]
        %v3353 = vld [vmem:[%s6 + $0x8] sm:$0xf]
        %v3354 = vld [vmem:[%s6 + $0xc] sm:$0xf]
        %v3355 = vld [vmem:[%s6 + $0x10] sm:$0xf]
        %v3356 = vld [vmem:[%s6 + $0x14] sm:$0xf]
        %v3357 = vld [vmem:[%s6 + $0x18] sm:$0xf]
        %v3358 = vld [vmem:[%s6 + $0x1c] sm:$0xf]
        %v3359 = vld [vmem:[%s6 + $0x20] sm:$0xf]
        %v3360 = vld [vmem:[%s6 + $0x24] sm:$0xf]
        %v3361 = vld [vmem:[%s6 + $0x28] sm:$0xf]
        %v3362 = vld [vmem:[%s6 + $0x2c] sm:$0xf]
        %v3363 = vld [vmem:[%s6 + $0x30] sm:$0xf]
        %v3364 = vld [vmem:[%s6 + $0x34] sm:$0xf]
        %v3365 = vld [vmem:[%s6 + $0x38] sm:$0xf]
        %v3366 = vld [vmem:[%s6 + $0x3c] sm:$0xf]
        %v3367 = vld [vmem:[%s6 + $0x40] sm:$0xf]
        %v3368 = vld [vmem:[%s6 + $0x44] sm:$0xf]
        %v3369 = vld [vmem:[%s6 + $0x48] sm:$0xf]
        %v3370 = vld [vmem:[%s6 + $0x4c] sm:$0xf]
        %v3371 = vld [vmem:[%s6 + $0x50] sm:$0xf]
        %v3372 = vld [vmem:[%s6 + $0x54] sm:$0xf]
        %v3373 = vld [vmem:[%s6 + $0x58] sm:$0xf]
        %v3374 = vld [vmem:[%s6 + $0x5c] sm:$0xf]
        %v3375 = vld [vmem:[%s6 + $0x60] sm:$0xf]
        %v3376 = vld [vmem:[%s6 + $0x64] sm:$0xf]
        %v3377 = vld [vmem:[%s6 + $0x68] sm:$0xf]
        %v3378 = vld [vmem:[%s6 + $0x6c] sm:$0xf]
        %v3379 = vld [vmem:[%s6 + $0x70] sm:$0xf]
        %v3380 = vld [vmem:[%s6 + $0x74] sm:$0xf]
        %v3381 = vld [vmem:[%s6 + $0x78] sm:$0xf]
        %v3382 = vld [vmem:[%s6 + $0x7c] sm:$0xf]
        %v3383 = vld [vmem:[%s6 + $0x80] sm:$0xf]
        %v3384 = vld [vmem:[%s6 + $0x84] sm:$0xf]
        %v3385 = vld [vmem:[%s6 + $0x88] sm:$0xf]
        %v3386 = vld [vmem:[%s6 + $0x8c] sm:$0xf]
        %v3387 = vld [vmem:[%s6 + $0x90] sm:$0xf]
        %v3388 = vld [vmem:[%s6 + $0x94] sm:$0xf]
        %v3389 = vld [vmem:[%s6 + $0x98] sm:$0xf]
        %v3390 = vld [vmem:[%s6 + $0x9c] sm:$0xf]
        %v3391 = vld [vmem:[%s6 + $0xa0] sm:$0xf]
        %v3392 = vld [vmem:[%s6 + $0xa4] sm:$0xf]
        %v3393 = vld [vmem:[%s6 + $0xa8] sm:$0xf]
        %v3394 = vld [vmem:[%s6 + $0xac] sm:$0xf]
        %v3395 = vld [vmem:[%s6 + $0xb0] sm:$0xf]
        %v3396 = vld [vmem:[%s6 + $0xb4] sm:$0xf]
        %v3397 = vld [vmem:[%s6 + $0xb8] sm:$0xf]
        %v3398 = vld [vmem:[%s6 + $0xbc] sm:$0xf]
        %v3399 = vld [vmem:[%s6 + $0xc0] sm:$0xf]
        %v3400 = vld [vmem:[%s6 + $0xc4] sm:$0xf]
        %v3401 = vld [vmem:[%s6 + $0xc8] sm:$0xf]
        %v3402 = vld [vmem:[%s6 + $0xcc] sm:$0xf]
        %v3403 = vld [vmem:[%s6 + $0xd0] sm:$0xf]
        %v3404 = vld [vmem:[%s6 + $0xd4] sm:$0xf]
        %v3405 = vld [vmem:[%s6 + $0xd8] sm:$0xf]
        %v3406 = vld [vmem:[%s6 + $0xdc] sm:$0xf]
        %v3407 = vld [vmem:[%s6 + $0xe0] sm:$0xf]
        %v3408 = vld [vmem:[%s6 + $0xe4] sm:$0xf]
        %v3409 = vld [vmem:[%s6 + $0xe8] sm:$0xf]
        %v3410 = vld [vmem:[%s6 + $0xec] sm:$0xf]
        %v3411 = vld [vmem:[%s6 + $0xf0] sm:$0xf]
        %v3412 = vld [vmem:[%s6 + $0xf4] sm:$0xf]
        %v3413 = vld [vmem:[%s6 + $0xf8] sm:$0xf]
        %v3414 = vld [vmem:[%s6 + $0xfc] sm:$0xf]
        %v3415 = vld [vmem:[%s6 + $0x100] sm:$0xf]
        %v3416 = vld [vmem:[%s6 + $0x104] sm:$0xf]
        %v3417 = vld [vmem:[%s6 + $0x108] sm:$0xf]
        %v3418 = vld [vmem:[%s6 + $0x10c] sm:$0xf]
        %v3419 = vld [vmem:[%s6 + $0x110] sm:$0xf]
        %v3420 = vld [vmem:[%s6 + $0x114] sm:$0xf]
        %v3421 = vld [vmem:[%s6 + $0x118] sm:$0xf]
        %v3422 = vld [vmem:[%s6 + $0x11c] sm:$0xf]
        %v3423 = vld [vmem:[%s6 + $0x120] sm:$0xf]
        %v3424 = vld [vmem:[%s6 + $0x124] sm:$0xf]
        %v3425 = vld [vmem:[%s6 + $0x128] sm:$0xf]
        %v3426 = vld [vmem:[%s6 + $0x12c] sm:$0xf]
        %v3427 = vld [vmem:[%s6 + $0x130] sm:$0xf]
        %v3428 = vld [vmem:[%s6 + $0x134] sm:$0xf]
        %v3429 = vld [vmem:[%s6 + $0x138] sm:$0xf]
        %v3430 = vld [vmem:[%s6 + $0x13c] sm:$0xf]
        %v3431 = vld [vmem:[%s6 + $0x140] sm:$0xf]
        %v3432 = vld [vmem:[%s6 + $0x144] sm:$0xf]
        %v3433 = vld [vmem:[%s6 + $0x148] sm:$0xf]
        %v3434 = vld [vmem:[%s6 + $0x14c] sm:$0xf]
        %v3435 = vld [vmem:[%s6 + $0x150] sm:$0xf]
        %v3436 = vld [vmem:[%s6 + $0x154] sm:$0xf]
        %v3437 = vld [vmem:[%s6 + $0x158] sm:$0xf]
        %v3438 = vld [vmem:[%s6 + $0x15c] sm:$0xf]
        %v3439 = vld [vmem:[%s6 + $0x160] sm:$0xf]
        %v3440 = vld [vmem:[%s6 + $0x164] sm:$0xf]
        %v3441 = vld [vmem:[%s6 + $0x168] sm:$0xf]
        %v3442 = vld [vmem:[%s6 + $0x16c] sm:$0xf]
        %v3443 = vld [vmem:[%s6 + $0x170] sm:$0xf]
        %v3444 = vld [vmem:[%s6 + $0x174] sm:$0xf]
        %v3445 = vld [vmem:[%s6 + $0x178] sm:$0xf]
        %v3446 = vld [vmem:[%s6 + $0x17c] sm:$0xf]
        %v3447 = vld [vmem:[%s6 + $0x180] sm:$0xf]
        %v3448 = vld [vmem:[%s6 + $0x184] sm:$0xf]
        %v3449 = vld [vmem:[%s6 + $0x188] sm:$0xf]
        %v3450 = vld [vmem:[%s6 + $0x18c] sm:$0xf]
        %v3451 = vld [vmem:[%s6 + $0x190] sm:$0xf]
        %v3452 = vld [vmem:[%s6 + $0x194] sm:$0xf]
        %v3453 = vld [vmem:[%s6 + $0x198] sm:$0xf]
        %v3454 = vld [vmem:[%s6 + $0x19c] sm:$0xf]
        %v3455 = vld [vmem:[%s6 + $0x1a0] sm:$0xf]
        %v3456 = vld [vmem:[%s6 + $0x1a4] sm:$0xf]
        %v3457 = vld [vmem:[%s6 + $0x1a8] sm:$0xf]
        %v3458 = vld [vmem:[%s6 + $0x1ac] sm:$0xf]
        %v3459 = vld [vmem:[%s6 + $0x1b0] sm:$0xf]
        %v3460 = vld [vmem:[%s6 + $0x1b4] sm:$0xf]
        %v3461 = vld [vmem:[%s6 + $0x1b8] sm:$0xf]
        %v3462 = vld [vmem:[%s6 + $0x1bc] sm:$0xf]
        %v3463 = vld [vmem:[%s6 + $0x1c0] sm:$0xf]
        %v3464 = vld [vmem:[%s6 + $0x1c4] sm:$0xf]
        %v3465 = vld [vmem:[%s6 + $0x1c8] sm:$0xf]
        %v3466 = vld [vmem:[%s6 + $0x1cc] sm:$0xf]
        %v3467 = vld [vmem:[%s6 + $0x1d0] sm:$0xf]
        %v3468 = vld [vmem:[%s6 + $0x1d4] sm:$0xf]
        %v3469 = vld [vmem:[%s6 + $0x1d8] sm:$0xf]
        %v3470 = vld [vmem:[%s6 + $0x1dc] sm:$0xf]
        %v3471 = vld [vmem:[%s6 + $0x1e0] sm:$0xf]
        %v3472 = vld [vmem:[%s6 + $0x1e4] sm:$0xf]
        %v3473 = vld [vmem:[%s6 + $0x1e8] sm:$0xf]
        %v3474 = vld [vmem:[%s6 + $0x1ec] sm:$0xf]
        %v3475 = vld [vmem:[%s6 + $0x1f0] sm:$0xf]
        %v3476 = vld [vmem:[%s6 + $0x1f4] sm:$0xf]
        %v3477 = vld [vmem:[%s6 + $0x1f8] sm:$0xf]
        %v3478 = vld [vmem:[%s6 + $0x1fc] sm:$0xf]
        %v3479 = vld [vmem:[%s6 + $0x200] sm:$0xf]
        %v3480 = vld [vmem:[%s6 + $0x204] sm:$0xf]
        %v3481 = vld [vmem:[%s6 + $0x208] sm:$0xf]
        %v3482 = vld [vmem:[%s6 + $0x20c] sm:$0xf]
        %v3483 = vld [vmem:[%s6 + $0x210] sm:$0xf]
        %v3484 = vld [vmem:[%s6 + $0x214] sm:$0xf]
        %v3485 = vld [vmem:[%s6 + $0x218] sm:$0xf]
        %v3486 = vld [vmem:[%s6 + $0x21c] sm:$0xf]
        %v3487 = vld [vmem:[%s6 + $0x220] sm:$0xf]
        %v3488 = vld [vmem:[%s6 + $0x224] sm:$0xf]
        %v3489 = vld [vmem:[%s6 + $0x228] sm:$0xf]
        %v3490 = vld [vmem:[%s6 + $0x22c] sm:$0xf]
        %v3491 = vld [vmem:[%s6 + $0x230] sm:$0xf]
        %v3492 = vld [vmem:[%s6 + $0x234] sm:$0xf]
        %v3493 = vld [vmem:[%s6 + $0x238] sm:$0xf]
        %v3494 = vld [vmem:[%s6 + $0x23c] sm:$0xf]
        %v3495 = vld [vmem:[%s6 + $0x240] sm:$0xf]
        %v3496 = vld [vmem:[%s6 + $0x244] sm:$0xf]
        %v3497 = vld [vmem:[%s6 + $0x248] sm:$0xf]
        %v3498 = vld [vmem:[%s6 + $0x24c] sm:$0xf]
        %v3499 = vld [vmem:[%s6 + $0x250] sm:$0xf]
        %v3500 = vld [vmem:[%s6 + $0x254] sm:$0xf]
        %v3501 = vld [vmem:[%s6 + $0x258] sm:$0xf]
        %v3502 = vld [vmem:[%s6 + $0x25c] sm:$0xf]
        %v3503 = vld [vmem:[%s6 + $0x260] sm:$0xf]
        %v3504 = vld [vmem:[%s6 + $0x264] sm:$0xf]
        %v3505 = vld [vmem:[%s6 + $0x268] sm:$0xf]
        %v3506 = vld [vmem:[%s6 + $0x26c] sm:$0xf]
        %v3507 = vld [vmem:[%s6 + $0x270] sm:$0xf]
        %v3508 = vld [vmem:[%s6 + $0x274] sm:$0xf]
        %v3509 = vld [vmem:[%s6 + $0x278] sm:$0xf]
        %v3510 = vld [vmem:[%s6 + $0x27c] sm:$0xf]
        %v3511 = vld [vmem:[%s6 + $0x280] sm:$0xf]
        %v3512 = vld [vmem:[%s6 + $0x284] sm:$0xf]
        %v3513 = vld [vmem:[%s6 + $0x288] sm:$0xf]
        %v3514 = vld [vmem:[%s6 + $0x28c] sm:$0xf]
        %v3515 = vld [vmem:[%s6 + $0x290] sm:$0xf]
        %v3516 = vld [vmem:[%s6 + $0x294] sm:$0xf]
        %v3517 = vld [vmem:[%s6 + $0x298] sm:$0xf]
        %v3518 = vld [vmem:[%s6 + $0x29c] sm:$0xf]
        %v3519 = vld [vmem:[%s6 + $0x2a0] sm:$0xf]
        %v3520 = vld [vmem:[%s6 + $0x2a4] sm:$0xf]
        %v3521 = vld [vmem:[%s6 + $0x2a8] sm:$0xf]
        %v3522 = vld [vmem:[%s6 + $0x2ac] sm:$0xf]
        %v3523 = vld [vmem:[%s6 + $0x2b0] sm:$0xf]
        %v3524 = vld [vmem:[%s6 + $0x2b4] sm:$0xf]
        %v3525 = vld [vmem:[%s6 + $0x2b8] sm:$0xf]
        %v3526 = vld [vmem:[%s6 + $0x2bc] sm:$0xf]
        %v3527 = vld [vmem:[%s6 + $0x2c0] sm:$0xf]
        %v3528 = vld [vmem:[%s6 + $0x2c4] sm:$0xf]
        %v3529 = vld [vmem:[%s6 + $0x2c8] sm:$0xf]
        %v3530 = vld [vmem:[%s6 + $0x2cc] sm:$0xf]
        %v3531 = vld [vmem:[%s6 + $0x2d0] sm:$0xf]
        %v3532 = vld [vmem:[%s6 + $0x2d4] sm:$0xf]
        %v3533 = vld [vmem:[%s6 + $0x2d8] sm:$0xf]
        %v3534 = vld [vmem:[%s6 + $0x2dc] sm:$0xf]
        %v3535 = vld [vmem:[%s6 + $0x2e0] sm:$0xf]
        %v3536 = vld [vmem:[%s6 + $0x2e4] sm:$0xf]
        %v3537 = vld [vmem:[%s6 + $0x2e8] sm:$0xf]
        %v3538 = vld [vmem:[%s6 + $0x2ec] sm:$0xf]
        %v3539 = vld [vmem:[%s6 + $0x2f0] sm:$0xf]
        %v3540 = vld [vmem:[%s6 + $0x2f4] sm:$0xf]
        %v3541 = vld [vmem:[%s6 + $0x2f8] sm:$0xf]
        %v3542 = vld [vmem:[%s6 + $0x2fc] sm:$0xf]
        %v3543 = vld [vmem:[%s6 + $0x300] sm:$0xf]
        %v3544 = vld [vmem:[%s6 + $0x304] sm:$0xf]
        %v3545 = vld [vmem:[%s6 + $0x308] sm:$0xf]
        %v3546 = vld [vmem:[%s6 + $0x30c] sm:$0xf]
        %v3547 = vld [vmem:[%s6 + $0x310] sm:$0xf]
        %v3548 = vld [vmem:[%s6 + $0x314] sm:$0xf]
        %v3549 = vld [vmem:[%s6 + $0x318] sm:$0xf]
        %v3550 = vld [vmem:[%s6 + $0x31c] sm:$0xf]
        %v3551 = vld [vmem:[%s6 + $0x320] sm:$0xf]
        %v3552 = vld [vmem:[%s6 + $0x324] sm:$0xf]
        %v3553 = vld [vmem:[%s6 + $0x328] sm:$0xf]
        %v3554 = vld [vmem:[%s6 + $0x32c] sm:$0xf]
        %v3555 = vld [vmem:[%s6 + $0x330] sm:$0xf]
        %v3556 = vld [vmem:[%s6 + $0x334] sm:$0xf]
        %v3557 = vld [vmem:[%s6 + $0x338] sm:$0xf]
        %v3558 = vld [vmem:[%s6 + $0x33c] sm:$0xf]
        %v3559 = vld [vmem:[%s6 + $0x340] sm:$0xf]
        %v3560 = vld [vmem:[%s6 + $0x344] sm:$0xf]
        %v3561 = vld [vmem:[%s6 + $0x348] sm:$0xf]
        %v3562 = vld [vmem:[%s6 + $0x34c] sm:$0xf]
        %v3563 = vld [vmem:[%s6 + $0x350] sm:$0xf]
        %v3564 = vld [vmem:[%s6 + $0x354] sm:$0xf]
        %v3565 = vld [vmem:[%s6 + $0x358] sm:$0xf]
        %v3566 = vld [vmem:[%s6 + $0x35c] sm:$0xf]
        %v3567 = vld [vmem:[%s6 + $0x360] sm:$0xf]
        %v3568 = vld [vmem:[%s6 + $0x364] sm:$0xf]
        %v3569 = vld [vmem:[%s6 + $0x368] sm:$0xf]
        %v3570 = vld [vmem:[%s6 + $0x36c] sm:$0xf]
        %v3571 = vld [vmem:[%s6 + $0x370] sm:$0xf]
        %v3572 = vld [vmem:[%s6 + $0x374] sm:$0xf]
        %v3573 = vld [vmem:[%s6 + $0x378] sm:$0xf]
        %v3574 = vld [vmem:[%s6 + $0x37c] sm:$0xf]
        %v3575 = vld [vmem:[%s6 + $0x380] sm:$0xf]
        %v3576 = vld [vmem:[%s6 + $0x384] sm:$0xf]
        %v3577 = vld [vmem:[%s6 + $0x388] sm:$0xf]
        %v3578 = vld [vmem:[%s6 + $0x38c] sm:$0xf]
        %v3579 = vld [vmem:[%s6 + $0x390] sm:$0xf]
        %v3580 = vld [vmem:[%s6 + $0x394] sm:$0xf]
        %v3581 = vld [vmem:[%s6 + $0x398] sm:$0xf]
        %v3582 = vld [vmem:[%s6 + $0x39c] sm:$0xf]
        %v3583 = vld [vmem:[%s6 + $0x3a0] sm:$0xf]
        %v3584 = vld [vmem:[%s6 + $0x3a4] sm:$0xf]
        %v3585 = vld [vmem:[%s6 + $0x3a8] sm:$0xf]
        %v3586 = vld [vmem:[%s6 + $0x3ac] sm:$0xf]
        %v3587 = vld [vmem:[%s6 + $0x3b0] sm:$0xf]
        %v3588 = vld [vmem:[%s6 + $0x3b4] sm:$0xf]
        %v3589 = vld [vmem:[%s6 + $0x3b8] sm:$0xf]
        %v3590 = vld [vmem:[%s6 + $0x3bc] sm:$0xf]
        %v3591 = vld [vmem:[%s6 + $0x3c0] sm:$0xf]
        %v3592 = vld [vmem:[%s6 + $0x3c4] sm:$0xf]
        %v3593 = vld [vmem:[%s6 + $0x3c8] sm:$0xf]
        %v3594 = vld [vmem:[%s6 + $0x3cc] sm:$0xf]
        %v3595 = vld [vmem:[%s6 + $0x3d0] sm:$0xf]
        %v3596 = vld [vmem:[%s6 + $0x3d4] sm:$0xf]
        %v3597 = vld [vmem:[%s6 + $0x3d8] sm:$0xf]
        %v3598 = vld [vmem:[%s6 + $0x3dc] sm:$0xf]
        %v3599 = vld [vmem:[%s6 + $0x3e0] sm:$0xf]
        %v3600 = vld [vmem:[%s6 + $0x3e4] sm:$0xf]
        %v3601 = vld [vmem:[%s6 + $0x3e8] sm:$0xf]
        %v3602 = vld [vmem:[%s6 + $0x3ec] sm:$0xf]
        %v3603 = vld [vmem:[%s6 + $0x3f0] sm:$0xf]
        %v3604 = vld [vmem:[%s6 + $0x3f4] sm:$0xf]
        %v3605 = vld [vmem:[%s6 + $0x3f8] sm:$0xf]
        %v3606 = vld [vmem:[%s6 + $0x3fc] sm:$0xf]
        %v3607 = vld [vmem:[%s7] sm:$0x1]
        %v3864 = vunpack.c.l.b16 %v3351
        %v3865 = vunpack.c.l.b16 %v3352
        %v3866 = vunpack.c.l.b16 %v3353
        %v3867 = vunpack.c.l.b16 %v3354
        %v3868 = vunpack.c.l.b16 %v3355
        %v3869 = vunpack.c.l.b16 %v3356
        %v3870 = vunpack.c.l.b16 %v3357
        %v3871 = vunpack.c.l.b16 %v3358
        %v3872 = vunpack.c.l.b16 %v3359
        %v3873 = vunpack.c.l.b16 %v3360
        %v3874 = vunpack.c.l.b16 %v3361
        %v3875 = vunpack.c.l.b16 %v3362
        %v3876 = vunpack.c.l.b16 %v3363
        %v3877 = vunpack.c.l.b16 %v3364
        %v3878 = vunpack.c.l.b16 %v3365
        %v3879 = vunpack.c.l.b16 %v3366
        %v3880 = vunpack.c.l.b16 %v3367
        %v3881 = vunpack.c.l.b16 %v3368
        %v3882 = vunpack.c.l.b16 %v3369
        %v3883 = vunpack.c.l.b16 %v3370
        %v3884 = vunpack.c.l.b16 %v3371
        %v3885 = vunpack.c.l.b16 %v3372
        %v3886 = vunpack.c.l.b16 %v3373
        %v3887 = vunpack.c.l.b16 %v3374
        %v3888 = vunpack.c.l.b16 %v3375
        %v3889 = vunpack.c.l.b16 %v3376
        %v3890 = vunpack.c.l.b16 %v3377
        %v3891 = vunpack.c.l.b16 %v3378
        %v3892 = vunpack.c.l.b16 %v3379
        %v3893 = vunpack.c.l.b16 %v3380
        %v3894 = vunpack.c.l.b16 %v3381
        %v3895 = vunpack.c.l.b16 %v3382
        %v3896 = vunpack.c.l.b16 %v3383
        %v3897 = vunpack.c.l.b16 %v3384
        %v3898 = vunpack.c.l.b16 %v3385
        %v3899 = vunpack.c.l.b16 %v3386
        %v3900 = vunpack.c.l.b16 %v3387
        %v3901 = vunpack.c.l.b16 %v3388
        %v3902 = vunpack.c.l.b16 %v3389
        %v3903 = vunpack.c.l.b16 %v3390
        %v3904 = vunpack.c.l.b16 %v3391
        %v3905 = vunpack.c.l.b16 %v3392
        %v3906 = vunpack.c.l.b16 %v3393
        %v3907 = vunpack.c.l.b16 %v3394
        %v3908 = vunpack.c.l.b16 %v3395
        %v3909 = vunpack.c.l.b16 %v3396
        %v3910 = vunpack.c.l.b16 %v3397
        %v3911 = vunpack.c.l.b16 %v3398
        %v3912 = vunpack.c.l.b16 %v3399
        %v3913 = vunpack.c.l.b16 %v3400
        %v3914 = vunpack.c.l.b16 %v3401
        %v3915 = vunpack.c.l.b16 %v3402
        %v3916 = vunpack.c.l.b16 %v3403
        %v3917 = vunpack.c.l.b16 %v3404
        %v3918 = vunpack.c.l.b16 %v3405
        %v3919 = vunpack.c.l.b16 %v3406
        %v3920 = vunpack.c.l.b16 %v3407
        %v3921 = vunpack.c.l.b16 %v3408
        %v3922 = vunpack.c.l.b16 %v3409
        %v3923 = vunpack.c.l.b16 %v3410
        %v3924 = vunpack.c.l.b16 %v3411
        %v3925 = vunpack.c.l.b16 %v3412
        %v3926 = vunpack.c.l.b16 %v3413
        %v3927 = vunpack.c.l.b16 %v3414
        %v3928 = vunpack.c.l.b16 %v3415
        %v3929 = vunpack.c.l.b16 %v3416
        %v3930 = vunpack.c.l.b16 %v3417
        %v3931 = vunpack.c.l.b16 %v3418
        %v3932 = vunpack.c.l.b16 %v3419
        %v3933 = vunpack.c.l.b16 %v3420
        %v3934 = vunpack.c.l.b16 %v3421
        %v3935 = vunpack.c.l.b16 %v3422
        %v3936 = vunpack.c.l.b16 %v3423
        %v3937 = vunpack.c.l.b16 %v3424
        %v3938 = vunpack.c.l.b16 %v3425
        %v3939 = vunpack.c.l.b16 %v3426
        %v3940 = vunpack.c.l.b16 %v3427
        %v3941 = vunpack.c.l.b16 %v3428
        %v3942 = vunpack.c.l.b16 %v3429
        %v3943 = vunpack.c.l.b16 %v3430
        %v3944 = vunpack.c.l.b16 %v3431
        %v3945 = vunpack.c.l.b16 %v3432
        %v3946 = vunpack.c.l.b16 %v3433
        %v3947 = vunpack.c.l.b16 %v3434
        %v3948 = vunpack.c.l.b16 %v3435
        %v3949 = vunpack.c.l.b16 %v3436
        %v3950 = vunpack.c.l.b16 %v3437
        %v3951 = vunpack.c.l.b16 %v3438
        %v3952 = vunpack.c.l.b16 %v3439
        %v3953 = vunpack.c.l.b16 %v3440
        %v3954 = vunpack.c.l.b16 %v3441
        %v3955 = vunpack.c.l.b16 %v3442
        %v3956 = vunpack.c.l.b16 %v3443
        %v3957 = vunpack.c.l.b16 %v3444
        %v3958 = vunpack.c.l.b16 %v3445
        %v3959 = vunpack.c.l.b16 %v3446
        %v3960 = vunpack.c.l.b16 %v3447
        %v3961 = vunpack.c.l.b16 %v3448
        %v3962 = vunpack.c.l.b16 %v3449
        %v3963 = vunpack.c.l.b16 %v3450
        %v3964 = vunpack.c.l.b16 %v3451
        %v3965 = vunpack.c.l.b16 %v3452
        %v3966 = vunpack.c.l.b16 %v3453
        %v3967 = vunpack.c.l.b16 %v3454
        %v3968 = vunpack.c.l.b16 %v3455
        %v3969 = vunpack.c.l.b16 %v3456
        %v3970 = vunpack.c.l.b16 %v3457
        %v3971 = vunpack.c.l.b16 %v3458
        %v3972 = vunpack.c.l.b16 %v3459
        %v3973 = vunpack.c.l.b16 %v3460
        %v3974 = vunpack.c.l.b16 %v3461
        %v3975 = vunpack.c.l.b16 %v3462
        %v3976 = vunpack.c.l.b16 %v3463
        %v3977 = vunpack.c.l.b16 %v3464
        %v3978 = vunpack.c.l.b16 %v3465
        %v3979 = vunpack.c.l.b16 %v3466
        %v3980 = vunpack.c.l.b16 %v3467
        %v3981 = vunpack.c.l.b16 %v3468
        %v3982 = vunpack.c.l.b16 %v3469
        %v3983 = vunpack.c.l.b16 %v3470
        %v3984 = vunpack.c.l.b16 %v3471
        %v3985 = vunpack.c.l.b16 %v3472
        %v3986 = vunpack.c.l.b16 %v3473
        %v3987 = vunpack.c.l.b16 %v3474
        %v3988 = vunpack.c.l.b16 %v3475
        %v3989 = vunpack.c.l.b16 %v3476
        %v3990 = vunpack.c.l.b16 %v3477
        %v3991 = vunpack.c.l.b16 %v3478
        %v3992 = vunpack.c.l.b16 %v3479
        %v3993 = vunpack.c.l.b16 %v3480
        %v3994 = vunpack.c.l.b16 %v3481
        %v3995 = vunpack.c.l.b16 %v3482
        %v3996 = vunpack.c.l.b16 %v3483
        %v3997 = vunpack.c.l.b16 %v3484
        %v3998 = vunpack.c.l.b16 %v3485
        %v3999 = vunpack.c.l.b16 %v3486
        %v4000 = vunpack.c.l.b16 %v3487
        %v4001 = vunpack.c.l.b16 %v3488
        %v4002 = vunpack.c.l.b16 %v3489
        %v4003 = vunpack.c.l.b16 %v3490
        %v4004 = vunpack.c.l.b16 %v3491
        %v4005 = vunpack.c.l.b16 %v3492
        %v4006 = vunpack.c.l.b16 %v3493
        %v4007 = vunpack.c.l.b16 %v3494
        %v4008 = vunpack.c.l.b16 %v3495
        %v4009 = vunpack.c.l.b16 %v3496
        %v4010 = vunpack.c.l.b16 %v3497
        %v4011 = vunpack.c.l.b16 %v3498
        %v4012 = vunpack.c.l.b16 %v3499
        %v4013 = vunpack.c.l.b16 %v3500
        %v4014 = vunpack.c.l.b16 %v3501
        %v4015 = vunpack.c.l.b16 %v3502
        %v4016 = vunpack.c.l.b16 %v3503
        %v4017 = vunpack.c.l.b16 %v3504
        %v4018 = vunpack.c.l.b16 %v3505
        %v4019 = vunpack.c.l.b16 %v3506
        %v4020 = vunpack.c.l.b16 %v3507
        %v4021 = vunpack.c.l.b16 %v3508
        %v4022 = vunpack.c.l.b16 %v3509
        %v4023 = vunpack.c.l.b16 %v3510
        %v4024 = vunpack.c.l.b16 %v3511
        %v4025 = vunpack.c.l.b16 %v3512
        %v4026 = vunpack.c.l.b16 %v3513
        %v4027 = vunpack.c.l.b16 %v3514
        %v4028 = vunpack.c.l.b16 %v3515
        %v4029 = vunpack.c.l.b16 %v3516
        %v4030 = vunpack.c.l.b16 %v3517
        %v4031 = vunpack.c.l.b16 %v3518
        %v4032 = vunpack.c.l.b16 %v3519
        %v4033 = vunpack.c.l.b16 %v3520
        %v4034 = vunpack.c.l.b16 %v3521
        %v4035 = vunpack.c.l.b16 %v3522
        %v4036 = vunpack.c.l.b16 %v3523
        %v4037 = vunpack.c.l.b16 %v3524
        %v4038 = vunpack.c.l.b16 %v3525
        %v4039 = vunpack.c.l.b16 %v3526
        %v4040 = vunpack.c.l.b16 %v3527
        %v4041 = vunpack.c.l.b16 %v3528
        %v4042 = vunpack.c.l.b16 %v3529
        %v4043 = vunpack.c.l.b16 %v3530
        %v4044 = vunpack.c.l.b16 %v3531
        %v4045 = vunpack.c.l.b16 %v3532
        %v4046 = vunpack.c.l.b16 %v3533
        %v4047 = vunpack.c.l.b16 %v3534
        %v4048 = vunpack.c.l.b16 %v3535
        %v4049 = vunpack.c.l.b16 %v3536
        %v4050 = vunpack.c.l.b16 %v3537
        %v4051 = vunpack.c.l.b16 %v3538
        %v4052 = vunpack.c.l.b16 %v3539
        %v4053 = vunpack.c.l.b16 %v3540
        %v4054 = vunpack.c.l.b16 %v3541
        %v4055 = vunpack.c.l.b16 %v3542
        %v4056 = vunpack.c.l.b16 %v3543
        %v4057 = vunpack.c.l.b16 %v3544
        %v4058 = vunpack.c.l.b16 %v3545
        %v4059 = vunpack.c.l.b16 %v3546
        %v4060 = vunpack.c.l.b16 %v3547
        %v4061 = vunpack.c.l.b16 %v3548
        %v4062 = vunpack.c.l.b16 %v3549
        %v4063 = vunpack.c.l.b16 %v3550
        %v4064 = vunpack.c.l.b16 %v3551
        %v4065 = vunpack.c.l.b16 %v3552
        %v4066 = vunpack.c.l.b16 %v3553
        %v4067 = vunpack.c.l.b16 %v3554
        %v4068 = vunpack.c.l.b16 %v3555
        %v4069 = vunpack.c.l.b16 %v3556
        %v4070 = vunpack.c.l.b16 %v3557
        %v4071 = vunpack.c.l.b16 %v3558
        %v4072 = vunpack.c.l.b16 %v3559
        %v4073 = vunpack.c.l.b16 %v3560
        %v4074 = vunpack.c.l.b16 %v3561
        %v4075 = vunpack.c.l.b16 %v3562
        %v4076 = vunpack.c.l.b16 %v3563
        %v4077 = vunpack.c.l.b16 %v3564
        %v4078 = vunpack.c.l.b16 %v3565
        %v4079 = vunpack.c.l.b16 %v3566
        %v4080 = vunpack.c.l.b16 %v3567
        %v4081 = vunpack.c.l.b16 %v3568
        %v4082 = vunpack.c.l.b16 %v3569
        %v4083 = vunpack.c.l.b16 %v3570
        %v4084 = vunpack.c.l.b16 %v3571
        %v4085 = vunpack.c.l.b16 %v3572
        %v4086 = vunpack.c.l.b16 %v3573
        %v4087 = vunpack.c.l.b16 %v3574
        %v4088 = vunpack.c.l.b16 %v3575
        %v4089 = vunpack.c.l.b16 %v3576
        %v4090 = vunpack.c.l.b16 %v3577
        %v4091 = vunpack.c.l.b16 %v3578
        %v4092 = vunpack.c.l.b16 %v3579
        %v4093 = vunpack.c.l.b16 %v3580
        %v4094 = vunpack.c.l.b16 %v3581
        %v4095 = vunpack.c.l.b16 %v3582
        %v4096 = vunpack.c.l.b16 %v3583
        %v4097 = vunpack.c.l.b16 %v3584
        %v4098 = vunpack.c.l.b16 %v3585
        %v4099 = vunpack.c.l.b16 %v3586
        %v4100 = vunpack.c.l.b16 %v3587
        %v4101 = vunpack.c.l.b16 %v3588
        %v4102 = vunpack.c.l.b16 %v3589
        %v4103 = vunpack.c.l.b16 %v3590
        %v4104 = vunpack.c.l.b16 %v3591
        %v4105 = vunpack.c.l.b16 %v3592
        %v4106 = vunpack.c.l.b16 %v3593
        %v4107 = vunpack.c.l.b16 %v3594
        %v4108 = vunpack.c.l.b16 %v3595
        %v4109 = vunpack.c.l.b16 %v3596
        %v4110 = vunpack.c.l.b16 %v3597
        %v4111 = vunpack.c.l.b16 %v3598
        %v4112 = vunpack.c.l.b16 %v3599
        %v4113 = vunpack.c.l.b16 %v3600
        %v4114 = vunpack.c.l.b16 %v3601
        %v4115 = vunpack.c.l.b16 %v3602
        %v4116 = vunpack.c.l.b16 %v3603
        %v4117 = vunpack.c.l.b16 %v3604
        %v4118 = vunpack.c.l.b16 %v3605
        %v4119 = vunpack.c.l.b16 %v3606
        %v4120 = vpack.c.b16 %v3865, %v3864
        %v4121 = vpack.c.b16 %v3867, %v3866
        %v4122 = vpack.c.b16 %v3869, %v3868
        %v4123 = vpack.c.b16 %v3871, %v3870
        %v4124 = vpack.c.b16 %v3873, %v3872
        %v4125 = vpack.c.b16 %v3875, %v3874
        %v4126 = vpack.c.b16 %v3877, %v3876
        %v4127 = vpack.c.b16 %v3879, %v3878
        %v4128 = vpack.c.b16 %v3881, %v3880
        %v4129 = vpack.c.b16 %v3883, %v3882
        %v4130 = vpack.c.b16 %v3885, %v3884
        %v4131 = vpack.c.b16 %v3887, %v3886
        %v4132 = vpack.c.b16 %v3889, %v3888
        %v4133 = vpack.c.b16 %v3891, %v3890
        %v4134 = vpack.c.b16 %v3893, %v3892
        %v4135 = vpack.c.b16 %v3895, %v3894
        %v4136 = vpack.c.b16 %v3897, %v3896
        %v4137 = vpack.c.b16 %v3899, %v3898
        %v4138 = vpack.c.b16 %v3901, %v3900
        %v4139 = vpack.c.b16 %v3903, %v3902
        %v4140 = vpack.c.b16 %v3905, %v3904
        %v4141 = vpack.c.b16 %v3907, %v3906
        %v4142 = vpack.c.b16 %v3909, %v3908
        %v4143 = vpack.c.b16 %v3911, %v3910
        %v4144 = vpack.c.b16 %v3913, %v3912
        %v4145 = vpack.c.b16 %v3915, %v3914
        %v4146 = vpack.c.b16 %v3917, %v3916
        %v4147 = vpack.c.b16 %v3919, %v3918
        %v4148 = vpack.c.b16 %v3921, %v3920
        %v4149 = vpack.c.b16 %v3923, %v3922
        %v4150 = vpack.c.b16 %v3925, %v3924
        %v4151 = vpack.c.b16 %v3927, %v3926
        %v4152 = vpack.c.b16 %v3929, %v3928
        %v4153 = vpack.c.b16 %v3931, %v3930
        %v4154 = vpack.c.b16 %v3933, %v3932
        %v4155 = vpack.c.b16 %v3935, %v3934
        %v4156 = vpack.c.b16 %v3937, %v3936
        %v4157 = vpack.c.b16 %v3939, %v3938
        %v4158 = vpack.c.b16 %v3941, %v3940
        %v4159 = vpack.c.b16 %v3943, %v3942
        %v4160 = vpack.c.b16 %v3945, %v3944
        %v4161 = vpack.c.b16 %v3947, %v3946
        %v4162 = vpack.c.b16 %v3949, %v3948
        %v4163 = vpack.c.b16 %v3951, %v3950
        %v4164 = vpack.c.b16 %v3953, %v3952
        %v4165 = vpack.c.b16 %v3955, %v3954
        %v4166 = vpack.c.b16 %v3957, %v3956
        %v4167 = vpack.c.b16 %v3959, %v3958
        %v4168 = vpack.c.b16 %v3961, %v3960
        %v4169 = vpack.c.b16 %v3963, %v3962
        %v4170 = vpack.c.b16 %v3965, %v3964
        %v4171 = vpack.c.b16 %v3967, %v3966
        %v4172 = vpack.c.b16 %v3969, %v3968
        %v4173 = vpack.c.b16 %v3971, %v3970
        %v4174 = vpack.c.b16 %v3973, %v3972
        %v4175 = vpack.c.b16 %v3975, %v3974
        %v4176 = vpack.c.b16 %v3977, %v3976
        %v4177 = vpack.c.b16 %v3979, %v3978
        %v4178 = vpack.c.b16 %v3981, %v3980
        %v4179 = vpack.c.b16 %v3983, %v3982
        %v4180 = vpack.c.b16 %v3985, %v3984
        %v4181 = vpack.c.b16 %v3987, %v3986
        %v4182 = vpack.c.b16 %v3989, %v3988
        %v4183 = vpack.c.b16 %v3991, %v3990
        %v4184 = vpack.c.b16 %v3993, %v3992
        %v4185 = vpack.c.b16 %v3995, %v3994
        %v4186 = vpack.c.b16 %v3997, %v3996
        %v4187 = vpack.c.b16 %v3999, %v3998
        %v4188 = vpack.c.b16 %v4001, %v4000
        %v4189 = vpack.c.b16 %v4003, %v4002
        %v4190 = vpack.c.b16 %v4005, %v4004
        %v4191 = vpack.c.b16 %v4007, %v4006
        %v4192 = vpack.c.b16 %v4009, %v4008
        %v4193 = vpack.c.b16 %v4011, %v4010
        %v4194 = vpack.c.b16 %v4013, %v4012
        %v4195 = vpack.c.b16 %v4015, %v4014
        %v4196 = vpack.c.b16 %v4017, %v4016
        %v4197 = vpack.c.b16 %v4019, %v4018
        %v4198 = vpack.c.b16 %v4021, %v4020
        %v4199 = vpack.c.b16 %v4023, %v4022
        %v4200 = vpack.c.b16 %v4025, %v4024
        %v4201 = vpack.c.b16 %v4027, %v4026
        %v4202 = vpack.c.b16 %v4029, %v4028
        %v4203 = vpack.c.b16 %v4031, %v4030
        %v4204 = vpack.c.b16 %v4033, %v4032
        %v4205 = vpack.c.b16 %v4035, %v4034
        %v4206 = vpack.c.b16 %v4037, %v4036
        %v4207 = vpack.c.b16 %v4039, %v4038
        %v4208 = vpack.c.b16 %v4041, %v4040
        %v4209 = vpack.c.b16 %v4043, %v4042
        %v4210 = vpack.c.b16 %v4045, %v4044
        %v4211 = vpack.c.b16 %v4047, %v4046
        %v4212 = vpack.c.b16 %v4049, %v4048
        %v4213 = vpack.c.b16 %v4051, %v4050
        %v4214 = vpack.c.b16 %v4053, %v4052
        %v4215 = vpack.c.b16 %v4055, %v4054
        %v4216 = vpack.c.b16 %v4057, %v4056
        %v4217 = vpack.c.b16 %v4059, %v4058
        %v4218 = vpack.c.b16 %v4061, %v4060
        %v4219 = vpack.c.b16 %v4063, %v4062
        %v4220 = vpack.c.b16 %v4065, %v4064
        %v4221 = vpack.c.b16 %v4067, %v4066
        %v4222 = vpack.c.b16 %v4069, %v4068
        %v4223 = vpack.c.b16 %v4071, %v4070
        %v4224 = vpack.c.b16 %v4073, %v4072
        %v4225 = vpack.c.b16 %v4075, %v4074
        %v4226 = vpack.c.b16 %v4077, %v4076
        %v4227 = vpack.c.b16 %v4079, %v4078
        %v4228 = vpack.c.b16 %v4081, %v4080
        %v4229 = vpack.c.b16 %v4083, %v4082
        %v4230 = vpack.c.b16 %v4085, %v4084
        %v4231 = vpack.c.b16 %v4087, %v4086
        %v4232 = vpack.c.b16 %v4089, %v4088
        %v4233 = vpack.c.b16 %v4091, %v4090
        %v4234 = vpack.c.b16 %v4093, %v4092
        %v4235 = vpack.c.b16 %v4095, %v4094
        %v4236 = vpack.c.b16 %v4097, %v4096
        %v4237 = vpack.c.b16 %v4099, %v4098
        %v4238 = vpack.c.b16 %v4101, %v4100
        %v4239 = vpack.c.b16 %v4103, %v4102
        %v4240 = vpack.c.b16 %v4105, %v4104
        %v4241 = vpack.c.b16 %v4107, %v4106
        %v4242 = vpack.c.b16 %v4109, %v4108
        %v4243 = vpack.c.b16 %v4111, %v4110
        %v4244 = vpack.c.b16 %v4113, %v4112
        %v4245 = vpack.c.b16 %v4115, %v4114
        %v4246 = vpack.c.b16 %v4117, %v4116
        %v4247 = vpack.c.b16 %v4119, %v4118
        %4376 = vmatprep.subr.bf16.mxu0 0
        %4377 = vmatpush1.bf16.msra.mxu0 %v4120
        %4378 = vmatprep.subr.bf16.mxu0 0
        %4379 = vmatpush1.bf16.msra.mxu0 %v4121
        %4380 = vmatprep.subr.bf16.mxu0 0
        %4381 = vmatpush1.bf16.msra.mxu0 %v4122
        %4382 = vmatprep.subr.bf16.mxu0 0
        %4383 = vmatpush1.bf16.msra.mxu0 %v4123
        %4384 = vmatprep.subr.bf16.mxu0 0
        %4385 = vmatpush1.bf16.msra.mxu0 %v4124
        %4386 = vmatprep.subr.bf16.mxu0 0
        %4387 = vmatpush1.bf16.msra.mxu0 %v4125
        %4388 = vmatprep.subr.bf16.mxu0 0
        %4389 = vmatpush1.bf16.msra.mxu0 %v4126
        %4390 = vmatprep.subr.bf16.mxu0 0
        %4391 = vmatpush1.bf16.msra.mxu0 %v4127
        %4392 = vmatprep.subr.bf16.mxu0 0
        %4393 = vmatpush1.bf16.msra.mxu0 %v4128
        %4394 = vmatprep.subr.bf16.mxu0 0
        %4395 = vmatpush1.bf16.msra.mxu0 %v4129
        %4396 = vmatprep.subr.bf16.mxu0 0
        %4397 = vmatpush1.bf16.msra.mxu0 %v4130
        %4398 = vmatprep.subr.bf16.mxu0 0
        %4399 = vmatpush1.bf16.msra.mxu0 %v4131
        %4400 = vmatprep.subr.bf16.mxu0 0
        %4401 = vmatpush1.bf16.msra.mxu0 %v4132
        %4402 = vmatprep.subr.bf16.mxu0 0
        %4403 = vmatpush1.bf16.msra.mxu0 %v4133
        %4404 = vmatprep.subr.bf16.mxu0 0
        %4405 = vmatpush1.bf16.msra.mxu0 %v4134
        %4406 = vmatprep.subr.bf16.mxu0 0
        %4407 = vmatpush1.bf16.msra.mxu0 %v4135
        %4408 = vmatprep.mubr.bf16.mxu0 %v3336
        %4409 = vmatmul.mubr.bf16.gmra.mrb[0].mxu0 %v3335
        %v4410 = vpop.f32.mrb[0].mxu0
        %v4411 = vadd.f32 %v3607, %v4410
        %v4412 = vpop.f32.mrb[0].mxu0
        %v4413 = vpop.f32.mrb[0].mxu0
        %v4414 = vpop.f32.mrb[0].mxu0
        %4415 = vdwg.mxu0
        %4416 = vmatprep.subr.bf16.mxu0 0
        %4417 = vmatpush1.bf16.msra.mxu0 %v4136
        %4418 = vmatprep.subr.bf16.mxu0 0
        %4419 = vmatpush1.bf16.msra.mxu0 %v4137
        %4420 = vmatprep.subr.bf16.mxu0 0
        %4421 = vmatpush1.bf16.msra.mxu0 %v4138
        %4422 = vmatprep.subr.bf16.mxu0 0
        %4423 = vmatpush1.bf16.msra.mxu0 %v4139
        %4424 = vmatprep.subr.bf16.mxu0 0
        %4425 = vmatpush1.bf16.msra.mxu0 %v4140
        %4426 = vmatprep.subr.bf16.mxu0 0
        %4427 = vmatpush1.bf16.msra.mxu0 %v4141
        %4428 = vmatprep.subr.bf16.mxu0 0
        %4429 = vmatpush1.bf16.msra.mxu0 %v4142
        %4430 = vmatprep.subr.bf16.mxu0 0
        %4431 = vmatpush1.bf16.msra.mxu0 %v4143
        %4432 = vmatprep.subr.bf16.mxu0 0
        %4433 = vmatpush1.bf16.msra.mxu0 %v4144
        %4434 = vmatprep.subr.bf16.mxu0 0
        %4435 = vmatpush1.bf16.msra.mxu0 %v4145
        %4436 = vmatprep.subr.bf16.mxu0 0
        %4437 = vmatpush1.bf16.msra.mxu0 %v4146
        %4438 = vmatprep.subr.bf16.mxu0 0
        %4439 = vmatpush1.bf16.msra.mxu0 %v4147
        %4440 = vmatprep.subr.bf16.mxu0 0
        %4441 = vmatpush1.bf16.msra.mxu0 %v4148
        %4442 = vmatprep.subr.bf16.mxu0 0
        %4443 = vmatpush1.bf16.msra.mxu0 %v4149
        %4444 = vmatprep.subr.bf16.mxu0 0
        %4445 = vmatpush1.bf16.msra.mxu0 %v4150
        %4446 = vmatprep.subr.bf16.mxu0 0
        %4447 = vmatpush1.bf16.msra.mxu0 %v4151
        %4448 = vmatprep.mubr.bf16.mxu0 %v3338
        %4449 = vmatmul.mubr.bf16.gmra.mrb[0].mxu0 %v3337
        %v4450 = vpop.f32.mrb[0].mxu0
        %v4451 = vadd.f32 %v4411, %v4450
        %v4452 = vpop.f32.mrb[0].mxu0
        %v4453 = vpop.f32.mrb[0].mxu0
        %v4454 = vpop.f32.mrb[0].mxu0
        %4455 = vdwg.mxu0
        %4456 = vmatprep.subr.bf16.mxu0 0
        %4457 = vmatpush1.bf16.msra.mxu0 %v4152
        %4458 = vmatprep.subr.bf16.mxu0 0
        %4459 = vmatpush1.bf16.msra.mxu0 %v4153
        %4460 = vmatprep.subr.bf16.mxu0 0
        %4461 = vmatpush1.bf16.msra.mxu0 %v4154
        %4462 = vmatprep.subr.bf16.mxu0 0
        %4463 = vmatpush1.bf16.msra.mxu0 %v4155
        %4464 = vmatprep.subr.bf16.mxu0 0
        %4465 = vmatpush1.bf16.msra.mxu0 %v4156
        %4466 = vmatprep.subr.bf16.mxu0 0
        %4467 = vmatpush1.bf16.msra.mxu0 %v4157
        %4468 = vmatprep.subr.bf16.mxu0 0
        %4469 = vmatpush1.bf16.msra.mxu0 %v4158
        %4470 = vmatprep.subr.bf16.mxu0 0
        %4471 = vmatpush1.bf16.msra.mxu0 %v4159
        %4472 = vmatprep.subr.bf16.mxu0 0
        %4473 = vmatpush1.bf16.msra.mxu0 %v4160
        %4474 = vmatprep.subr.bf16.mxu0 0
        %4475 = vmatpush1.bf16.msra.mxu0 %v4161
        %4476 = vmatprep.subr.bf16.mxu0 0
        %4477 = vmatpush1.bf16.msra.mxu0 %v4162
        %4478 = vmatprep.subr.bf16.mxu0 0
        %4479 = vmatpush1.bf16.msra.mxu0 %v4163
        %4480 = vmatprep.subr.bf16.mxu0 0
        %4481 = vmatpush1.bf16.msra.mxu0 %v4164
        %4482 = vmatprep.subr.bf16.mxu0 0
        %4483 = vmatpush1.bf16.msra.mxu0 %v4165
        %4484 = vmatprep.subr.bf16.mxu0 0
        %4485 = vmatpush1.bf16.msra.mxu0 %v4166
        %4486 = vmatprep.subr.bf16.mxu0 0
        %4487 = vmatpush1.bf16.msra.mxu0 %v4167
        %4488 = vmatprep.mubr.bf16.mxu0 %v3340
        %4489 = vmatmul.mubr.bf16.gmra.mrb[0].mxu0 %v3339
        %v4490 = vpop.f32.mrb[0].mxu0
        %v4491 = vadd.f32 %v4451, %v4490
        %v4492 = vpop.f32.mrb[0].mxu0
        %v4493 = vpop.f32.mrb[0].mxu0
        %v4494 = vpop.f32.mrb[0].mxu0
        %4495 = vdwg.mxu0
        %4496 = vmatprep.subr.bf16.mxu0 0
        %4497 = vmatpush1.bf16.msra.mxu0 %v4168
        %4498 = vmatprep.subr.bf16.mxu0 0
        %4499 = vmatpush1.bf16.msra.mxu0 %v4169
        %4500 = vmatprep.subr.bf16.mxu0 0
        %4501 = vmatpush1.bf16.msra.mxu0 %v4170
        %4502 = vmatprep.subr.bf16.mxu0 0
        %4503 = vmatpush1.bf16.msra.mxu0 %v4171
        %4504 = vmatprep.subr.bf16.mxu0 0
        %4505 = vmatpush1.bf16.msra.mxu0 %v4172
        %4506 = vmatprep.subr.bf16.mxu0 0
        %4507 = vmatpush1.bf16.msra.mxu0 %v4173
        %4508 = vmatprep.subr.bf16.mxu0 0
        %4509 = vmatpush1.bf16.msra.mxu0 %v4174
        %4510 = vmatprep.subr.bf16.mxu0 0
        %4511 = vmatpush1.bf16.msra.mxu0 %v4175
        %4512 = vmatprep.subr.bf16.mxu0 0
        %4513 = vmatpush1.bf16.msra.mxu0 %v4176
        %4514 = vmatprep.subr.bf16.mxu0 0
        %4515 = vmatpush1.bf16.msra.mxu0 %v4177
        %4516 = vmatprep.subr.bf16.mxu0 0
        %4517 = vmatpush1.bf16.msra.mxu0 %v4178
        %4518 = vmatprep.subr.bf16.mxu0 0
        %4519 = vmatpush1.bf16.msra.mxu0 %v4179
        %4520 = vmatprep.subr.bf16.mxu0 0
        %4521 = vmatpush1.bf16.msra.mxu0 %v4180
        %4522 = vmatprep.subr.bf16.mxu0 0
        %4523 = vmatpush1.bf16.msra.mxu0 %v4181
        %4524 = vmatprep.subr.bf16.mxu0 0
        %4525 = vmatpush1.bf16.msra.mxu0 %v4182
        %4526 = vmatprep.subr.bf16.mxu0 0
        %4527 = vmatpush1.bf16.msra.mxu0 %v4183
        %4528 = vmatprep.mubr.bf16.mxu0 %v3342
        %4529 = vmatmul.mubr.bf16.gmra.mrb[0].mxu0 %v3341
        %v4530 = vpop.f32.mrb[0].mxu0
        %v4531 = vadd.f32 %v4491, %v4530
        %v4532 = vpop.f32.mrb[0].mxu0
        %v4533 = vpop.f32.mrb[0].mxu0
        %v4534 = vpop.f32.mrb[0].mxu0
        %4535 = vdwg.mxu0
        %4536 = vmatprep.subr.bf16.mxu0 0
        %4537 = vmatpush1.bf16.msra.mxu0 %v4184
        %4538 = vmatprep.subr.bf16.mxu0 0
        %4539 = vmatpush1.bf16.msra.mxu0 %v4185
        %4540 = vmatprep.subr.bf16.mxu0 0
        %4541 = vmatpush1.bf16.msra.mxu0 %v4186
        %4542 = vmatprep.subr.bf16.mxu0 0
        %4543 = vmatpush1.bf16.msra.mxu0 %v4187
        %4544 = vmatprep.subr.bf16.mxu0 0
        %4545 = vmatpush1.bf16.msra.mxu0 %v4188
        %4546 = vmatprep.subr.bf16.mxu0 0
        %4547 = vmatpush1.bf16.msra.mxu0 %v4189
        %4548 = vmatprep.subr.bf16.mxu0 0
        %4549 = vmatpush1.bf16.msra.mxu0 %v4190
        %4550 = vmatprep.subr.bf16.mxu0 0
        %4551 = vmatpush1.bf16.msra.mxu0 %v4191
        %4552 = vmatprep.subr.bf16.mxu0 0
        %4553 = vmatpush1.bf16.msra.mxu0 %v4192
        %4554 = vmatprep.subr.bf16.mxu0 0
        %4555 = vmatpush1.bf16.msra.mxu0 %v4193
        %4556 = vmatprep.subr.bf16.mxu0 0
        %4557 = vmatpush1.bf16.msra.mxu0 %v4194
        %4558 = vmatprep.subr.bf16.mxu0 0
        %4559 = vmatpush1.bf16.msra.mxu0 %v4195
        %4560 = vmatprep.subr.bf16.mxu0 0
        %4561 = vmatpush1.bf16.msra.mxu0 %v4196
        %4562 = vmatprep.subr.bf16.mxu0 0
        %4563 = vmatpush1.bf16.msra.mxu0 %v4197
        %4564 = vmatprep.subr.bf16.mxu0 0
        %4565 = vmatpush1.bf16.msra.mxu0 %v4198
        %4566 = vmatprep.subr.bf16.mxu0 0
        %4567 = vmatpush1.bf16.msra.mxu0 %v4199
        %4568 = vmatprep.mubr.bf16.mxu0 %v3344
        %4569 = vmatmul.mubr.bf16.gmra.mrb[0].mxu0 %v3343
        %v4570 = vpop.f32.mrb[0].mxu0
        %v4571 = vadd.f32 %v4531, %v4570
        %v4572 = vpop.f32.mrb[0].mxu0
        %v4573 = vpop.f32.mrb[0].mxu0
        %v4574 = vpop.f32.mrb[0].mxu0
        %4575 = vdwg.mxu0
        %4576 = vmatprep.subr.bf16.mxu0 0
        %4577 = vmatpush1.bf16.msra.mxu0 %v4200
        %4578 = vmatprep.subr.bf16.mxu0 0
        %4579 = vmatpush1.bf16.msra.mxu0 %v4201
        %4580 = vmatprep.subr.bf16.mxu0 0
        %4581 = vmatpush1.bf16.msra.mxu0 %v4202
        %4582 = vmatprep.subr.bf16.mxu0 0
        %4583 = vmatpush1.bf16.msra.mxu0 %v4203
        %4584 = vmatprep.subr.bf16.mxu0 0
        %4585 = vmatpush1.bf16.msra.mxu0 %v4204
        %4586 = vmatprep.subr.bf16.mxu0 0
        %4587 = vmatpush1.bf16.msra.mxu0 %v4205
        %4588 = vmatprep.subr.bf16.mxu0 0
        %4589 = vmatpush1.bf16.msra.mxu0 %v4206
        %4590 = vmatprep.subr.bf16.mxu0 0
        %4591 = vmatpush1.bf16.msra.mxu0 %v4207
        %4592 = vmatprep.subr.bf16.mxu0 0
        %4593 = vmatpush1.bf16.msra.mxu0 %v4208
        %4594 = vmatprep.subr.bf16.mxu0 0
        %4595 = vmatpush1.bf16.msra.mxu0 %v4209
        %4596 = vmatprep.subr.bf16.mxu0 0
        %4597 = vmatpush1.bf16.msra.mxu0 %v4210
        %4598 = vmatprep.subr.bf16.mxu0 0
        %4599 = vmatpush1.bf16.msra.mxu0 %v4211
        %4600 = vmatprep.subr.bf16.mxu0 0
        %4601 = vmatpush1.bf16.msra.mxu0 %v4212
        %4602 = vmatprep.subr.bf16.mxu0 0
        %4603 = vmatpush1.bf16.msra.mxu0 %v4213
        %4604 = vmatprep.subr.bf16.mxu0 0
        %4605 = vmatpush1.bf16.msra.mxu0 %v4214
        %4606 = vmatprep.subr.bf16.mxu0 0
        %4607 = vmatpush1.bf16.msra.mxu0 %v4215
        %4608 = vmatprep.mubr.bf16.mxu0 %v3346
        %4609 = vmatmul.mubr.bf16.gmra.mrb[0].mxu0 %v3345
        %v4610 = vpop.f32.mrb[0].mxu0
        %v4611 = vadd.f32 %v4571, %v4610
        %v4612 = vpop.f32.mrb[0].mxu0
        %v4613 = vpop.f32.mrb[0].mxu0
        %v4614 = vpop.f32.mrb[0].mxu0
        %4615 = vdwg.mxu0
        %4616 = vmatprep.subr.bf16.mxu0 0
        %4617 = vmatpush1.bf16.msra.mxu0 %v4216
        %4618 = vmatprep.subr.bf16.mxu0 0
        %4619 = vmatpush1.bf16.msra.mxu0 %v4217
        %4620 = vmatprep.subr.bf16.mxu0 0
        %4621 = vmatpush1.bf16.msra.mxu0 %v4218
        %4622 = vmatprep.subr.bf16.mxu0 0
        %4623 = vmatpush1.bf16.msra.mxu0 %v4219
        %4624 = vmatprep.subr.bf16.mxu0 0
        %4625 = vmatpush1.bf16.msra.mxu0 %v4220
        %4626 = vmatprep.subr.bf16.mxu0 0
        %4627 = vmatpush1.bf16.msra.mxu0 %v4221
        %4628 = vmatprep.subr.bf16.mxu0 0
        %4629 = vmatpush1.bf16.msra.mxu0 %v4222
        %4630 = vmatprep.subr.bf16.mxu0 0
        %4631 = vmatpush1.bf16.msra.mxu0 %v4223
        %4632 = vmatprep.subr.bf16.mxu0 0
        %4633 = vmatpush1.bf16.msra.mxu0 %v4224
        %4634 = vmatprep.subr.bf16.mxu0 0
        %4635 = vmatpush1.bf16.msra.mxu0 %v4225
        %4636 = vmatprep.subr.bf16.mxu0 0
        %4637 = vmatpush1.bf16.msra.mxu0 %v4226
        %4638 = vmatprep.subr.bf16.mxu0 0
        %4639 = vmatpush1.bf16.msra.mxu0 %v4227
        %4640 = vmatprep.subr.bf16.mxu0 0
        %4641 = vmatpush1.bf16.msra.mxu0 %v4228
        %4642 = vmatprep.subr.bf16.mxu0 0
        %4643 = vmatpush1.bf16.msra.mxu0 %v4229
        %4644 = vmatprep.subr.bf16.mxu0 0
        %4645 = vmatpush1.bf16.msra.mxu0 %v4230
        %4646 = vmatprep.subr.bf16.mxu0 0
        %4647 = vmatpush1.bf16.msra.mxu0 %v4231
        %4648 = vmatprep.mubr.bf16.mxu0 %v3348
        %4649 = vmatmul.mubr.bf16.gmra.mrb[0].mxu0 %v3347
        %v4650 = vpop.f32.mrb[0].mxu0
        %v4651 = vadd.f32 %v4611, %v4650
        %v4652 = vpop.f32.mrb[0].mxu0
        %v4653 = vpop.f32.mrb[0].mxu0
        %v4654 = vpop.f32.mrb[0].mxu0
        %4655 = vdwg.mxu0
        %4656 = vmatprep.subr.bf16.mxu0 0
        %4657 = vmatpush1.bf16.msra.mxu0 %v4232
        %4658 = vmatprep.subr.bf16.mxu0 0
        %4659 = vmatpush1.bf16.msra.mxu0 %v4233
        %4660 = vmatprep.subr.bf16.mxu0 0
        %4661 = vmatpush1.bf16.msra.mxu0 %v4234
        %4662 = vmatprep.subr.bf16.mxu0 0
        %4663 = vmatpush1.bf16.msra.mxu0 %v4235
        %4664 = vmatprep.subr.bf16.mxu0 0
        %4665 = vmatpush1.bf16.msra.mxu0 %v4236
        %4666 = vmatprep.subr.bf16.mxu0 0
        %4667 = vmatpush1.bf16.msra.mxu0 %v4237
        %4668 = vmatprep.subr.bf16.mxu0 0
        %4669 = vmatpush1.bf16.msra.mxu0 %v4238
        %4670 = vmatprep.subr.bf16.mxu0 0
        %4671 = vmatpush1.bf16.msra.mxu0 %v4239
        %4672 = vmatprep.subr.bf16.mxu0 0
        %4673 = vmatpush1.bf16.msra.mxu0 %v4240
        %4674 = vmatprep.subr.bf16.mxu0 0
        %4675 = vmatpush1.bf16.msra.mxu0 %v4241
        %4676 = vmatprep.subr.bf16.mxu0 0
        %4677 = vmatpush1.bf16.msra.mxu0 %v4242
        %4678 = vmatprep.subr.bf16.mxu0 0
        %4679 = vmatpush1.bf16.msra.mxu0 %v4243
        %4680 = vmatprep.subr.bf16.mxu0 0
        %4681 = vmatpush1.bf16.msra.mxu0 %v4244
        %4682 = vmatprep.subr.bf16.mxu0 0
        %4683 = vmatpush1.bf16.msra.mxu0 %v4245
        %4684 = vmatprep.subr.bf16.mxu0 0
        %4685 = vmatpush1.bf16.msra.mxu0 %v4246
        %4686 = vmatprep.subr.bf16.mxu0 0
        %4687 = vmatpush1.bf16.msra.mxu0 %v4247
        %4688 = vmatprep.mubr.bf16.mxu0 %v3350
        %4689 = vmatmul.mubr.bf16.gmra.mrb[0].mxu0 %v3349
        %v4690 = vpop.f32.mrb[0].mxu0
        %v4691 = vadd.f32 %v4651, %v4690
        %v4692 = vpop.f32.mrb[0].mxu0
        %v4693 = vpop.f32.mrb[0].mxu0
        %v4694 = vpop.f32.mrb[0].mxu0
        %4695 = vdwg.mxu0
        %4696 = vst [vmem:[%s297] sm:$0x1] %v4691
        %s4697 = sand.u32 %s203, 1
        %s4698 = scalar_lea.sflag [#allocation3], %s4697
        %s4699 = sand.u32 %s203, 1
        %s4700 = scalar_lea.vmem [#allocation2], %s4699
        // Predicated region
        $region53: #{cnn_forward.1} parent=51 // pred_check
          %p4701 = pneg %p213
        $region54: #{cnn_forward.1} parent=51 // pred_check_branch
          %4703 = sbr.rel (%p4701) target = $region56
        $region55: #{cnn_forward.1} parent=51 // pred_region
          %s4705 = ssub.s32 16, 16
          %4706 = vsyncadd %s4698, %s4705
          %s4707 = smul.addr %s22, 16
          %s4708 = scalar_lea.hbm %s8, %s4707
          %s4710 = sshll.u32 %s4700, 4
          %s4711 = int_to_ptr.vmem [resolvable:$true] %s4710
          %4713 = dma.vmem_to_hbm [thread:$0]  %s4711, 16, %s4708, %s4698
        $region56: #{cnn_forward.1} parent=51 // pred_fallthru
          _
      $region52: #{cnn_forward.1} parent=5 // pred_fallthru
        _
      %p4714 = scmp.le.s32.totalorder 2, %s17
      // Predicated region
      $region57: #{cnn_forward.1} parent=5 // pred_check
        %p4715 = pneg %p4714
      $region58: #{cnn_forward.1} parent=5 // pred_check_branch
        %4717 = sbr.rel (%p4715) target = $region60
      $region59: #{cnn_forward.1} parent=5 // pred_region
        %s4718 = ssub.s32 %s17, 2
        // Predicated region
        $region61: #{cnn_forward.1} parent=59 // pred_check
          %p4719 = pneg %p219
        $region62: #{cnn_forward.1} parent=59 // pred_check_branch
          %4721 = sbr.rel (%p4719) target = $region64
        $region63: #{cnn_forward.1} parent=59 // pred_region
          %s4722 = sand.u32 %s204, 1
          %s4723 = scalar_lea.sflag [#allocation3], %s4722
          %s4724 = sand.u32 %s204, 1
          %s4725 = scalar_lea.vmem [#allocation2], %s4724
          %4726 = dma.done %s4723, 16
        $region64: #{cnn_forward.1} parent=59 // pred_fallthru
          _
      $region60: #{cnn_forward.1} parent=5 // pred_fallthru
        _
    $region6: #{cnn_forward.1} parent=1 // loop_footer
      %s21 = sadd.s32 1, %s17
    $region7: #{cnn_forward.1} parent=1 // loop_footer_branch
      %16 = sbr.rel target = $region3
    $region8: #{cnn_forward.1} parent=1 // loop_exit
      _
    %4727 = vsyncpa [#allocation3], 1
    %s4728 = scalar_lea.sflag [#allocation3], 1
    %4729 = vsyncpa %s4728, 1

</llo_original>
